<compile_context>
chip_gen: v7x
topology: tpu7x:2x2x1
jax: 0.10.0
libtpu: 0.0.40
codegen_flags: <defaults>
</compile_context>

<pallas_src>
import numpy as np
import jax
import jax.numpy as jnp
from jax import lax
from jax.experimental import pallas as pl
from jax.experimental.pallas import tpu as pltpu


def _round_up(x, m):
    return (x + m - 1) // m * m


# --------------------------------------------------------------------------
# Pallas kernels
# --------------------------------------------------------------------------

def _mm_bias_kernel(x_ref, w_ref, b_ref, o_ref):
    """One (tile_m, K) @ (K, N) + bias tile; bf16 operands, f32 accumulate."""
    o_ref[...] = (jnp.dot(x_ref[...], w_ref[...],
                          preferred_element_type=jnp.float32)
                  + b_ref[...])


def matmul_bias(x, w, b, tile_m=256):
    """(M, K) @ (K, N) + b. Tiled over M, bf16 operands / fp32 output."""
    M, K = x.shape
    N = w.shape[1]
    tile_m = min(tile_m, _round_up(M, 8))
    Mp = _round_up(M, tile_m)
    if Mp != M:
        x = jnp.pad(x, ((0, Mp - M), (0, 0)))
    out = pl.pallas_call(
        _mm_bias_kernel,
        out_shape=jax.ShapeDtypeStruct((Mp, N), jnp.float32),
        grid_spec=pltpu.PrefetchScalarGridSpec(
            num_scalar_prefetch=0,
            grid=(Mp // tile_m,),
            in_specs=[pl.BlockSpec((tile_m, K), lambda i: (i, 0)),
                      pl.BlockSpec((K, N), lambda i: (0, 0)),
                      pl.BlockSpec((1, N), lambda i: (0, 0))],
            out_specs=pl.BlockSpec((tile_m, N), lambda i: (i, 0)),
        ),
        compiler_params=pltpu.CompilerParams(
            dimension_semantics=("parallel",)),
    )(x.astype(jnp.bfloat16), w.astype(jnp.bfloat16), b.astype(jnp.float32))
    return out[:M] if Mp != M else out


def _bilstm_chunk_kernel(g_ref, m_ref, whh_ref, out_ref, h_scr, c_scr):
    """Tc LSTM timesteps of one direction; grid = (direction, time-chunk).

    g_ref   : (Tc, B, 4H) f32  precomputed x @ W_ih^T + (b_ih + b_hh)
    m_ref   : (Tc, B, 1)  f32  validity mask (1.0 where t < length[b])
    whh_ref : (1, H, 4H)  bf16 recurrent weights of this direction
    out_ref : (Tc, B, H)  f32  this direction's half of the (T, B, 2H) output
    """
    d = pl.program_id(0)        # 0 = forward, 1 = backward (time-reversed)
    tb = pl.program_id(1)       # time-chunk index within the direction

    @pl.when(tb == 0)           # fresh zero carry at the start of each direction
    def _():
        h_scr[...] = jnp.zeros_like(h_scr)
        c_scr[...] = jnp.zeros_like(c_scr)

    Tc = g_ref.shape[0]
    H = h_scr.shape[-1]

    def step(i, carry):
        h_prev, c_prev = carry
        # forward walks the chunk 0..Tc-1; backward walks it Tc-1..0
        t = jnp.where(d == 0, i, Tc - 1 - i)
        g = g_ref[t]            # (B, 4H) gate pre-activations (input part)
        m = m_ref[t]            # (B, 1)
        gates = g + jnp.dot(h_prev.astype(jnp.bfloat16), whh_ref[0],
                            preferred_element_type=jnp.float32)
        # PyTorch gate order: i, f, g, o  (fp32 elementwise; v5e-friendly)
        i_g = jax.nn.sigmoid(gates[:, 0:H])
        f_g = jax.nn.sigmoid(gates[:, H:2 * H])
        g_g = jnp.tanh(gates[:, 2 * H:3 * H])
        o_g = jax.nn.sigmoid(gates[:, 3 * H:4 * H])
        c = f_g * c_prev + i_g * g_g
        h = o_g * jnp.tanh(c)
        # packed-sequence semantics: hold carry on padded steps, zero output
        h = m * h + (1.0 - m) * h_prev
        c = m * c + (1.0 - m) * c_prev
        out_ref[t] = m * h
        return h, c

    h, c = lax.fori_loop(0, Tc, step, (h_scr[...], c_scr[...]), unroll=True)
    h_scr[...] = h
    c_scr[...] = c


def bilstm_recurrence(g, mask, whh_both, Tc):
    """Bidirectional length-masked LSTM recurrence.

    g        : (Tp, B, 8H) f32   gate pre-activations [fwd 4H | bwd 4H]
    mask     : (Tp, B, 1)  f32
    whh_both : (2, H, 4H)  bf16
    returns  : (Tp, B, 2H) f32   fused [fwd | bwd] output (H % 128 == 0 assumed)
    """
    Tp, B, _ = g.shape
    H = whh_both.shape[1]
    nTb = Tp // Tc

    def tmap(d, tb):
        # forward: time chunk tb ; backward: time chunk nTb - 1 - tb
        return tb + d * (nTb - 1 - 2 * tb)

    cost = pl.CostEstimate(
        flops=2 * 2 * Tp * B * H * (4 * H) + 2 * Tp * B * 30 * H,
        transcendentals=2 * Tp * B * 4 * H,
        bytes_accessed=(g.size * 4 + mask.size * 4
                        + whh_both.size * 2 + Tp * B * 2 * H * 4),
    )

    return pl.pallas_call(
        _bilstm_chunk_kernel,
        out_shape=jax.ShapeDtypeStruct((Tp, B, 2 * H), jnp.float32),
        grid_spec=pltpu.PrefetchScalarGridSpec(
            num_scalar_prefetch=0,
            grid=(2, nTb),                               # (direction, time-chunk)
            in_specs=[
                pl.BlockSpec((Tc, B, 4 * H), lambda d, tb: (tmap(d, tb), 0, d)),
                pl.BlockSpec((Tc, B, 1),     lambda d, tb: (tmap(d, tb), 0, 0)),
                pl.BlockSpec((1, H, 4 * H),  lambda d, tb: (d, 0, 0)),
            ],
            # fused concat: direction selects the H-wide half of the 2H output
            out_specs=pl.BlockSpec((Tc, B, H), lambda d, tb: (tmap(d, tb), 0, d)),
            scratch_shapes=[pltpu.VMEM((B, H), jnp.float32),   # h carry
                            pltpu.VMEM((B, H), jnp.float32)],  # c carry
        ),
        compiler_params=pltpu.CompilerParams(
            dimension_semantics=("parallel", "arbitrary")),    # dirs || on v7x
        cost_estimate=cost,
    )(g, mask, whh_both)


# --------------------------------------------------------------------------
# Encoder forward (glue in plain JAX)
# --------------------------------------------------------------------------

def encoder_forward(x_ids, lengths, lang_params, Tc=8):
    """Encoder.forward for one language. x_ids: (slen, bs) int32, lengths: (bs,)."""
    emb_w = lang_params["emb"]
    lstm_layers = lang_params["lstm"]
    proj_w_t = lang_params["proj_t"]          # (2H, emb_dim) bf16
    T, B = x_ids.shape
    emb_dim = emb_w.shape[1]
    H = lstm_layers[0]["whh"].shape[1]

    # sort batch by decreasing length (torch: lengths.sort(0, descending=True)[1])
    sort_idx = jnp.argsort(-lengths)
    unsort_idx = jnp.argsort(sort_idx)
    x_sorted = x_ids[:, sort_idx]
    lengths_sorted = lengths[sort_idx]

    # embedding lookup (pad row of emb_w is zero).
    # TODO(synk): dropout is identity in eval mode and is omitted.
    h = jnp.take(emb_w, x_sorted, axis=0)                     # (T, B, emb_dim) f32

    # pad time to a multiple of Tc (padded steps have mask 0 -> zero output)
    Tc = min(Tc, T)
    Tp = _round_up(T, Tc)
    if Tp != T:
        h = jnp.pad(h, ((0, Tp - T), (0, 0), (0, 0)))
    mask = (jnp.arange(Tp)[:, None] < lengths_sorted[None, :]
            ).astype(jnp.float32)[:, :, None]                 # (Tp, B, 1)

    # multi-layer bidirectional length-masked LSTM
    for lp in lstm_layers:
        x2d = h.reshape(Tp * B, h.shape[-1])
        # hoisted input projection for BOTH directions in one tiled bf16 GEMM
        g = matmul_bias(x2d, lp["wih_cat"], lp["b_cat"]).reshape(Tp, B, 8 * H)
        h = bilstm_recurrence(g, mask, lp["whh"], Tc)         # (Tp, B, 2H)
        # TODO(synk): inter-layer LSTM dropout omitted (eval mode / dropout=0).

    # projection 2H -> emb_dim (no bias), tiled GEMM, then un-sort the batch
    zero_b = jnp.zeros((1, emb_dim), jnp.float32)
    proj = matmul_bias(h.reshape(Tp * B, 2 * H), proj_w_t, zero_b)
    dec_input = proj.reshape(Tp, B, emb_dim)[:T][:, unsort_idx]
    return dec_input


# --------------------------------------------------------------------------
# Deterministic parameter init (mirrors PyTorch __init__ shapes & init scheme)
# --------------------------------------------------------------------------

def init_encoder_params(key, n_langs, n_words, emb_dim, hidden_dim,
                        n_enc_layers, pad_index):
    params = []
    H = hidden_dim
    for lang in range(n_langs):
        key, ke = jax.random.split(key)
        emb = 0.1 * jax.random.normal(ke, (n_words[lang], emb_dim),
                                      dtype=jnp.float32)
        emb = emb.at[pad_index].set(0.0)

        bound = 1.0 / np.sqrt(H)
        lstm_layers = []
        for layer in range(n_enc_layers):
            d_in = emb_dim if layer == 0 else 2 * H
            wih_t, whh_t, bias = [], [], []
            for _direction in range(2):                      # fwd, bwd
                key, k1, k2, k3, k4 = jax.random.split(key, 5)
                w_ih = jax.random.uniform(k1, (4 * H, d_in),
                                          minval=-bound, maxval=bound)
                w_hh = jax.random.uniform(k2, (4 * H, H),
                                          minval=-bound, maxval=bound)
                b_ih = jax.random.uniform(k3, (4 * H,),
                                          minval=-bound, maxval=bound)
                b_hh = jax.random.uniform(k4, (4 * H,),
                                          minval=-bound, maxval=bound)
                wih_t.append(w_ih.T)                         # (d_in, 4H)
                whh_t.append(w_hh.T)                         # (H, 4H)
                bias.append(b_ih + b_hh)                     # (4H,)
            lstm_layers.append({
                # [fwd | bwd] along the gate axis; bf16 matmul operands
                "wih_cat": jnp.concatenate(wih_t, 1).astype(jnp.bfloat16),   # (d_in, 8H)
                "whh": jnp.stack(whh_t, 0).astype(jnp.bfloat16),             # (2, H, 4H)
                "b_cat": jnp.concatenate(bias, 0)[None, :].astype(jnp.float32),  # (1, 8H)
            })

        key, kp = jax.random.split(key)
        pb = 1.0 / np.sqrt(2 * H)
        proj_w = jax.random.uniform(kp, (emb_dim, 2 * H), minval=-pb, maxval=pb)
        params.append({"emb": emb,
                       "lstm": lstm_layers,
                       "proj_t": proj_w.T.astype(jnp.bfloat16)})             # (2H, emb)
    return params


# --------------------------------------------------------------------------
# Demo
# --------------------------------------------------------------------------

if __name__ == "__main__":
    # Small, module-consistent config. hidden_dim is a multiple of 128 so gate
    # slices and the fused [fwd|bwd] output blocks are lane-aligned.
    n_langs = 2
    n_words = [53, 61]
    emb_dim = 128
    hidden_dim = 128
    n_enc_layers = 2
    pad_index = 0
    slen, bs = 16, 4
    lang_id = 0

    key = jax.random.PRNGKey(0)
    key, kparam, kx = jax.random.split(key, 3)
    all_params = init_encoder_params(kparam, n_langs, n_words, emb_dim,
                                     hidden_dim, n_enc_layers, pad_index)

    lengths_np = np.array([10, 16, 5, 13], dtype=np.int32)   # max == slen
    x_np = np.array(jax.random.randint(kx, (slen, bs), 3, n_words[lang_id]),
                    dtype=np.int32)
    for b in range(bs):                                       # pad past each length
        x_np[lengths_np[b]:, b] = pad_index

    x = jnp.asarray(x_np)                    # (slen, bs) int32 word indices
    lengths = jnp.asarray(lengths_np)        # (bs,)

    fwd = jax.jit(encoder_forward)
    dec_input = fwd(x, lengths, all_params[lang_id])
    dec_input = jax.block_until_ready(dec_input)              # (slen, bs, emb_dim)

    # dis_input (dis_input_proj=True): masked_select over valid positions.
    # Data-dependent output shape -> host-side numpy glue.
    valid_mask = np.arange(slen)[:, None] < lengths_np[None, :]     # (slen, bs)
    dis_input = np.asarray(dec_input)[valid_mask]                   # (sum(len), emb)

    assert dec_input.shape == (slen, bs, emb_dim)
    assert dis_input.shape == (int(lengths_np.sum()), emb_dim)
    assert np.isfinite(np.asarray(dec_input)).all()
    # padded positions of the projected output must be exactly zero
    assert np.allclose(np.asarray(dec_input)[~valid_mask], 0.0)

    print("KERNEL_OK")
</pallas_src>

<mosaic_0001>
module attributes {stable_mosaic.version = 11 : i64} {
  func.func @_mm_bias_kernel(%arg0: i32, %arg1: memref<64x128xbf16, #tpu.memory_space<vmem>>, %arg2: memref<128x1024xbf16, #tpu.memory_space<vmem>>, %arg3: memref<1x1024xf32, #tpu.memory_space<vmem>>, %arg4: memref<64x1024xf32, #tpu.memory_space<vmem>>) attributes {dimension_semantics = [#tpu.dimension_semantics<parallel>], iteration_bounds = array<i64: 1>, scalar_prefetch = 0 : i64, scratch_operands = 0 : i64, tpu.core_type = #tpu.core_type<tc>, window_params = [{transform_indices = @transform_0, window_bounds = array<i64: 64, 128>}, {pipeline_mode = #tpu.pipeline_mode<synchronous>, transform_indices = @transform_1, window_bounds = array<i64: 128, 1024>}, {pipeline_mode = #tpu.pipeline_mode<synchronous>, transform_indices = @transform_2, window_bounds = array<i64: 1, 1024>}, {transform_indices = @transform_3, window_bounds = array<i64: 64, 1024>}]} {
    %c0 = arith.constant 0 : index
    %c0_0 = arith.constant 0 : index
    %0 = vector.load %arg1[%c0, %c0_0] : memref<64x128xbf16, #tpu.memory_space<vmem>>, vector<64x128xbf16>
    %c0_1 = arith.constant 0 : index
    %c0_2 = arith.constant 0 : index
    %1 = vector.load %arg2[%c0_1, %c0_2] : memref<128x1024xbf16, #tpu.memory_space<vmem>>, vector<128x1024xbf16>
    %cst = arith.constant dense<0.000000e+00> : vector<64x1024xf32>
    %2 = tpu.matmul %0, %1, %cst {dimension_numbers = #tpu.dot_dimension_numbers<[1], [0], [0], [1], [0, 0, 1, 1], [], []>} : vector<64x128xbf16>, vector<128x1024xbf16>, vector<64x1024xf32> -> vector<64x1024xf32>
    %c0_3 = arith.constant 0 : index
    %c0_4 = arith.constant 0 : index
    %3 = vector.load %arg3[%c0_3, %c0_4] : memref<1x1024xf32, #tpu.memory_space<vmem>>, vector<1x1024xf32>
    %4 = vector.broadcast %3 : vector<1x1024xf32> to vector<64x1024xf32>
    %5 = arith.addf %2, %4 : vector<64x1024xf32>
    %c0_5 = arith.constant 0 : index
    %c0_6 = arith.constant 0 : index
    %6 = vector.load %arg4[%c0_5, %c0_6] : memref<64x1024xf32, #tpu.memory_space<vmem>>, vector<64x1024xf32>
    tpu.vector_store %arg4[%c0_5, %c0_6], %5 {strides = array<i32>} : memref<64x1024xf32, #tpu.memory_space<vmem>>, vector<64x1024xf32>,
    return
  }
  func.func @transform_0(%arg0: i32) -> (i32, i32) {
    %c0_i32 = arith.constant 0 : i32
    %c0_i32_0 = arith.constant 0 : i32
    return %arg0, %c0_i32 : i32, i32
  }
  func.func @transform_1(%arg0: i32) -> (i32, i32) {
    %c0_i32 = arith.constant 0 : i32
    %c0_i32_0 = arith.constant 0 : i32
    %c0_i32_1 = arith.constant 0 : i32
    return %c0_i32, %c0_i32_0 : i32, i32
  }
  func.func @transform_2(%arg0: i32) -> (i32, i32) {
    %c0_i32 = arith.constant 0 : i32
    %c0_i32_0 = arith.constant 0 : i32
    %c0_i32_1 = arith.constant 0 : i32
    return %c0_i32, %c0_i32_0 : i32, i32
  }
  func.func @transform_3(%arg0: i32) -> (i32, i32) {
    %c0_i32 = arith.constant 0 : i32
    %c0_i32_0 = arith.constant 0 : i32
    return %arg0, %c0_i32 : i32, i32
  }
}

module attributes {stable_mosaic.version = 11 : i64} {
  func.func @_bilstm_chunk_kernel(%arg0: i32, %arg1: i32, %arg2: memref<8x4x512xf32, #tpu.memory_space<vmem>>, %arg3: memref<8x4x1xf32, #tpu.memory_space<vmem>>, %arg4: memref<1x128x512xbf16, #tpu.memory_space<vmem>>, %arg5: memref<8x4x128xf32, #tpu.memory_space<vmem>>, %arg6: memref<4x128xf32, #tpu.memory_space<vmem>>, %arg7: memref<4x128xf32, #tpu.memory_space<vmem>>) attributes {dimension_semantics = [#tpu.dimension_semantics<parallel>, #tpu.dimension_semantics<arbitrary>], iteration_bounds = array<i64: 2, 2>, scalar_prefetch = 0 : i64, scratch_operands = 2 : i64, tpu.core_type = #tpu.core_type<tc>, window_params = [{transform_indices = @transform_0, window_bounds = array<i64: 8, 4, 512>}, {transform_indices = @transform_1, window_bounds = array<i64: 8, 4, 1>}, {transform_indices = @transform_2, window_bounds = array<i64: 1, 128, 512>}, {transform_indices = @transform_3, window_bounds = array<i64: 8, 4, 128>}]} {
    %c0_i32 = arith.constant 0 : i32
    %0 = arith.cmpi eq, %arg1, %c0_i32 : i32
    %1 = arith.extui %0 : i1 to i32
    %c0_i32_0 = arith.constant 0 : i32
    %2 = arith.cmpi ne, %1, %c0_i32_0 : i32
    scf.if %2 {
      %cst_144 = arith.constant 0.000000e+00 : f32
      %479 = vector.broadcast %cst_144 : f32 to vector<4x128xf32>
      %c0_145 = arith.constant 0 : index
      %c0_146 = arith.constant 0 : index
      %480 = vector.load %arg6[%c0_145, %c0_146] : memref<4x128xf32, #tpu.memory_space<vmem>>, vector<4x128xf32>
      tpu.vector_store %arg6[%c0_145, %c0_146], %479 {strides = array<i32>} : memref<4x128xf32, #tpu.memory_space<vmem>>, vector<4x128xf32>,
      %cst_147 = arith.constant 0.000000e+00 : f32
      %481 = vector.broadcast %cst_147 : f32 to vector<4x128xf32>
      %c0_148 = arith.constant 0 : index
      %c0_149 = arith.constant 0 : index
      %482 = vector.load %arg7[%c0_148, %c0_149] : memref<4x128xf32, #tpu.memory_space<vmem>>, vector<4x128xf32>
      tpu.vector_store %arg7[%c0_148, %c0_149], %481 {strides = array<i32>} : memref<4x128xf32, #tpu.memory_space<vmem>>, vector<4x128xf32>,
    } else {
    }
    %c0 = arith.constant 0 : index
    %c0_1 = arith.constant 0 : index
    %3 = vector.load %arg6[%c0, %c0_1] : memref<4x128xf32, #tpu.memory_space<vmem>>, vector<4x128xf32>
    %c0_2 = arith.constant 0 : index
    %c0_3 = arith.constant 0 : index
    %4 = vector.load %arg7[%c0_2, %c0_3] : memref<4x128xf32, #tpu.memory_space<vmem>>, vector<4x128xf32>
    %c0_i32_4 = arith.constant 0 : i32
    %c0_i32_5 = arith.constant 0 : i32
    %5 = arith.cmpi eq, %arg0, %c0_i32_5 : i32
    %c7_i32 = arith.constant 7 : i32
    %6 = arith.subi %c7_i32, %c0_i32_4 : i32
    %7 = arith.select %5, %c0_i32_4, %6 : i32
    %8 = arith.index_cast %7 : i32 to index
    %c0_6 = arith.constant 0 : index
    %c0_7 = arith.constant 0 : index
    %9 = vector.load %arg2[%8, %c0_6, %c0_7] : memref<8x4x512xf32, #tpu.memory_space<vmem>>, vector<1x4x512xf32>
    %10 = vector.shape_cast %9 : vector<1x4x512xf32> to vector<4x512xf32>
    %11 = arith.index_cast %7 : i32 to index
    %c0_8 = arith.constant 0 : index
    %c0_9 = arith.constant 0 : index
    %12 = vector.load %arg3[%11, %c0_8, %c0_9] : memref<8x4x1xf32, #tpu.memory_space<vmem>>, vector<1x4x1xf32>
    %13 = vector.shape_cast %12 : vector<1x4x1xf32> to vector<4x1xf32>
    %14 = arith.truncf %3 : vector<4x128xf32> to vector<4x128xbf16>
    %c0_10 = arith.constant 0 : index
    %c0_11 = arith.constant 0 : index
    %c0_12 = arith.constant 0 : index
    %15 = vector.load %arg4[%c0_10, %c0_11, %c0_12] : memref<1x128x512xbf16, #tpu.memory_space<vmem>>, vector<1x128x512xbf16>
    %16 = vector.shape_cast %15 : vector<1x128x512xbf16> to vector<128x512xbf16>
    %cst = arith.constant dense<0.000000e+00> : vector<4x512xf32>
    %17 = tpu.matmul %14, %16, %cst {dimension_numbers = #tpu.dot_dimension_numbers<[1], [0], [0], [1], [0, 0, 1, 1], [], []>} : vector<4x128xbf16>, vector<128x512xbf16>, vector<4x512xf32> -> vector<4x512xf32>
    %18 = arith.addf %10, %17 : vector<4x512xf32>
    %19 = vector.extract_strided_slice %18 {offsets = [0, 0], sizes = [4, 128], strides = [1, 1]} : vector<4x512xf32> to vector<4x128xf32>
    %20 = arith.negf %19 : vector<4x128xf32>
    %21 = math.exp %20 : vector<4x128xf32>
    %cst_13 = arith.constant 1.000000e+00 : f32
    %22 = vector.broadcast %cst_13 : f32 to vector<4x128xf32>
    %23 = arith.addf %22, %21 : vector<4x128xf32>
    %24 = arith.divf %22, %23 : vector<4x128xf32>
    %25 = vector.extract_strided_slice %18 {offsets = [0, 128], sizes = [4, 128], strides = [1, 1]} : vector<4x512xf32> to vector<4x128xf32>
    %26 = arith.negf %25 : vector<4x128xf32>
    %27 = math.exp %26 : vector<4x128xf32>
    %cst_14 = arith.constant 1.000000e+00 : f32
    %28 = vector.broadcast %cst_14 : f32 to vector<4x128xf32>
    %29 = arith.addf %28, %27 : vector<4x128xf32>
    %30 = arith.divf %28, %29 : vector<4x128xf32>
    %31 = vector.extract_strided_slice %18 {offsets = [0, 256], sizes = [4, 128], strides = [1, 1]} : vector<4x512xf32> to vector<4x128xf32>
    %32 = math.tanh %31 : vector<4x128xf32>
    %33 = vector.extract_strided_slice %18 {offsets = [0, 384], sizes = [4, 128], strides = [1, 1]} : vector<4x512xf32> to vector<4x128xf32>
    %34 = arith.negf %33 : vector<4x128xf32>
    %35 = math.exp %34 : vector<4x128xf32>
    %cst_15 = arith.constant 1.000000e+00 : f32
    %36 = vector.broadcast %cst_15 : f32 to vector<4x128xf32>
    %37 = arith.addf %36, %35 : vector<4x128xf32>
    %38 = arith.divf %36, %37 : vector<4x128xf32>
    %39 = arith.mulf %30, %4 : vector<4x128xf32>
    %40 = arith.mulf %24, %32 : vector<4x128xf32>
    %41 = arith.addf %39, %40 : vector<4x128xf32>
    %42 = math.tanh %41 : vector<4x128xf32>
    %43 = arith.mulf %38, %42 : vector<4x128xf32>
    %44 = vector.broadcast %13 : vector<4x1xf32> to vector<4x128xf32>
    %45 = arith.mulf %44, %43 : vector<4x128xf32>
    %cst_16 = arith.constant 1.000000e+00 : f32
    %46 = vector.broadcast %cst_16 : f32 to vector<4x1xf32>
    %47 = arith.subf %46, %13 : vector<4x1xf32>
    %48 = vector.broadcast %47 : vector<4x1xf32> to vector<4x128xf32>
    %49 = arith.mulf %48, %3 : vector<4x128xf32>
    %50 = arith.addf %45, %49 : vector<4x128xf32>
    %51 = vector.broadcast %13 : vector<4x1xf32> to vector<4x128xf32>
    %52 = arith.mulf %51, %41 : vector<4x128xf32>
    %cst_17 = arith.constant 1.000000e+00 : f32
    %53 = vector.broadcast %cst_17 : f32 to vector<4x1xf32>
    %54 = arith.subf %53, %13 : vector<4x1xf32>
    %55 = vector.broadcast %54 : vector<4x1xf32> to vector<4x128xf32>
    %56 = arith.mulf %55, %4 : vector<4x128xf32>
    %57 = arith.addf %52, %56 : vector<4x128xf32>
    %58 = vector.broadcast %13 : vector<4x1xf32> to vector<4x128xf32>
    %59 = arith.mulf %58, %50 : vector<4x128xf32>
    %60 = arith.index_cast %7 : i32 to index
    %c0_18 = arith.constant 0 : index
    %c0_19 = arith.constant 0 : index
    %61 = vector.load %arg5[%60, %c0_18, %c0_19] : memref<8x4x128xf32, #tpu.memory_space<vmem>>, vector<1x4x128xf32>
    %62 = vector.shape_cast %61 : vector<1x4x128xf32> to vector<4x128xf32>
    %63 = vector.shape_cast %59 : vector<4x128xf32> to vector<1x4x128xf32>
    tpu.vector_store %arg5[%60, %c0_18, %c0_19], %63 {strides = array<i32>} : memref<8x4x128xf32, #tpu.memory_space<vmem>>, vector<1x4x128xf32>,
    %c1_i32 = arith.constant 1 : i32
    %c0_i32_20 = arith.constant 0 : i32
    %64 = arith.cmpi eq, %arg0, %c0_i32_20 : i32
    %c7_i32_21 = arith.constant 7 : i32
    %65 = arith.subi %c7_i32_21, %c1_i32 : i32
    %66 = arith.select %64, %c1_i32, %65 : i32
    %67 = arith.index_cast %66 : i32 to index
    %c0_22 = arith.constant 0 : index
    %c0_23 = arith.constant 0 : index
    %68 = vector.load %arg2[%67, %c0_22, %c0_23] : memref<8x4x512xf32, #tpu.memory_space<vmem>>, vector<1x4x512xf32>
    %69 = vector.shape_cast %68 : vector<1x4x512xf32> to vector<4x512xf32>
    %70 = arith.index_cast %66 : i32 to index
    %c0_24 = arith.constant 0 : index
    %c0_25 = arith.constant 0 : index
    %71 = vector.load %arg3[%70, %c0_24, %c0_25] : memref<8x4x1xf32, #tpu.memory_space<vmem>>, vector<1x4x1xf32>
    %72 = vector.shape_cast %71 : vector<1x4x1xf32> to vector<4x1xf32>
    %73 = arith.truncf %50 : vector<4x128xf32> to vector<4x128xbf16>
    %c0_26 = arith.constant 0 : index
    %c0_27 = arith.constant 0 : index
    %c0_28 = arith.constant 0 : index
    %74 = vector.load %arg4[%c0_26, %c0_27, %c0_28] : memref<1x128x512xbf16, #tpu.memory_space<vmem>>, vector<1x128x512xbf16>
    %75 = vector.shape_cast %74 : vector<1x128x512xbf16> to vector<128x512xbf16>
    %cst_29 = arith.constant dense<0.000000e+00> : vector<4x512xf32>
    %76 = tpu.matmul %73, %75, %cst_29 {dimension_numbers = #tpu.dot_dimension_numbers<[1], [0], [0], [1], [0, 0, 1, 1], [], []>} : vector<4x128xbf16>, vector<128x512xbf16>, vector<4x512xf32> -> vector<4x512xf32>
    %77 = arith.addf %69, %76 : vector<4x512xf32>
    %78 = vector.extract_strided_slice %77 {offsets = [0, 0], sizes = [4, 128], strides = [1, 1]} : vector<4x512xf32> to vector<4x128xf32>
    %79 = arith.negf %78 : vector<4x128xf32>
    %80 = math.exp %79 : vector<4x128xf32>
    %cst_30 = arith.constant 1.000000e+00 : f32
    %81 = vector.broadcast %cst_30 : f32 to vector<4x128xf32>
    %82 = arith.addf %81, %80 : vector<4x128xf32>
    %83 = arith.divf %81, %82 : vector<4x128xf32>
    %84 = vector.extract_strided_slice %77 {offsets = [0, 128], sizes = [4, 128], strides = [1, 1]} : vector<4x512xf32> to vector<4x128xf32>
    %85 = arith.negf %84 : vector<4x128xf32>
    %86 = math.exp %85 : vector<4x128xf32>
    %cst_31 = arith.constant 1.000000e+00 : f32
    %87 = vector.broadcast %cst_31 : f32 to vector<4x128xf32>
    %88 = arith.addf %87, %86 : vector<4x128xf32>
    %89 = arith.divf %87, %88 : vector<4x128xf32>
    %90 = vector.extract_strided_slice %77 {offsets = [0, 256], sizes = [4, 128], strides = [1, 1]} : vector<4x512xf32> to vector<4x128xf32>
    %91 = math.tanh %90 : vector<4x128xf32>
    %92 = vector.extract_strided_slice %77 {offsets = [0, 384], sizes = [4, 128], strides = [1, 1]} : vector<4x512xf32> to vector<4x128xf32>
    %93 = arith.negf %92 : vector<4x128xf32>
    %94 = math.exp %93 : vector<4x128xf32>
    %cst_32 = arith.constant 1.000000e+00 : f32
    %95 = vector.broadcast %cst_32 : f32 to vector<4x128xf32>
    %96 = arith.addf %95, %94 : vector<4x128xf32>
    %97 = arith.divf %95, %96 : vector<4x128xf32>
    %98 = arith.mulf %89, %57 : vector<4x128xf32>
    %99 = arith.mulf %83, %91 : vector<4x128xf32>
    %100 = arith.addf %98, %99 : vector<4x128xf32>
    %101 = math.tanh %100 : vector<4x128xf32>
    %102 = arith.mulf %97, %101 : vector<4x128xf32>
    %103 = vector.broadcast %72 : vector<4x1xf32> to vector<4x128xf32>
    %104 = arith.mulf %103, %102 : vector<4x128xf32>
    %cst_33 = arith.constant 1.000000e+00 : f32
    %105 = vector.broadcast %cst_33 : f32 to vector<4x1xf32>
    %106 = arith.subf %105, %72 : vector<4x1xf32>
    %107 = vector.broadcast %106 : vector<4x1xf32> to vector<4x128xf32>
    %108 = arith.mulf %107, %50 : vector<4x128xf32>
    %109 = arith.addf %104, %108 : vector<4x128xf32>
    %110 = vector.broadcast %72 : vector<4x1xf32> to vector<4x128xf32>
    %111 = arith.mulf %110, %100 : vector<4x128xf32>
    %cst_34 = arith.constant 1.000000e+00 : f32
    %112 = vector.broadcast %cst_34 : f32 to vector<4x1xf32>
    %113 = arith.subf %112, %72 : vector<4x1xf32>
    %114 = vector.broadcast %113 : vector<4x1xf32> to vector<4x128xf32>
    %115 = arith.mulf %114, %57 : vector<4x128xf32>
    %116 = arith.addf %111, %115 : vector<4x128xf32>
    %117 = vector.broadcast %72 : vector<4x1xf32> to vector<4x128xf32>
    %118 = arith.mulf %117, %109 : vector<4x128xf32>
    %119 = arith.index_cast %66 : i32 to index
    %c0_35 = arith.constant 0 : index
    %c0_36 = arith.constant 0 : index
    %120 = vector.load %arg5[%119, %c0_35, %c0_36] : memref<8x4x128xf32, #tpu.memory_space<vmem>>, vector<1x4x128xf32>
    %121 = vector.shape_cast %120 : vector<1x4x128xf32> to vector<4x128xf32>
    %122 = vector.shape_cast %118 : vector<4x128xf32> to vector<1x4x128xf32>
    tpu.vector_store %arg5[%119, %c0_35, %c0_36], %122 {strides = array<i32>} : memref<8x4x128xf32, #tpu.memory_space<vmem>>, vector<1x4x128xf32>,
    %c2_i32 = arith.constant 2 : i32
    %c0_i32_37 = arith.constant 0 : i32
    %123 = arith.cmpi eq, %arg0, %c0_i32_37 : i32
    %c7_i32_38 = arith.constant 7 : i32
    %124 = arith.subi %c7_i32_38, %c2_i32 : i32
    %125 = arith.select %123, %c2_i32, %124 : i32
    %126 = arith.index_cast %125 : i32 to index
    %c0_39 = arith.constant 0 : index
    %c0_40 = arith.constant 0 : index
    %127 = vector.load %arg2[%126, %c0_39, %c0_40] : memref<8x4x512xf32, #tpu.memory_space<vmem>>, vector<1x4x512xf32>
    %128 = vector.shape_cast %127 : vector<1x4x512xf32> to vector<4x512xf32>
    %129 = arith.index_cast %125 : i32 to index
    %c0_41 = arith.constant 0 : index
    %c0_42 = arith.constant 0 : index
    %130 = vector.load %arg3[%129, %c0_41, %c0_42] : memref<8x4x1xf32, #tpu.memory_space<vmem>>, vector<1x4x1xf32>
    %131 = vector.shape_cast %130 : vector<1x4x1xf32> to vector<4x1xf32>
    %132 = arith.truncf %109 : vector<4x128xf32> to vector<4x128xbf16>
    %c0_43 = arith.constant 0 : index
    %c0_44 = arith.constant 0 : index
    %c0_45 = arith.constant 0 : index
    %133 = vector.load %arg4[%c0_43, %c0_44, %c0_45] : memref<1x128x512xbf16, #tpu.memory_space<vmem>>, vector<1x128x512xbf16>
    %134 = vector.shape_cast %133 : vector<1x128x512xbf16> to vector<128x512xbf16>
    %cst_46 = arith.constant dense<0.000000e+00> : vector<4x512xf32>
    %135 = tpu.matmul %132, %134, %cst_46 {dimension_numbers = #tpu.dot_dimension_numbers<[1], [0], [0], [1], [0, 0, 1, 1], [], []>} : vector<4x128xbf16>, vector<128x512xbf16>, vector<4x512xf32> -> vector<4x512xf32>
    %136 = arith.addf %128, %135 : vector<4x512xf32>
    %137 = vector.extract_strided_slice %136 {offsets = [0, 0], sizes = [4, 128], strides = [1, 1]} : vector<4x512xf32> to vector<4x128xf32>
    %138 = arith.negf %137 : vector<4x128xf32>
    %139 = math.exp %138 : vector<4x128xf32>
    %cst_47 = arith.constant 1.000000e+00 : f32
    %140 = vector.broadcast %cst_47 : f32 to vector<4x128xf32>
    %141 = arith.addf %140, %139 : vector<4x128xf32>
    %142 = arith.divf %140, %141 : vector<4x128xf32>
    %143 = vector.extract_strided_slice %136 {offsets = [0, 128], sizes = [4, 128], strides = [1, 1]} : vector<4x512xf32> to vector<4x128xf32>
    %144 = arith.negf %143 : vector<4x128xf32>
    %145 = math.exp %144 : vector<4x128xf32>
    %cst_48 = arith.constant 1.000000e+00 : f32
    %146 = vector.broadcast %cst_48 : f32 to vector<4x128xf32>
    %147 = arith.addf %146, %145 : vector<4x128xf32>
    %148 = arith.divf %146, %147 : vector<4x128xf32>
    %149 = vector.extract_strided_slice %136 {offsets = [0, 256], sizes = [4, 128], strides = [1, 1]} : vector<4x512xf32> to vector<4x128xf32>
    %150 = math.tanh %149 : vector<4x128xf32>
    %151 = vector.extract_strided_slice %136 {offsets = [0, 384], sizes = [4, 128], strides = [1, 1]} : vector<4x512xf32> to vector<4x128xf32>
    %152 = arith.negf %151 : vector<4x128xf32>
    %153 = math.exp %152 : vector<4x128xf32>
    %cst_49 = arith.constant 1.000000e+00 : f32
    %154 = vector.broadcast %cst_49 : f32 to vector<4x128xf32>
    %155 = arith.addf %154, %153 : vector<4x128xf32>
    %156 = arith.divf %154, %155 : vector<4x128xf32>
    %157 = arith.mulf %148, %116 : vector<4x128xf32>
    %158 = arith.mulf %142, %150 : vector<4x128xf32>
    %159 = arith.addf %157, %158 : vector<4x128xf32>
    %160 = math.tanh %159 : vector<4x128xf32>
    %161 = arith.mulf %156, %160 : vector<4x128xf32>
    %162 = vector.broadcast %131 : vector<4x1xf32> to vector<4x128xf32>
    %163 = arith.mulf %162, %161 : vector<4x128xf32>
    %cst_50 = arith.constant 1.000000e+00 : f32
    %164 = vector.broadcast %cst_50 : f32 to vector<4x1xf32>
    %165 = arith.subf %164, %131 : vector<4x1xf32>
    %166 = vector.broadcast %165 : vector<4x1xf32> to vector<4x128xf32>
    %167 = arith.mulf %166, %109 : vector<4x128xf32>
    %168 = arith.addf %163, %167 : vector<4x128xf32>
    %169 = vector.broadcast %131 : vector<4x1xf32> to vector<4x128xf32>
    %170 = arith.mulf %169, %159 : vector<4x128xf32>
    %cst_51 = arith.constant 1.000000e+00 : f32
    %171 = vector.broadcast %cst_51 : f32 to vector<4x1xf32>
    %172 = arith.subf %171, %131 : vector<4x1xf32>
    %173 = vector.broadcast %172 : vector<4x1xf32> to vector<4x128xf32>
    %174 = arith.mulf %173, %116 : vector<4x128xf32>
    %175 = arith.addf %170, %174 : vector<4x128xf32>
    %176 = vector.broadcast %131 : vector<4x1xf32> to vector<4x128xf32>
    %177 = arith.mulf %176, %168 : vector<4x128xf32>
    %178 = arith.index_cast %125 : i32 to index
    %c0_52 = arith.constant 0 : index
    %c0_53 = arith.constant 0 : index
    %179 = vector.load %arg5[%178, %c0_52, %c0_53] : memref<8x4x128xf32, #tpu.memory_space<vmem>>, vector<1x4x128xf32>
    %180 = vector.shape_cast %179 : vector<1x4x128xf32> to vector<4x128xf32>
    %181 = vector.shape_cast %177 : vector<4x128xf32> to vector<1x4x128xf32>
    tpu.vector_store %arg5[%178, %c0_52, %c0_53], %181 {strides = array<i32>} : memref<8x4x128xf32, #tpu.memory_space<vmem>>, vector<1x4x128xf32>,
    %c3_i32 = arith.constant 3 : i32
    %c0_i32_54 = arith.constant 0 : i32
    %182 = arith.cmpi eq, %arg0, %c0_i32_54 : i32
    %c7_i32_55 = arith.constant 7 : i32
    %183 = arith.subi %c7_i32_55, %c3_i32 : i32
    %184 = arith.select %182, %c3_i32, %183 : i32
    %185 = arith.index_cast %184 : i32 to index
    %c0_56 = arith.constant 0 : index
    %c0_57 = arith.constant 0 : index
    %186 = vector.load %arg2[%185, %c0_56, %c0_57] : memref<8x4x512xf32, #tpu.memory_space<vmem>>, vector<1x4x512xf32>
    %187 = vector.shape_cast %186 : vector<1x4x512xf32> to vector<4x512xf32>
    %188 = arith.index_cast %184 : i32 to index
    %c0_58 = arith.constant 0 : index
    %c0_59 = arith.constant 0 : index
    %189 = vector.load %arg3[%188, %c0_58, %c0_59] : memref<8x4x1xf32, #tpu.memory_space<vmem>>, vector<1x4x1xf32>
    %190 = vector.shape_cast %189 : vector<1x4x1xf32> to vector<4x1xf32>
    %191 = arith.truncf %168 : vector<4x128xf32> to vector<4x128xbf16>
    %c0_60 = arith.constant 0 : index
    %c0_61 = arith.constant 0 : index
    %c0_62 = arith.constant 0 : index
    %192 = vector.load %arg4[%c0_60, %c0_61, %c0_62] : memref<1x128x512xbf16, #tpu.memory_space<vmem>>, vector<1x128x512xbf16>
    %193 = vector.shape_cast %192 : vector<1x128x512xbf16> to vector<128x512xbf16>
    %cst_63 = arith.constant dense<0.000000e+00> : vector<4x512xf32>
    %194 = tpu.matmul %191, %193, %cst_63 {dimension_numbers = #tpu.dot_dimension_numbers<[1], [0], [0], [1], [0, 0, 1, 1], [], []>} : vector<4x128xbf16>, vector<128x512xbf16>, vector<4x512xf32> -> vector<4x512xf32>
    %195 = arith.addf %187, %194 : vector<4x512xf32>
    %196 = vector.extract_strided_slice %195 {offsets = [0, 0], sizes = [4, 128], strides = [1, 1]} : vector<4x512xf32> to vector<4x128xf32>
    %197 = arith.negf %196 : vector<4x128xf32>
    %198 = math.exp %197 : vector<4x128xf32>
    %cst_64 = arith.constant 1.000000e+00 : f32
    %199 = vector.broadcast %cst_64 : f32 to vector<4x128xf32>
    %200 = arith.addf %199, %198 : vector<4x128xf32>
    %201 = arith.divf %199, %200 : vector<4x128xf32>
    %202 = vector.extract_strided_slice %195 {offsets = [0, 128], sizes = [4, 128], strides = [1, 1]} : vector<4x512xf32> to vector<4x128xf32>
    %203 = arith.negf %202 : vector<4x128xf32>
    %204 = math.exp %203 : vector<4x128xf32>
    %cst_65 = arith.constant 1.000000e+00 : f32
    %205 = vector.broadcast %cst_65 : f32 to vector<4x128xf32>
    %206 = arith.addf %205, %204 : vector<4x128xf32>
    %207 = arith.divf %205, %206 : vector<4x128xf32>
    %208 = vector.extract_strided_slice %195 {offsets = [0, 256], sizes = [4, 128], strides = [1, 1]} : vector<4x512xf32> to vector<4x128xf32>
    %209 = math.tanh %208 : vector<4x128xf32>
    %210 = vector.extract_strided_slice %195 {offsets = [0, 384], sizes = [4, 128], strides = [1, 1]} : vector<4x512xf32> to vector<4x128xf32>
    %211 = arith.negf %210 : vector<4x128xf32>
    %212 = math.exp %211 : vector<4x128xf32>
    %cst_66 = arith.constant 1.000000e+00 : f32
    %213 = vector.broadcast %cst_66 : f32 to vector<4x128xf32>
    %214 = arith.addf %213, %212 : vector<4x128xf32>
    %215 = arith.divf %213, %214 : vector<4x128xf32>
    %216 = arith.mulf %207, %175 : vector<4x128xf32>
    %217 = arith.mulf %201, %209 : vector<4x128xf32>
    %218 = arith.addf %216, %217 : vector<4x128xf32>
    %219 = math.tanh %218 : vector<4x128xf32>
    %220 = arith.mulf %215, %219 : vector<4x128xf32>
    %221 = vector.broadcast %190 : vector<4x1xf32> to vector<4x128xf32>
    %222 = arith.mulf %221, %220 : vector<4x128xf32>
    %cst_67 = arith.constant 1.000000e+00 : f32
    %223 = vector.broadcast %cst_67 : f32 to vector<4x1xf32>
    %224 = arith.subf %223, %190 : vector<4x1xf32>
    %225 = vector.broadcast %224 : vector<4x1xf32> to vector<4x128xf32>
    %226 = arith.mulf %225, %168 : vector<4x128xf32>
    %227 = arith.addf %222, %226 : vector<4x128xf32>
    %228 = vector.broadcast %190 : vector<4x1xf32> to vector<4x128xf32>
    %229 = arith.mulf %228, %218 : vector<4x128xf32>
    %cst_68 = arith.constant 1.000000e+00 : f32
    %230 = vector.broadcast %cst_68 : f32 to vector<4x1xf32>
    %231 = arith.subf %230, %190 : vector<4x1xf32>
    %232 = vector.broadcast %231 : vector<4x1xf32> to vector<4x128xf32>
    %233 = arith.mulf %232, %175 : vector<4x128xf32>
    %234 = arith.addf %229, %233 : vector<4x128xf32>
    %235 = vector.broadcast %190 : vector<4x1xf32> to vector<4x128xf32>
    %236 = arith.mulf %235, %227 : vector<4x128xf32>
    %237 = arith.index_cast %184 : i32 to index
    %c0_69 = arith.constant 0 : index
    %c0_70 = arith.constant 0 : index
    %238 = vector.load %arg5[%237, %c0_69, %c0_70] : memref<8x4x128xf32, #tpu.memory_space<vmem>>, vector<1x4x128xf32>
    %239 = vector.shape_cast %238 : vector<1x4x128xf32> to vector<4x128xf32>
    %240 = vector.shape_cast %236 : vector<4x128xf32> to vector<1x4x128xf32>
    tpu.vector_store %arg5[%237, %c0_69, %c0_70], %240 {strides = array<i32>} : memref<8x4x128xf32, #tpu.memory_space<vmem>>, vector<1x4x128xf32>,
    %c4_i32 = arith.constant 4 : i32
    %c0_i32_71 = arith.constant 0 : i32
    %241 = arith.cmpi eq, %arg0, %c0_i32_71 : i32
    %c7_i32_72 = arith.constant 7 : i32
    %242 = arith.subi %c7_i32_72, %c4_i32 : i32
    %243 = arith.select %241, %c4_i32, %242 : i32
    %244 = arith.index_cast %243 : i32 to index
    %c0_73 = arith.constant 0 : index
    %c0_74 = arith.constant 0 : index
    %245 = vector.load %arg2[%244, %c0_73, %c0_74] : memref<8x4x512xf32, #tpu.memory_space<vmem>>, vector<1x4x512xf32>
    %246 = vector.shape_cast %245 : vector<1x4x512xf32> to vector<4x512xf32>
    %247 = arith.index_cast %243 : i32 to index
    %c0_75 = arith.constant 0 : index
    %c0_76 = arith.constant 0 : index
    %248 = vector.load %arg3[%247, %c0_75, %c0_76] : memref<8x4x1xf32, #tpu.memory_space<vmem>>, vector<1x4x1xf32>
    %249 = vector.shape_cast %248 : vector<1x4x1xf32> to vector<4x1xf32>
    %250 = arith.truncf %227 : vector<4x128xf32> to vector<4x128xbf16>
    %c0_77 = arith.constant 0 : index
    %c0_78 = arith.constant 0 : index
    %c0_79 = arith.constant 0 : index
    %251 = vector.load %arg4[%c0_77, %c0_78, %c0_79] : memref<1x128x512xbf16, #tpu.memory_space<vmem>>, vector<1x128x512xbf16>
    %252 = vector.shape_cast %251 : vector<1x128x512xbf16> to vector<128x512xbf16>
    %cst_80 = arith.constant dense<0.000000e+00> : vector<4x512xf32>
    %253 = tpu.matmul %250, %252, %cst_80 {dimension_numbers = #tpu.dot_dimension_numbers<[1], [0], [0], [1], [0, 0, 1, 1], [], []>} : vector<4x128xbf16>, vector<128x512xbf16>, vector<4x512xf32> -> vector<4x512xf32>
    %254 = arith.addf %246, %253 : vector<4x512xf32>
    %255 = vector.extract_strided_slice %254 {offsets = [0, 0], sizes = [4, 128], strides = [1, 1]} : vector<4x512xf32> to vector<4x128xf32>
    %256 = arith.negf %255 : vector<4x128xf32>
    %257 = math.exp %256 : vector<4x128xf32>
    %cst_81 = arith.constant 1.000000e+00 : f32
    %258 = vector.broadcast %cst_81 : f32 to vector<4x128xf32>
    %259 = arith.addf %258, %257 : vector<4x128xf32>
    %260 = arith.divf %258, %259 : vector<4x128xf32>
    %261 = vector.extract_strided_slice %254 {offsets = [0, 128], sizes = [4, 128], strides = [1, 1]} : vector<4x512xf32> to vector<4x128xf32>
    %262 = arith.negf %261 : vector<4x128xf32>
    %263 = math.exp %262 : vector<4x128xf32>
    %cst_82 = arith.constant 1.000000e+00 : f32
    %264 = vector.broadcast %cst_82 : f32 to vector<4x128xf32>
    %265 = arith.addf %264, %263 : vector<4x128xf32>
    %266 = arith.divf %264, %265 : vector<4x128xf32>
    %267 = vector.extract_strided_slice %254 {offsets = [0, 256], sizes = [4, 128], strides = [1, 1]} : vector<4x512xf32> to vector<4x128xf32>
    %268 = math.tanh %267 : vector<4x128xf32>
    %269 = vector.extract_strided_slice %254 {offsets = [0, 384], sizes = [4, 128], strides = [1, 1]} : vector<4x512xf32> to vector<4x128xf32>
    %270 = arith.negf %269 : vector<4x128xf32>
    %271 = math.exp %270 : vector<4x128xf32>
    %cst_83 = arith.constant 1.000000e+00 : f32
    %272 = vector.broadcast %cst_83 : f32 to vector<4x128xf32>
    %273 = arith.addf %272, %271 : vector<4x128xf32>
    %274 = arith.divf %272, %273 : vector<4x128xf32>
    %275 = arith.mulf %266, %234 : vector<4x128xf32>
    %276 = arith.mulf %260, %268 : vector<4x128xf32>
    %277 = arith.addf %275, %276 : vector<4x128xf32>
    %278 = math.tanh %277 : vector<4x128xf32>
    %279 = arith.mulf %274, %278 : vector<4x128xf32>
    %280 = vector.broadcast %249 : vector<4x1xf32> to vector<4x128xf32>
    %281 = arith.mulf %280, %279 : vector<4x128xf32>
    %cst_84 = arith.constant 1.000000e+00 : f32
    %282 = vector.broadcast %cst_84 : f32 to vector<4x1xf32>
    %283 = arith.subf %282, %249 : vector<4x1xf32>
    %284 = vector.broadcast %283 : vector<4x1xf32> to vector<4x128xf32>
    %285 = arith.mulf %284, %227 : vector<4x128xf32>
    %286 = arith.addf %281, %285 : vector<4x128xf32>
    %287 = vector.broadcast %249 : vector<4x1xf32> to vector<4x128xf32>
    %288 = arith.mulf %287, %277 : vector<4x128xf32>
    %cst_85 = arith.constant 1.000000e+00 : f32
    %289 = vector.broadcast %cst_85 : f32 to vector<4x1xf32>
    %290 = arith.subf %289, %249 : vector<4x1xf32>
    %291 = vector.broadcast %290 : vector<4x1xf32> to vector<4x128xf32>
    %292 = arith.mulf %291, %234 : vector<4x128xf32>
    %293 = arith.addf %288, %292 : vector<4x128xf32>
    %294 = vector.broadcast %249 : vector<4x1xf32> to vector<4x128xf32>
    %295 = arith.mulf %294, %286 : vector<4x128xf32>
    %296 = arith.index_cast %243 : i32 to index
    %c0_86 = arith.constant 0 : index
    %c0_87 = arith.constant 0 : index
    %297 = vector.load %arg5[%296, %c0_86, %c0_87] : memref<8x4x128xf32, #tpu.memory_space<vmem>>, vector<1x4x128xf32>
    %298 = vector.shape_cast %297 : vector<1x4x128xf32> to vector<4x128xf32>
    %299 = vector.shape_cast %295 : vector<4x128xf32> to vector<1x4x128xf32>
    tpu.vector_store %arg5[%296, %c0_86, %c0_87], %299 {strides = array<i32>} : memref<8x4x128xf32, #tpu.memory_space<vmem>>, vector<1x4x128xf32>,
    %c5_i32 = arith.constant 5 : i32
    %c0_i32_88 = arith.constant 0 : i32
    %300 = arith.cmpi eq, %arg0, %c0_i32_88 : i32
    %c7_i32_89 = arith.constant 7 : i32
    %301 = arith.subi %c7_i32_89, %c5_i32 : i32
    %302 = arith.select %300, %c5_i32, %301 : i32
    %303 = arith.index_cast %302 : i32 to index
    %c0_90 = arith.constant 0 : index
    %c0_91 = arith.constant 0 : index
    %304 = vector.load %arg2[%303, %c0_90, %c0_91] : memref<8x4x512xf32, #tpu.memory_space<vmem>>, vector<1x4x512xf32>
    %305 = vector.shape_cast %304 : vector<1x4x512xf32> to vector<4x512xf32>
    %306 = arith.index_cast %302 : i32 to index
    %c0_92 = arith.constant 0 : index
    %c0_93 = arith.constant 0 : index
    %307 = vector.load %arg3[%306, %c0_92, %c0_93] : memref<8x4x1xf32, #tpu.memory_space<vmem>>, vector<1x4x1xf32>
    %308 = vector.shape_cast %307 : vector<1x4x1xf32> to vector<4x1xf32>
    %309 = arith.truncf %286 : vector<4x128xf32> to vector<4x128xbf16>
    %c0_94 = arith.constant 0 : index
    %c0_95 = arith.constant 0 : index
    %c0_96 = arith.constant 0 : index
    %310 = vector.load %arg4[%c0_94, %c0_95, %c0_96] : memref<1x128x512xbf16, #tpu.memory_space<vmem>>, vector<1x128x512xbf16>
    %311 = vector.shape_cast %310 : vector<1x128x512xbf16> to vector<128x512xbf16>
    %cst_97 = arith.constant dense<0.000000e+00> : vector<4x512xf32>
    %312 = tpu.matmul %309, %311, %cst_97 {dimension_numbers = #tpu.dot_dimension_numbers<[1], [0], [0], [1], [0, 0, 1, 1], [], []>} : vector<4x128xbf16>, vector<128x512xbf16>, vector<4x512xf32> -> vector<4x512xf32>
    %313 = arith.addf %305, %312 : vector<4x512xf32>
    %314 = vector.extract_strided_slice %313 {offsets = [0, 0], sizes = [4, 128], strides = [1, 1]} : vector<4x512xf32> to vector<4x128xf32>
    %315 = arith.negf %314 : vector<4x128xf32>
    %316 = math.exp %315 : vector<4x128xf32>
    %cst_98 = arith.constant 1.000000e+00 : f32
    %317 = vector.broadcast %cst_98 : f32 to vector<4x128xf32>
    %318 = arith.addf %317, %316 : vector<4x128xf32>
    %319 = arith.divf %317, %318 : vector<4x128xf32>
    %320 = vector.extract_strided_slice %313 {offsets = [0, 128], sizes = [4, 128], strides = [1, 1]} : vector<4x512xf32> to vector<4x128xf32>
    %321 = arith.negf %320 : vector<4x128xf32>
    %322 = math.exp %321 : vector<4x128xf32>
    %cst_99 = arith.constant 1.000000e+00 : f32
    %323 = vector.broadcast %cst_99 : f32 to vector<4x128xf32>
    %324 = arith.addf %323, %322 : vector<4x128xf32>
    %325 = arith.divf %323, %324 : vector<4x128xf32>
    %326 = vector.extract_strided_slice %313 {offsets = [0, 256], sizes = [4, 128], strides = [1, 1]} : vector<4x512xf32> to vector<4x128xf32>
    %327 = math.tanh %326 : vector<4x128xf32>
    %328 = vector.extract_strided_slice %313 {offsets = [0, 384], sizes = [4, 128], strides = [1, 1]} : vector<4x512xf32> to vector<4x128xf32>
    %329 = arith.negf %328 : vector<4x128xf32>
    %330 = math.exp %329 : vector<4x128xf32>
    %cst_100 = arith.constant 1.000000e+00 : f32
    %331 = vector.broadcast %cst_100 : f32 to vector<4x128xf32>
    %332 = arith.addf %331, %330 : vector<4x128xf32>
    %333 = arith.divf %331, %332 : vector<4x128xf32>
    %334 = arith.mulf %325, %293 : vector<4x128xf32>
    %335 = arith.mulf %319, %327 : vector<4x128xf32>
    %336 = arith.addf %334, %335 : vector<4x128xf32>
    %337 = math.tanh %336 : vector<4x128xf32>
    %338 = arith.mulf %333, %337 : vector<4x128xf32>
    %339 = vector.broadcast %308 : vector<4x1xf32> to vector<4x128xf32>
    %340 = arith.mulf %339, %338 : vector<4x128xf32>
    %cst_101 = arith.constant 1.000000e+00 : f32
    %341 = vector.broadcast %cst_101 : f32 to vector<4x1xf32>
    %342 = arith.subf %341, %308 : vector<4x1xf32>
    %343 = vector.broadcast %342 : vector<4x1xf32> to vector<4x128xf32>
    %344 = arith.mulf %343, %286 : vector<4x128xf32>
    %345 = arith.addf %340, %344 : vector<4x128xf32>
    %346 = vector.broadcast %308 : vector<4x1xf32> to vector<4x128xf32>
    %347 = arith.mulf %346, %336 : vector<4x128xf32>
    %cst_102 = arith.constant 1.000000e+00 : f32
    %348 = vector.broadcast %cst_102 : f32 to vector<4x1xf32>
    %349 = arith.subf %348, %308 : vector<4x1xf32>
    %350 = vector.broadcast %349 : vector<4x1xf32> to vector<4x128xf32>
    %351 = arith.mulf %350, %293 : vector<4x128xf32>
    %352 = arith.addf %347, %351 : vector<4x128xf32>
    %353 = vector.broadcast %308 : vector<4x1xf32> to vector<4x128xf32>
    %354 = arith.mulf %353, %345 : vector<4x128xf32>
    %355 = arith.index_cast %302 : i32 to index
    %c0_103 = arith.constant 0 : index
    %c0_104 = arith.constant 0 : index
    %356 = vector.load %arg5[%355, %c0_103, %c0_104] : memref<8x4x128xf32, #tpu.memory_space<vmem>>, vector<1x4x128xf32>
    %357 = vector.shape_cast %356 : vector<1x4x128xf32> to vector<4x128xf32>
    %358 = vector.shape_cast %354 : vector<4x128xf32> to vector<1x4x128xf32>
    tpu.vector_store %arg5[%355, %c0_103, %c0_104], %358 {strides = array<i32>} : memref<8x4x128xf32, #tpu.memory_space<vmem>>, vector<1x4x128xf32>,
    %c6_i32 = arith.constant 6 : i32
    %c0_i32_105 = arith.constant 0 : i32
    %359 = arith.cmpi eq, %arg0, %c0_i32_105 : i32
    %c7_i32_106 = arith.constant 7 : i32
    %360 = arith.subi %c7_i32_106, %c6_i32 : i32
    %361 = arith.select %359, %c6_i32, %360 : i32
    %362 = arith.index_cast %361 : i32 to index
    %c0_107 = arith.constant 0 : index
    %c0_108 = arith.constant 0 : index
    %363 = vector.load %arg2[%362, %c0_107, %c0_108] : memref<8x4x512xf32, #tpu.memory_space<vmem>>, vector<1x4x512xf32>
    %364 = vector.shape_cast %363 : vector<1x4x512xf32> to vector<4x512xf32>
    %365 = arith.index_cast %361 : i32 to index
    %c0_109 = arith.constant 0 : index
    %c0_110 = arith.constant 0 : index
    %366 = vector.load %arg3[%365, %c0_109, %c0_110] : memref<8x4x1xf32, #tpu.memory_space<vmem>>, vector<1x4x1xf32>
    %367 = vector.shape_cast %366 : vector<1x4x1xf32> to vector<4x1xf32>
    %368 = arith.truncf %345 : vector<4x128xf32> to vector<4x128xbf16>
    %c0_111 = arith.constant 0 : index
    %c0_112 = arith.constant 0 : index
    %c0_113 = arith.constant 0 : index
    %369 = vector.load %arg4[%c0_111, %c0_112, %c0_113] : memref<1x128x512xbf16, #tpu.memory_space<vmem>>, vector<1x128x512xbf16>
    %370 = vector.shape_cast %369 : vector<1x128x512xbf16> to vector<128x512xbf16>
    %cst_114 = arith.constant dense<0.000000e+00> : vector<4x512xf32>
    %371 = tpu.matmul %368, %370, %cst_114 {dimension_numbers = #tpu.dot_dimension_numbers<[1], [0], [0], [1], [0, 0, 1, 1], [], []>} : vector<4x128xbf16>, vector<128x512xbf16>, vector<4x512xf32> -> vector<4x512xf32>
    %372 = arith.addf %364, %371 : vector<4x512xf32>
    %373 = vector.extract_strided_slice %372 {offsets = [0, 0], sizes = [4, 128], strides = [1, 1]} : vector<4x512xf32> to vector<4x128xf32>
    %374 = arith.negf %373 : vector<4x128xf32>
    %375 = math.exp %374 : vector<4x128xf32>
    %cst_115 = arith.constant 1.000000e+00 : f32
    %376 = vector.broadcast %cst_115 : f32 to vector<4x128xf32>
    %377 = arith.addf %376, %375 : vector<4x128xf32>
    %378 = arith.divf %376, %377 : vector<4x128xf32>
    %379 = vector.extract_strided_slice %372 {offsets = [0, 128], sizes = [4, 128], strides = [1, 1]} : vector<4x512xf32> to vector<4x128xf32>
    %380 = arith.negf %379 : vector<4x128xf32>
    %381 = math.exp %380 : vector<4x128xf32>
    %cst_116 = arith.constant 1.000000e+00 : f32
    %382 = vector.broadcast %cst_116 : f32 to vector<4x128xf32>
    %383 = arith.addf %382, %381 : vector<4x128xf32>
    %384 = arith.divf %382, %383 : vector<4x128xf32>
    %385 = vector.extract_strided_slice %372 {offsets = [0, 256], sizes = [4, 128], strides = [1, 1]} : vector<4x512xf32> to vector<4x128xf32>
    %386 = math.tanh %385 : vector<4x128xf32>
    %387 = vector.extract_strided_slice %372 {offsets = [0, 384], sizes = [4, 128], strides = [1, 1]} : vector<4x512xf32> to vector<4x128xf32>
    %388 = arith.negf %387 : vector<4x128xf32>
    %389 = math.exp %388 : vector<4x128xf32>
    %cst_117 = arith.constant 1.000000e+00 : f32
    %390 = vector.broadcast %cst_117 : f32 to vector<4x128xf32>
    %391 = arith.addf %390, %389 : vector<4x128xf32>
    %392 = arith.divf %390, %391 : vector<4x128xf32>
    %393 = arith.mulf %384, %352 : vector<4x128xf32>
    %394 = arith.mulf %378, %386 : vector<4x128xf32>
    %395 = arith.addf %393, %394 : vector<4x128xf32>
    %396 = math.tanh %395 : vector<4x128xf32>
    %397 = arith.mulf %392, %396 : vector<4x128xf32>
    %398 = vector.broadcast %367 : vector<4x1xf32> to vector<4x128xf32>
    %399 = arith.mulf %398, %397 : vector<4x128xf32>
    %cst_118 = arith.constant 1.000000e+00 : f32
    %400 = vector.broadcast %cst_118 : f32 to vector<4x1xf32>
    %401 = arith.subf %400, %367 : vector<4x1xf32>
    %402 = vector.broadcast %401 : vector<4x1xf32> to vector<4x128xf32>
    %403 = arith.mulf %402, %345 : vector<4x128xf32>
    %404 = arith.addf %399, %403 : vector<4x128xf32>
    %405 = vector.broadcast %367 : vector<4x1xf32> to vector<4x128xf32>
    %406 = arith.mulf %405, %395 : vector<4x128xf32>
    %cst_119 = arith.constant 1.000000e+00 : f32
    %407 = vector.broadcast %cst_119 : f32 to vector<4x1xf32>
    %408 = arith.subf %407, %367 : vector<4x1xf32>
    %409 = vector.broadcast %408 : vector<4x1xf32> to vector<4x128xf32>
    %410 = arith.mulf %409, %352 : vector<4x128xf32>
    %411 = arith.addf %406, %410 : vector<4x128xf32>
    %412 = vector.broadcast %367 : vector<4x1xf32> to vector<4x128xf32>
    %413 = arith.mulf %412, %404 : vector<4x128xf32>
    %414 = arith.index_cast %361 : i32 to index
    %c0_120 = arith.constant 0 : index
    %c0_121 = arith.constant 0 : index
    %415 = vector.load %arg5[%414, %c0_120, %c0_121] : memref<8x4x128xf32, #tpu.memory_space<vmem>>, vector<1x4x128xf32>
    %416 = vector.shape_cast %415 : vector<1x4x128xf32> to vector<4x128xf32>
    %417 = vector.shape_cast %413 : vector<4x128xf32> to vector<1x4x128xf32>
    tpu.vector_store %arg5[%414, %c0_120, %c0_121], %417 {strides = array<i32>} : memref<8x4x128xf32, #tpu.memory_space<vmem>>, vector<1x4x128xf32>,
    %c7_i32_122 = arith.constant 7 : i32
    %c0_i32_123 = arith.constant 0 : i32
    %418 = arith.cmpi eq, %arg0, %c0_i32_123 : i32
    %c7_i32_124 = arith.constant 7 : i32
    %419 = arith.subi %c7_i32_124, %c7_i32_122 : i32
    %420 = arith.select %418, %c7_i32_122, %419 : i32
    %421 = arith.index_cast %420 : i32 to index
    %c0_125 = arith.constant 0 : index
    %c0_126 = arith.constant 0 : index
    %422 = vector.load %arg2[%421, %c0_125, %c0_126] : memref<8x4x512xf32, #tpu.memory_space<vmem>>, vector<1x4x512xf32>
    %423 = vector.shape_cast %422 : vector<1x4x512xf32> to vector<4x512xf32>
    %424 = arith.index_cast %420 : i32 to index
    %c0_127 = arith.constant 0 : index
    %c0_128 = arith.constant 0 : index
    %425 = vector.load %arg3[%424, %c0_127, %c0_128] : memref<8x4x1xf32, #tpu.memory_space<vmem>>, vector<1x4x1xf32>
    %426 = vector.shape_cast %425 : vector<1x4x1xf32> to vector<4x1xf32>
    %427 = arith.truncf %404 : vector<4x128xf32> to vector<4x128xbf16>
    %c0_129 = arith.constant 0 : index
    %c0_130 = arith.constant 0 : index
    %c0_131 = arith.constant 0 : index
    %428 = vector.load %arg4[%c0_129, %c0_130, %c0_131] : memref<1x128x512xbf16, #tpu.memory_space<vmem>>, vector<1x128x512xbf16>
    %429 = vector.shape_cast %428 : vector<1x128x512xbf16> to vector<128x512xbf16>
    %cst_132 = arith.constant dense<0.000000e+00> : vector<4x512xf32>
    %430 = tpu.matmul %427, %429, %cst_132 {dimension_numbers = #tpu.dot_dimension_numbers<[1], [0], [0], [1], [0, 0, 1, 1], [], []>} : vector<4x128xbf16>, vector<128x512xbf16>, vector<4x512xf32> -> vector<4x512xf32>
    %431 = arith.addf %423, %430 : vector<4x512xf32>
    %432 = vector.extract_strided_slice %431 {offsets = [0, 0], sizes = [4, 128], strides = [1, 1]} : vector<4x512xf32> to vector<4x128xf32>
    %433 = arith.negf %432 : vector<4x128xf32>
    %434 = math.exp %433 : vector<4x128xf32>
    %cst_133 = arith.constant 1.000000e+00 : f32
    %435 = vector.broadcast %cst_133 : f32 to vector<4x128xf32>
    %436 = arith.addf %435, %434 : vector<4x128xf32>
    %437 = arith.divf %435, %436 : vector<4x128xf32>
    %438 = vector.extract_strided_slice %431 {offsets = [0, 128], sizes = [4, 128], strides = [1, 1]} : vector<4x512xf32> to vector<4x128xf32>
    %439 = arith.negf %438 : vector<4x128xf32>
    %440 = math.exp %439 : vector<4x128xf32>
    %cst_134 = arith.constant 1.000000e+00 : f32
    %441 = vector.broadcast %cst_134 : f32 to vector<4x128xf32>
    %442 = arith.addf %441, %440 : vector<4x128xf32>
    %443 = arith.divf %441, %442 : vector<4x128xf32>
    %444 = vector.extract_strided_slice %431 {offsets = [0, 256], sizes = [4, 128], strides = [1, 1]} : vector<4x512xf32> to vector<4x128xf32>
    %445 = math.tanh %444 : vector<4x128xf32>
    %446 = vector.extract_strided_slice %431 {offsets = [0, 384], sizes = [4, 128], strides = [1, 1]} : vector<4x512xf32> to vector<4x128xf32>
    %447 = arith.negf %446 : vector<4x128xf32>
    %448 = math.exp %447 : vector<4x128xf32>
    %cst_135 = arith.constant 1.000000e+00 : f32
    %449 = vector.broadcast %cst_135 : f32 to vector<4x128xf32>
    %450 = arith.addf %449, %448 : vector<4x128xf32>
    %451 = arith.divf %449, %450 : vector<4x128xf32>
    %452 = arith.mulf %443, %411 : vector<4x128xf32>
    %453 = arith.mulf %437, %445 : vector<4x128xf32>
    %454 = arith.addf %452, %453 : vector<4x128xf32>
    %455 = math.tanh %454 : vector<4x128xf32>
    %456 = arith.mulf %451, %455 : vector<4x128xf32>
    %457 = vector.broadcast %426 : vector<4x1xf32> to vector<4x128xf32>
    %458 = arith.mulf %457, %456 : vector<4x128xf32>
    %cst_136 = arith.constant 1.000000e+00 : f32
    %459 = vector.broadcast %cst_136 : f32 to vector<4x1xf32>
    %460 = arith.subf %459, %426 : vector<4x1xf32>
    %461 = vector.broadcast %460 : vector<4x1xf32> to vector<4x128xf32>
    %462 = arith.mulf %461, %404 : vector<4x128xf32>
    %463 = arith.addf %458, %462 : vector<4x128xf32>
    %464 = vector.broadcast %426 : vector<4x1xf32> to vector<4x128xf32>
    %465 = arith.mulf %464, %454 : vector<4x128xf32>
    %cst_137 = arith.constant 1.000000e+00 : f32
    %466 = vector.broadcast %cst_137 : f32 to vector<4x1xf32>
    %467 = arith.subf %466, %426 : vector<4x1xf32>
    %468 = vector.broadcast %467 : vector<4x1xf32> to vector<4x128xf32>
    %469 = arith.mulf %468, %411 : vector<4x128xf32>
    %470 = arith.addf %465, %469 : vector<4x128xf32>
    %471 = vector.broadcast %426 : vector<4x1xf32> to vector<4x128xf32>
    %472 = arith.mulf %471, %463 : vector<4x128xf32>
    %473 = arith.index_cast %420 : i32 to index
    %c0_138 = arith.constant 0 : index
    %c0_139 = arith.constant 0 : index
    %474 = vector.load %arg5[%473, %c0_138, %c0_139] : memref<8x4x128xf32, #tpu.memory_space<vmem>>, vector<1x4x128xf32>
    %475 = vector.shape_cast %474 : vector<1x4x128xf32> to vector<4x128xf32>
    %476 = vector.shape_cast %472 : vector<4x128xf32> to vector<1x4x128xf32>
    tpu.vector_store %arg5[%473, %c0_138, %c0_139], %476 {strides = array<i32>} : memref<8x4x128xf32, #tpu.memory_space<vmem>>, vector<1x4x128xf32>,
    %c8_i32 = arith.constant 8 : i32
    %c0_140 = arith.constant 0 : index
    %c0_141 = arith.constant 0 : index
    %477 = vector.load %arg6[%c0_140, %c0_141] : memref<4x128xf32, #tpu.memory_space<vmem>>, vector<4x128xf32>
    tpu.vector_store %arg6[%c0_140, %c0_141], %463 {strides = array<i32>} : memref<4x128xf32, #tpu.memory_space<vmem>>, vector<4x128xf32>,
    %c0_142 = arith.constant 0 : index
    %c0_143 = arith.constant 0 : index
    %478 = vector.load %arg7[%c0_142, %c0_143] : memref<4x128xf32, #tpu.memory_space<vmem>>, vector<4x128xf32>
    tpu.vector_store %arg7[%c0_142, %c0_143], %470 {strides = array<i32>} : memref<4x128xf32, #tpu.memory_space<vmem>>, vector<4x128xf32>,
    return
  }
  func.func @transform_0(%arg0: i32, %arg1: i32) -> (i32, i32, i32) {
    %c2_i32 = arith.constant 2 : i32
    %0 = arith.muli %c2_i32, %arg1 : i32
    %c1_i32 = arith.constant 1 : i32
    %1 = arith.subi %c1_i32, %0 : i32
    %2 = arith.muli %arg0, %1 : i32
    %3 = arith.addi %arg1, %2 : i32
    %c0_i32 = arith.constant 0 : i32
    %c0_i32_0 = arith.constant 0 : i32
    return %3, %c0_i32, %arg0 : i32, i32, i32
  }
  func.func @transform_1(%arg0: i32, %arg1: i32) -> (i32, i32, i32) {
    %c2_i32 = arith.constant 2 : i32
    %0 = arith.muli %c2_i32, %arg1 : i32
    %c1_i32 = arith.constant 1 : i32
    %1 = arith.subi %c1_i32, %0 : i32
    %2 = arith.muli %arg0, %1 : i32
    %3 = arith.addi %arg1, %2 : i32
    %c0_i32 = arith.constant 0 : i32
    %c0_i32_0 = arith.constant 0 : i32
    %c0_i32_1 = arith.constant 0 : i32
    return %3, %c0_i32, %c0_i32_0 : i32, i32, i32
  }
  func.func @transform_2(%arg0: i32, %arg1: i32) -> (i32, i32, i32) {
    %c0_i32 = arith.constant 0 : i32
    %c0_i32_0 = arith.constant 0 : i32
    %c0_i32_1 = arith.constant 0 : i32
    return %arg0, %c0_i32, %c0_i32_0 : i32, i32, i32
  }
  func.func @transform_3(%arg0: i32, %arg1: i32) -> (i32, i32, i32) {
    %c2_i32 = arith.constant 2 : i32
    %0 = arith.muli %c2_i32, %arg1 : i32
    %c1_i32 = arith.constant 1 : i32
    %1 = arith.subi %c1_i32, %0 : i32
    %2 = arith.muli %arg0, %1 : i32
    %3 = arith.addi %arg1, %2 : i32
    %c0_i32 = arith.constant 0 : i32
    %c0_i32_0 = arith.constant 0 : i32
    return %3, %c0_i32, %arg0 : i32, i32, i32
  }
}

module attributes {stable_mosaic.version = 11 : i64} {
  func.func @_mm_bias_kernel(%arg0: i32, %arg1: memref<64x256xbf16, #tpu.memory_space<vmem>>, %arg2: memref<256x1024xbf16, #tpu.memory_space<vmem>>, %arg3: memref<1x1024xf32, #tpu.memory_space<vmem>>, %arg4: memref<64x1024xf32, #tpu.memory_space<vmem>>) attributes {dimension_semantics = [#tpu.dimension_semantics<parallel>], iteration_bounds = array<i64: 1>, scalar_prefetch = 0 : i64, scratch_operands = 0 : i64, tpu.core_type = #tpu.core_type<tc>, window_params = [{transform_indices = @transform_0, window_bounds = array<i64: 64, 256>}, {pipeline_mode = #tpu.pipeline_mode<synchronous>, transform_indices = @transform_1, window_bounds = array<i64: 256, 1024>}, {pipeline_mode = #tpu.pipeline_mode<synchronous>, transform_indices = @transform_2, window_bounds = array<i64: 1, 1024>}, {transform_indices = @transform_3, window_bounds = array<i64: 64, 1024>}]} {
    %c0 = arith.constant 0 : index
    %c0_0 = arith.constant 0 : index
    %0 = vector.load %arg1[%c0, %c0_0] : memref<64x256xbf16, #tpu.memory_space<vmem>>, vector<64x256xbf16>
    %c0_1 = arith.constant 0 : index
    %c0_2 = arith.constant 0 : index
    %1 = vector.load %arg2[%c0_1, %c0_2] : memref<256x1024xbf16, #tpu.memory_space<vmem>>, vector<256x1024xbf16>
    %cst = arith.constant dense<0.000000e+00> : vector<64x1024xf32>
    %2 = tpu.matmul %0, %1, %cst {dimension_numbers = #tpu.dot_dimension_numbers<[1], [0], [0], [1], [0, 0, 1, 1], [], []>} : vector<64x256xbf16>, vector<256x1024xbf16>, vector<64x1024xf32> -> vector<64x1024xf32>
    %c0_3 = arith.constant 0 : index
    %c0_4 = arith.constant 0 : index
    %3 = vector.load %arg3[%c0_3, %c0_4] : memref<1x1024xf32, #tpu.memory_space<vmem>>, vector<1x1024xf32>
    %4 = vector.broadcast %3 : vector<1x1024xf32> to vector<64x1024xf32>
    %5 = arith.addf %2, %4 : vector<64x1024xf32>
    %c0_5 = arith.constant 0 : index
    %c0_6 = arith.constant 0 : index
    %6 = vector.load %arg4[%c0_5, %c0_6] : memref<64x1024xf32, #tpu.memory_space<vmem>>, vector<64x1024xf32>
    tpu.vector_store %arg4[%c0_5, %c0_6], %5 {strides = array<i32>} : memref<64x1024xf32, #tpu.memory_space<vmem>>, vector<64x1024xf32>,
    return
  }
  func.func @transform_0(%arg0: i32) -> (i32, i32) {
    %c0_i32 = arith.constant 0 : i32
    %c0_i32_0 = arith.constant 0 : i32
    return %arg0, %c0_i32 : i32, i32
  }
  func.func @transform_1(%arg0: i32) -> (i32, i32) {
    %c0_i32 = arith.constant 0 : i32
    %c0_i32_0 = arith.constant 0 : i32
    %c0_i32_1 = arith.constant 0 : i32
    return %c0_i32, %c0_i32_0 : i32, i32
  }
  func.func @transform_2(%arg0: i32) -> (i32, i32) {
    %c0_i32 = arith.constant 0 : i32
    %c0_i32_0 = arith.constant 0 : i32
    %c0_i32_1 = arith.constant 0 : i32
    return %c0_i32, %c0_i32_0 : i32, i32
  }
  func.func @transform_3(%arg0: i32) -> (i32, i32) {
    %c0_i32 = arith.constant 0 : i32
    %c0_i32_0 = arith.constant 0 : i32
    return %arg0, %c0_i32 : i32, i32
  }
}

module attributes {stable_mosaic.version = 11 : i64} {
  func.func @_mm_bias_kernel(%arg0: i32, %arg1: memref<64x256xbf16, #tpu.memory_space<vmem>>, %arg2: memref<256x128xbf16, #tpu.memory_space<vmem>>, %arg3: memref<1x128xf32, #tpu.memory_space<vmem>>, %arg4: memref<64x128xf32, #tpu.memory_space<vmem>>) attributes {dimension_semantics = [#tpu.dimension_semantics<parallel>], iteration_bounds = array<i64: 1>, scalar_prefetch = 0 : i64, scratch_operands = 0 : i64, tpu.core_type = #tpu.core_type<tc>, window_params = [{transform_indices = @transform_0, window_bounds = array<i64: 64, 256>}, {pipeline_mode = #tpu.pipeline_mode<synchronous>, transform_indices = @transform_1, window_bounds = array<i64: 256, 128>}, {pipeline_mode = #tpu.pipeline_mode<synchronous>, transform_indices = @transform_2, window_bounds = array<i64: 1, 128>}, {transform_indices = @transform_3, window_bounds = array<i64: 64, 128>}]} {
    %c0 = arith.constant 0 : index
    %c0_0 = arith.constant 0 : index
    %0 = vector.load %arg1[%c0, %c0_0] : memref<64x256xbf16, #tpu.memory_space<vmem>>, vector<64x256xbf16>
    %c0_1 = arith.constant 0 : index
    %c0_2 = arith.constant 0 : index
    %1 = vector.load %arg2[%c0_1, %c0_2] : memref<256x128xbf16, #tpu.memory_space<vmem>>, vector<256x128xbf16>
    %cst = arith.constant dense<0.000000e+00> : vector<64x128xf32>
    %2 = tpu.matmul %0, %1, %cst {dimension_numbers = #tpu.dot_dimension_numbers<[1], [0], [0], [1], [0, 0, 1, 1], [], []>} : vector<64x256xbf16>, vector<256x128xbf16>, vector<64x128xf32> -> vector<64x128xf32>
    %c0_3 = arith.constant 0 : index
    %c0_4 = arith.constant 0 : index
    %3 = vector.load %arg3[%c0_3, %c0_4] : memref<1x128xf32, #tpu.memory_space<vmem>>, vector<1x128xf32>
    %4 = vector.broadcast %3 : vector<1x128xf32> to vector<64x128xf32>
    %5 = arith.addf %2, %4 : vector<64x128xf32>
    %c0_5 = arith.constant 0 : index
    %c0_6 = arith.constant 0 : index
    %6 = vector.load %arg4[%c0_5, %c0_6] : memref<64x128xf32, #tpu.memory_space<vmem>>, vector<64x128xf32>
    tpu.vector_store %arg4[%c0_5, %c0_6], %5 {strides = array<i32>} : memref<64x128xf32, #tpu.memory_space<vmem>>, vector<64x128xf32>,
    return
  }
  func.func @transform_0(%arg0: i32) -> (i32, i32) {
    %c0_i32 = arith.constant 0 : i32
    %c0_i32_0 = arith.constant 0 : i32
    return %arg0, %c0_i32 : i32, i32
  }
  func.func @transform_1(%arg0: i32) -> (i32, i32) {
    %c0_i32 = arith.constant 0 : i32
    %c0_i32_0 = arith.constant 0 : i32
    %c0_i32_1 = arith.constant 0 : i32
    return %c0_i32, %c0_i32_0 : i32, i32
  }
  func.func @transform_2(%arg0: i32) -> (i32, i32) {
    %c0_i32 = arith.constant 0 : i32
    %c0_i32_0 = arith.constant 0 : i32
    %c0_i32_1 = arith.constant 0 : i32
    return %c0_i32, %c0_i32_0 : i32, i32
  }
  func.func @transform_3(%arg0: i32) -> (i32, i32) {
    %c0_i32 = arith.constant 0 : i32
    %c0_i32_0 = arith.constant 0 : i32
    return %arg0, %c0_i32 : i32, i32
  }
}

</mosaic_0001>

<llo_original>
// kernel: neg.1
$region0: #{neg.1}
  #allocation0 [shape = 's32[1]{0}', space=sflag, size = 0x4, scoped, tag = 'scoped memory for neg.1']
  %s0 = inlined_call_operand.vmem [shape: s32[4], index: 0, kind: input, shape index: {}]
  %s1 = inlined_call_operand.vmem [shape: s32[4], index: 1, kind: output, shape index: {}]
  %v2 = vld [vmem:[%s0] sm:$0x1]
  %3 = xla_tuple %v2
  %4 = xla_tuple %3
  %v5 = vsub.s32 0, %v2
  %6 = xla_tuple %v5
  %7 = vst [vmem:[%s1] sm:$0x1] %v5

// kernel: encoder_forward.5
$region0: #{encoder_forward.5}
  #allocation0 [shape = 'u32[]', space=smem, size = 0x4, offset = 0x4, fixed_abs, tag = 'smem constant byte address 0x4 - core index']
  #allocation1 [shape = 'u32[144,128]{1,0:T(1,128)}', space=vmem, size = 0x12000, scoped, tag = 'internal scratch']
  %s0 = inlined_call_operand.vmem [shape: bf16[64,128], index: 0, kind: input, shape index: {}]
  %s1 = inlined_call_operand.vmem [shape: bf16[128,1024], index: 1, kind: input, shape index: {}]
  %s2 = inlined_call_operand.vmem [shape: f32[1,1024], index: 2, kind: input, shape index: {}]
  %s3 = inlined_call_operand.vmem [shape: f32[64,1024], index: 3, kind: output, shape index: {}]
  %s4 = sld [smem:[#allocation0]]
  $region22: #{encoder_forward.5} parent=0
    _
  %s6 = ssub.s32 1, %s4
  %s7 = scalar_select 0, %s6, %s4
  // Predicated region
  $region2: #{encoder_forward.5} parent=0 // pred_check
    _
  $region3: #{encoder_forward.5} parent=0 // pred_check_branch
    %9 = sbr.rel (0) target = $region5
  $region4: #{encoder_forward.5} parent=0 // pred_region
    _
  $region5: #{encoder_forward.5} parent=0 // pred_fallthru
    _
  // Predicated region
  $region6: #{encoder_forward.5} parent=0 // pred_check
    _
  $region7: #{encoder_forward.5} parent=0 // pred_check_branch
    %11 = sbr.rel (0) target = $region9
  $region8: #{encoder_forward.5} parent=0 // pred_region
    _
  $region9: #{encoder_forward.5} parent=0 // pred_fallthru
    _
  // Predicated region
  $region10: #{encoder_forward.5} parent=0 // pred_check
    _
  $region11: #{encoder_forward.5} parent=0 // pred_check_branch
    %13 = sbr.rel (0) target = $region13
  $region12: #{encoder_forward.5} parent=0 // pred_region
    _
  $region13: #{encoder_forward.5} parent=0 // pred_fallthru
    _
  %v15 = vld [vmem:[%s0] sm:$0xf]
  %v16 = vld [vmem:[%s0 + $0x4] sm:$0xf]
  %v17 = vld [vmem:[%s0 + $0x8] sm:$0xf]
  %v18 = vld [vmem:[%s0 + $0xc] sm:$0xf]
  %v19 = vld [vmem:[%s0 + $0x10] sm:$0xf]
  %v20 = vld [vmem:[%s0 + $0x14] sm:$0xf]
  %v21 = vld [vmem:[%s0 + $0x18] sm:$0xf]
  %v22 = vld [vmem:[%s0 + $0x1c] sm:$0xf]
  %v23 = vld [vmem:[%s1] sm:$0xff]
  %v24 = vld [vmem:[%s1 + $0x8] sm:$0xff]
  %v25 = vld [vmem:[%s1 + $0x10] sm:$0xff]
  %v26 = vld [vmem:[%s1 + $0x18] sm:$0xff]
  %v27 = vld [vmem:[%s1 + $0x20] sm:$0xff]
  %v28 = vld [vmem:[%s1 + $0x28] sm:$0xff]
  %v29 = vld [vmem:[%s1 + $0x30] sm:$0xff]
  %v30 = vld [vmem:[%s1 + $0x38] sm:$0xff]
  %v31 = vld [vmem:[%s1 + $0x40] sm:$0xff]
  %v32 = vld [vmem:[%s1 + $0x48] sm:$0xff]
  %v33 = vld [vmem:[%s1 + $0x50] sm:$0xff]
  %v34 = vld [vmem:[%s1 + $0x58] sm:$0xff]
  %v35 = vld [vmem:[%s1 + $0x60] sm:$0xff]
  %v36 = vld [vmem:[%s1 + $0x68] sm:$0xff]
  %v37 = vld [vmem:[%s1 + $0x70] sm:$0xff]
  %v38 = vld [vmem:[%s1 + $0x78] sm:$0xff]
  %v39 = vld [vmem:[%s1 + $0x80] sm:$0xff]
  %v40 = vld [vmem:[%s1 + $0x88] sm:$0xff]
  %v41 = vld [vmem:[%s1 + $0x90] sm:$0xff]
  %v42 = vld [vmem:[%s1 + $0x98] sm:$0xff]
  %v43 = vld [vmem:[%s1 + $0xa0] sm:$0xff]
  %v44 = vld [vmem:[%s1 + $0xa8] sm:$0xff]
  %v45 = vld [vmem:[%s1 + $0xb0] sm:$0xff]
  %v46 = vld [vmem:[%s1 + $0xb8] sm:$0xff]
  %v47 = vld [vmem:[%s1 + $0xc0] sm:$0xff]
  %v48 = vld [vmem:[%s1 + $0xc8] sm:$0xff]
  %v49 = vld [vmem:[%s1 + $0xd0] sm:$0xff]
  %v50 = vld [vmem:[%s1 + $0xd8] sm:$0xff]
  %v51 = vld [vmem:[%s1 + $0xe0] sm:$0xff]
  %v52 = vld [vmem:[%s1 + $0xe8] sm:$0xff]
  %v53 = vld [vmem:[%s1 + $0xf0] sm:$0xff]
  %v54 = vld [vmem:[%s1 + $0xf8] sm:$0xff]
  %v55 = vld [vmem:[%s1 + $0x100] sm:$0xff]
  %v56 = vld [vmem:[%s1 + $0x108] sm:$0xff]
  %v57 = vld [vmem:[%s1 + $0x110] sm:$0xff]
  %v58 = vld [vmem:[%s1 + $0x118] sm:$0xff]
  %v59 = vld [vmem:[%s1 + $0x120] sm:$0xff]
  %v60 = vld [vmem:[%s1 + $0x128] sm:$0xff]
  %v61 = vld [vmem:[%s1 + $0x130] sm:$0xff]
  %v62 = vld [vmem:[%s1 + $0x138] sm:$0xff]
  %v63 = vld [vmem:[%s1 + $0x140] sm:$0xff]
  %v64 = vld [vmem:[%s1 + $0x148] sm:$0xff]
  %v65 = vld [vmem:[%s1 + $0x150] sm:$0xff]
  %v66 = vld [vmem:[%s1 + $0x158] sm:$0xff]
  %v67 = vld [vmem:[%s1 + $0x160] sm:$0xff]
  %v68 = vld [vmem:[%s1 + $0x168] sm:$0xff]
  %v69 = vld [vmem:[%s1 + $0x170] sm:$0xff]
  %v70 = vld [vmem:[%s1 + $0x178] sm:$0xff]
  %v71 = vld [vmem:[%s1 + $0x180] sm:$0xff]
  %v72 = vld [vmem:[%s1 + $0x188] sm:$0xff]
  %v73 = vld [vmem:[%s1 + $0x190] sm:$0xff]
  %v74 = vld [vmem:[%s1 + $0x198] sm:$0xff]
  %v75 = vld [vmem:[%s1 + $0x1a0] sm:$0xff]
  %v76 = vld [vmem:[%s1 + $0x1a8] sm:$0xff]
  %v77 = vld [vmem:[%s1 + $0x1b0] sm:$0xff]
  %v78 = vld [vmem:[%s1 + $0x1b8] sm:$0xff]
  %v79 = vld [vmem:[%s1 + $0x1c0] sm:$0xff]
  %v80 = vld [vmem:[%s1 + $0x1c8] sm:$0xff]
  %v81 = vld [vmem:[%s1 + $0x1d0] sm:$0xff]
  %v82 = vld [vmem:[%s1 + $0x1d8] sm:$0xff]
  %v83 = vld [vmem:[%s1 + $0x1e0] sm:$0xff]
  %v84 = vld [vmem:[%s1 + $0x1e8] sm:$0xff]
  %v85 = vld [vmem:[%s1 + $0x1f0] sm:$0xff]
  %v86 = vld [vmem:[%s1 + $0x1f8] sm:$0xff]
  %v87 = vld [vmem:[%s2] sm:$0xff]
  %v89 = vlaneseq
  %v90 = vshrl.u32 %v89, 7
  %v91 = vsub.s32 0, %v90
  %v92 = vrot.slane %v87, %v91
  %v93 = vlaneseq
  %v94 = vshrl.u32 %v93, 7
  %v95 = vsub.s32 1, %v94
  %v96 = vrot.slane %v87, %v95
  %v97 = vlaneseq
  %v98 = vshrl.u32 %v97, 7
  %v99 = vsub.s32 2, %v98
  %v100 = vrot.slane %v87, %v99
  %v101 = vlaneseq
  %v102 = vshrl.u32 %v101, 7
  %v103 = vsub.s32 3, %v102
  %v104 = vrot.slane %v87, %v103
  %v105 = vlaneseq
  %v106 = vshrl.u32 %v105, 7
  %v107 = vsub.s32 4, %v106
  %v108 = vrot.slane %v87, %v107
  %v109 = vlaneseq
  %v110 = vshrl.u32 %v109, 7
  %v111 = vsub.s32 5, %v110
  %v112 = vrot.slane %v87, %v111
  %v113 = vlaneseq
  %v114 = vshrl.u32 %v113, 7
  %v115 = vsub.s32 6, %v114
  %v116 = vrot.slane %v87, %v115
  %v117 = vlaneseq
  %v118 = vshrl.u32 %v117, 7
  %v119 = vsub.s32 7, %v118
  %v120 = vrot.slane %v87, %v119
  %v137 = vunpack.c.l.b16 %v15
  %v138 = vunpack.c.l.b16 %v16
  %v139 = vunpack.c.l.b16 %v17
  %v140 = vunpack.c.l.b16 %v18
  %v141 = vunpack.c.l.b16 %v19
  %v142 = vunpack.c.l.b16 %v20
  %v143 = vunpack.c.l.b16 %v21
  %v144 = vunpack.c.l.b16 %v22
  %v145 = vpack.c.b16 %v138, %v137
  %v146 = vpack.c.b16 %v140, %v139
  %v147 = vpack.c.b16 %v142, %v141
  %v148 = vpack.c.b16 %v144, %v143
  %v217 = vunpack.c.l.b16 %v23
  %v218 = vunpack.c.h.b16 %v23
  %v219 = vunpack.c.l.b16 %v24
  %v220 = vunpack.c.h.b16 %v24
  %v221 = vunpack.c.l.b16 %v25
  %v222 = vunpack.c.h.b16 %v25
  %v223 = vunpack.c.l.b16 %v26
  %v224 = vunpack.c.h.b16 %v26
  %v225 = vunpack.c.l.b16 %v27
  %v226 = vunpack.c.h.b16 %v27
  %v227 = vunpack.c.l.b16 %v28
  %v228 = vunpack.c.h.b16 %v28
  %v229 = vunpack.c.l.b16 %v29
  %v230 = vunpack.c.h.b16 %v29
  %v231 = vunpack.c.l.b16 %v30
  %v232 = vunpack.c.h.b16 %v30
  %v233 = vunpack.c.l.b16 %v31
  %v234 = vunpack.c.h.b16 %v31
  %v235 = vunpack.c.l.b16 %v32
  %v236 = vunpack.c.h.b16 %v32
  %v237 = vunpack.c.l.b16 %v33
  %v238 = vunpack.c.h.b16 %v33
  %v239 = vunpack.c.l.b16 %v34
  %v240 = vunpack.c.h.b16 %v34
  %v241 = vunpack.c.l.b16 %v35
  %v242 = vunpack.c.h.b16 %v35
  %v243 = vunpack.c.l.b16 %v36
  %v244 = vunpack.c.h.b16 %v36
  %v245 = vunpack.c.l.b16 %v37
  %v246 = vunpack.c.h.b16 %v37
  %v247 = vunpack.c.l.b16 %v38
  %v248 = vunpack.c.h.b16 %v38
  %v249 = vunpack.c.l.b16 %v39
  %v250 = vunpack.c.h.b16 %v39
  %v251 = vunpack.c.l.b16 %v40
  %v252 = vunpack.c.h.b16 %v40
  %v253 = vunpack.c.l.b16 %v41
  %v254 = vunpack.c.h.b16 %v41
  %v255 = vunpack.c.l.b16 %v42
  %v256 = vunpack.c.h.b16 %v42
  %v257 = vunpack.c.l.b16 %v43
  %v258 = vunpack.c.h.b16 %v43
  %v259 = vunpack.c.l.b16 %v44
  %v260 = vunpack.c.h.b16 %v44
  %v261 = vunpack.c.l.b16 %v45
  %v262 = vunpack.c.h.b16 %v45
  %v263 = vunpack.c.l.b16 %v46
  %v264 = vunpack.c.h.b16 %v46
  %v265 = vunpack.c.l.b16 %v47
  %v266 = vunpack.c.h.b16 %v47
  %v267 = vunpack.c.l.b16 %v48
  %v268 = vunpack.c.h.b16 %v48
  %v269 = vunpack.c.l.b16 %v49
  %v270 = vunpack.c.h.b16 %v49
  %v271 = vunpack.c.l.b16 %v50
  %v272 = vunpack.c.h.b16 %v50
  %v273 = vunpack.c.l.b16 %v51
  %v274 = vunpack.c.h.b16 %v51
  %v275 = vunpack.c.l.b16 %v52
  %v276 = vunpack.c.h.b16 %v52
  %v277 = vunpack.c.l.b16 %v53
  %v278 = vunpack.c.h.b16 %v53
  %v279 = vunpack.c.l.b16 %v54
  %v280 = vunpack.c.h.b16 %v54
  %v281 = vunpack.c.l.b16 %v55
  %v282 = vunpack.c.h.b16 %v55
  %v283 = vunpack.c.l.b16 %v56
  %v284 = vunpack.c.h.b16 %v56
  %v285 = vunpack.c.l.b16 %v57
  %v286 = vunpack.c.h.b16 %v57
  %v287 = vunpack.c.l.b16 %v58
  %v288 = vunpack.c.h.b16 %v58
  %v289 = vunpack.c.l.b16 %v59
  %v290 = vunpack.c.h.b16 %v59
  %v291 = vunpack.c.l.b16 %v60
  %v292 = vunpack.c.h.b16 %v60
  %v293 = vunpack.c.l.b16 %v61
  %v294 = vunpack.c.h.b16 %v61
  %v295 = vunpack.c.l.b16 %v62
  %v296 = vunpack.c.h.b16 %v62
  %v297 = vunpack.c.l.b16 %v63
  %v298 = vunpack.c.h.b16 %v63
  %v299 = vunpack.c.l.b16 %v64
  %v300 = vunpack.c.h.b16 %v64
  %v301 = vunpack.c.l.b16 %v65
  %v302 = vunpack.c.h.b16 %v65
  %v303 = vunpack.c.l.b16 %v66
  %v304 = vunpack.c.h.b16 %v66
  %v305 = vunpack.c.l.b16 %v67
  %v306 = vunpack.c.h.b16 %v67
  %v307 = vunpack.c.l.b16 %v68
  %v308 = vunpack.c.h.b16 %v68
  %v309 = vunpack.c.l.b16 %v69
  %v310 = vunpack.c.h.b16 %v69
  %v311 = vunpack.c.l.b16 %v70
  %v312 = vunpack.c.h.b16 %v70
  %v313 = vunpack.c.l.b16 %v71
  %v314 = vunpack.c.h.b16 %v71
  %v315 = vunpack.c.l.b16 %v72
  %v316 = vunpack.c.h.b16 %v72
  %v317 = vunpack.c.l.b16 %v73
  %v318 = vunpack.c.h.b16 %v73
  %v319 = vunpack.c.l.b16 %v74
  %v320 = vunpack.c.h.b16 %v74
  %v321 = vunpack.c.l.b16 %v75
  %v322 = vunpack.c.h.b16 %v75
  %v323 = vunpack.c.l.b16 %v76
  %v324 = vunpack.c.h.b16 %v76
  %v325 = vunpack.c.l.b16 %v77
  %v326 = vunpack.c.h.b16 %v77
  %v327 = vunpack.c.l.b16 %v78
  %v328 = vunpack.c.h.b16 %v78
  %v329 = vunpack.c.l.b16 %v79
  %v330 = vunpack.c.h.b16 %v79
  %v331 = vunpack.c.l.b16 %v80
  %v332 = vunpack.c.h.b16 %v80
  %v333 = vunpack.c.l.b16 %v81
  %v334 = vunpack.c.h.b16 %v81
  %v335 = vunpack.c.l.b16 %v82
  %v336 = vunpack.c.h.b16 %v82
  %v337 = vunpack.c.l.b16 %v83
  %v338 = vunpack.c.h.b16 %v83
  %v339 = vunpack.c.l.b16 %v84
  %v340 = vunpack.c.h.b16 %v84
  %v341 = vunpack.c.l.b16 %v85
  %v342 = vunpack.c.h.b16 %v85
  %v343 = vunpack.c.l.b16 %v86
  %v344 = vunpack.c.h.b16 %v86
  %v345 = vpack.c.b16 %v225, %v217
  %v346 = vpack.c.b16 %v226, %v218
  %v347 = vpack.c.b16 %v227, %v219
  %v348 = vpack.c.b16 %v228, %v220
  %v349 = vpack.c.b16 %v229, %v221
  %v350 = vpack.c.b16 %v230, %v222
  %v351 = vpack.c.b16 %v231, %v223
  %v352 = vpack.c.b16 %v232, %v224
  %v353 = vpack.c.b16 %v241, %v233
  %v354 = vpack.c.b16 %v242, %v234
  %v355 = vpack.c.b16 %v243, %v235
  %v356 = vpack.c.b16 %v244, %v236
  %v357 = vpack.c.b16 %v245, %v237
  %v358 = vpack.c.b16 %v246, %v238
  %v359 = vpack.c.b16 %v247, %v239
  %v360 = vpack.c.b16 %v248, %v240
  %v361 = vpack.c.b16 %v257, %v249
  %v362 = vpack.c.b16 %v258, %v250
  %v363 = vpack.c.b16 %v259, %v251
  %v364 = vpack.c.b16 %v260, %v252
  %v365 = vpack.c.b16 %v261, %v253
  %v366 = vpack.c.b16 %v262, %v254
  %v367 = vpack.c.b16 %v263, %v255
  %v368 = vpack.c.b16 %v264, %v256
  %v369 = vpack.c.b16 %v273, %v265
  %v370 = vpack.c.b16 %v274, %v266
  %v371 = vpack.c.b16 %v275, %v267
  %v372 = vpack.c.b16 %v276, %v268
  %v373 = vpack.c.b16 %v277, %v269
  %v374 = vpack.c.b16 %v278, %v270
  %v375 = vpack.c.b16 %v279, %v271
  %v376 = vpack.c.b16 %v280, %v272
  %v377 = vpack.c.b16 %v289, %v281
  %v378 = vpack.c.b16 %v290, %v282
  %v379 = vpack.c.b16 %v291, %v283
  %v380 = vpack.c.b16 %v292, %v284
  %v381 = vpack.c.b16 %v293, %v285
  %v382 = vpack.c.b16 %v294, %v286
  %v383 = vpack.c.b16 %v295, %v287
  %v384 = vpack.c.b16 %v296, %v288
  %v385 = vpack.c.b16 %v305, %v297
  %v386 = vpack.c.b16 %v306, %v298
  %v387 = vpack.c.b16 %v307, %v299
  %v388 = vpack.c.b16 %v308, %v300
  %v389 = vpack.c.b16 %v309, %v301
  %v390 = vpack.c.b16 %v310, %v302
  %v391 = vpack.c.b16 %v311, %v303
  %v392 = vpack.c.b16 %v312, %v304
  %v393 = vpack.c.b16 %v321, %v313
  %v394 = vpack.c.b16 %v322, %v314
  %v395 = vpack.c.b16 %v323, %v315
  %v396 = vpack.c.b16 %v324, %v316
  %v397 = vpack.c.b16 %v325, %v317
  %v398 = vpack.c.b16 %v326, %v318
  %v399 = vpack.c.b16 %v327, %v319
  %v400 = vpack.c.b16 %v328, %v320
  %v401 = vpack.c.b16 %v337, %v329
  %v402 = vpack.c.b16 %v338, %v330
  %v403 = vpack.c.b16 %v339, %v331
  %v404 = vpack.c.b16 %v340, %v332
  %v405 = vpack.c.b16 %v341, %v333
  %v406 = vpack.c.b16 %v342, %v334
  %v407 = vpack.c.b16 %v343, %v335
  %v408 = vpack.c.b16 %v344, %v336
  %473 = vmatprep.subr.bf16.mxu0 %v346
  %474 = vmatpush1.bf16.msra.mxu0 %v345
  %475 = vmatprep.subr.bf16.mxu0 %v354
  %476 = vmatpush1.bf16.msra.mxu0 %v353
  %477 = vmatprep.subr.bf16.mxu0 %v362
  %478 = vmatpush1.bf16.msra.mxu0 %v361
  %479 = vmatprep.subr.bf16.mxu0 %v370
  %480 = vmatpush1.bf16.msra.mxu0 %v369
  %481 = vmatprep.subr.bf16.mxu0 %v378
  %482 = vmatpush1.bf16.msra.mxu0 %v377
  %483 = vmatprep.subr.bf16.mxu0 %v386
  %484 = vmatpush1.bf16.msra.mxu0 %v385
  %485 = vmatprep.subr.bf16.mxu0 %v394
  %486 = vmatpush1.bf16.msra.mxu0 %v393
  %487 = vmatprep.subr.bf16.mxu0 %v402
  %488 = vmatpush1.bf16.msra.mxu0 %v401
  %489 = vmatprep.subr.bf16.mxu0 0
  %490 = vmatpush1.bf16.msra.mxu0 0
  %491 = vmatprep.subr.bf16.mxu0 0
  %492 = vmatpush1.bf16.msra.mxu0 0
  %493 = vmatprep.subr.bf16.mxu0 0
  %494 = vmatpush1.bf16.msra.mxu0 0
  %495 = vmatprep.subr.bf16.mxu0 0
  %496 = vmatpush1.bf16.msra.mxu0 0
  %497 = vmatprep.subr.bf16.mxu0 0
  %498 = vmatpush1.bf16.msra.mxu0 0
  %499 = vmatprep.subr.bf16.mxu0 0
  %500 = vmatpush1.bf16.msra.mxu0 0
  %501 = vmatprep.subr.bf16.mxu0 0
  %502 = vmatpush1.bf16.msra.mxu0 0
  %503 = vmatprep.subr.bf16.mxu0 0
  %504 = vmatpush1.bf16.msra.mxu0 0
  %505 = vmatprep.mubr.bf16.mxu0 0
  %506 = vmatmul.mubr.bf16.gmra.mrb[0].mxu0 %v145
  %v507 = vpop.f32.mrb[0].mxu0
  %v508 = vadd.f32 %v92, %v507
  %v509 = vpop.f32.mrb[0].mxu0
  %v510 = vadd.f32 %v96, %v509
  %v511 = vpop.f32.mrb[0].mxu0
  %v512 = vadd.f32 %v92, %v511
  %v513 = vpop.f32.mrb[0].mxu0
  %v514 = vadd.f32 %v96, %v513
  %515 = vmatprep.mubr.bf16.mxu0 0
  %516 = vmatmul.mubr.bf16.gmra.mrb[0].mxu0 %v146
  %v517 = vpop.f32.mrb[0].mxu0
  %v518 = vadd.f32 %v92, %v517
  %v519 = vpop.f32.mrb[0].mxu0
  %v520 = vadd.f32 %v96, %v519
  %v521 = vpop.f32.mrb[0].mxu0
  %v522 = vadd.f32 %v92, %v521
  %v523 = vpop.f32.mrb[0].mxu0
  %v524 = vadd.f32 %v96, %v523
  %525 = vmatprep.mubr.bf16.mxu0 0
  %526 = vmatmul.mubr.bf16.gmra.mrb[0].mxu0 %v147
  %v527 = vpop.f32.mrb[0].mxu0
  %v528 = vadd.f32 %v92, %v527
  %v529 = vpop.f32.mrb[0].mxu0
  %v530 = vadd.f32 %v96, %v529
  %v531 = vpop.f32.mrb[0].mxu0
  %v532 = vadd.f32 %v92, %v531
  %v533 = vpop.f32.mrb[0].mxu0
  %v534 = vadd.f32 %v96, %v533
  %535 = vmatprep.mubr.bf16.mxu0 0
  %536 = vmatmul.mubr.bf16.gmra.mrb[0].mxu0 %v148
  %v537 = vpop.f32.mrb[0].mxu0
  %v538 = vadd.f32 %v92, %v537
  %v539 = vpop.f32.mrb[0].mxu0
  %v540 = vadd.f32 %v96, %v539
  %v541 = vpop.f32.mrb[0].mxu0
  %v542 = vadd.f32 %v92, %v541
  %v543 = vpop.f32.mrb[0].mxu0
  %v544 = vadd.f32 %v96, %v543
  %545 = vdwg.mxu0
  %546 = vmatprep.subr.bf16.mxu0 %v348
  %547 = vmatpush1.bf16.msra.mxu0 %v347
  %548 = vmatprep.subr.bf16.mxu0 %v356
  %549 = vmatpush1.bf16.msra.mxu0 %v355
  %550 = vmatprep.subr.bf16.mxu0 %v364
  %551 = vmatpush1.bf16.msra.mxu0 %v363
  %552 = vmatprep.subr.bf16.mxu0 %v372
  %553 = vmatpush1.bf16.msra.mxu0 %v371
  %554 = vmatprep.subr.bf16.mxu0 %v380
  %555 = vmatpush1.bf16.msra.mxu0 %v379
  %556 = vmatprep.subr.bf16.mxu0 %v388
  %557 = vmatpush1.bf16.msra.mxu0 %v387
  %558 = vmatprep.subr.bf16.mxu0 %v396
  %559 = vmatpush1.bf16.msra.mxu0 %v395
  %560 = vmatprep.subr.bf16.mxu0 %v404
  %561 = vmatpush1.bf16.msra.mxu0 %v403
  %562 = vmatprep.subr.bf16.mxu0 0
  %563 = vmatpush1.bf16.msra.mxu0 0
  %564 = vmatprep.subr.bf16.mxu0 0
  %565 = vmatpush1.bf16.msra.mxu0 0
  %566 = vmatprep.subr.bf16.mxu0 0
  %567 = vmatpush1.bf16.msra.mxu0 0
  %568 = vmatprep.subr.bf16.mxu0 0
  %569 = vmatpush1.bf16.msra.mxu0 0
  %570 = vmatprep.subr.bf16.mxu0 0
  %571 = vmatpush1.bf16.msra.mxu0 0
  %572 = vmatprep.subr.bf16.mxu0 0
  %573 = vmatpush1.bf16.msra.mxu0 0
  %574 = vmatprep.subr.bf16.mxu0 0
  %575 = vmatpush1.bf16.msra.mxu0 0
  %576 = vmatprep.subr.bf16.mxu0 0
  %577 = vmatpush1.bf16.msra.mxu0 0
  %578 = vmatprep.mubr.bf16.mxu0 0
  %579 = vmatmul.mubr.bf16.gmra.mrb[0].mxu0 %v145
  %v580 = vpop.f32.mrb[0].mxu0
  %v581 = vadd.f32 %v100, %v580
  %v582 = vpop.f32.mrb[0].mxu0
  %v583 = vadd.f32 %v104, %v582
  %v584 = vpop.f32.mrb[0].mxu0
  %v585 = vadd.f32 %v100, %v584
  %v586 = vpop.f32.mrb[0].mxu0
  %v587 = vadd.f32 %v104, %v586
  %588 = vmatprep.mubr.bf16.mxu0 0
  %589 = vmatmul.mubr.bf16.gmra.mrb[0].mxu0 %v146
  %v590 = vpop.f32.mrb[0].mxu0
  %v591 = vadd.f32 %v100, %v590
  %v592 = vpop.f32.mrb[0].mxu0
  %v593 = vadd.f32 %v104, %v592
  %v594 = vpop.f32.mrb[0].mxu0
  %v595 = vadd.f32 %v100, %v594
  %v596 = vpop.f32.mrb[0].mxu0
  %v597 = vadd.f32 %v104, %v596
  %598 = vmatprep.mubr.bf16.mxu0 0
  %599 = vmatmul.mubr.bf16.gmra.mrb[0].mxu0 %v147
  %v600 = vpop.f32.mrb[0].mxu0
  %v601 = vadd.f32 %v100, %v600
  %v602 = vpop.f32.mrb[0].mxu0
  %v603 = vadd.f32 %v104, %v602
  %v604 = vpop.f32.mrb[0].mxu0
  %v605 = vadd.f32 %v100, %v604
  %v606 = vpop.f32.mrb[0].mxu0
  %v607 = vadd.f32 %v104, %v606
  %608 = vmatprep.mubr.bf16.mxu0 0
  %609 = vmatmul.mubr.bf16.gmra.mrb[0].mxu0 %v148
  %v610 = vpop.f32.mrb[0].mxu0
  %v611 = vadd.f32 %v100, %v610
  %v612 = vpop.f32.mrb[0].mxu0
  %v613 = vadd.f32 %v104, %v612
  %v614 = vpop.f32.mrb[0].mxu0
  %v615 = vadd.f32 %v100, %v614
  %v616 = vpop.f32.mrb[0].mxu0
  %v617 = vadd.f32 %v104, %v616
  %618 = vdwg.mxu0
  %619 = vmatprep.subr.bf16.mxu0 %v350
  %620 = vmatpush1.bf16.msra.mxu0 %v349
  %621 = vmatprep.subr.bf16.mxu0 %v358
  %622 = vmatpush1.bf16.msra.mxu0 %v357
  %623 = vmatprep.subr.bf16.mxu0 %v366
  %624 = vmatpush1.bf16.msra.mxu0 %v365
  %625 = vmatprep.subr.bf16.mxu0 %v374
  %626 = vmatpush1.bf16.msra.mxu0 %v373
  %627 = vmatprep.subr.bf16.mxu0 %v382
  %628 = vmatpush1.bf16.msra.mxu0 %v381
  %629 = vmatprep.subr.bf16.mxu0 %v390
  %630 = vmatpush1.bf16.msra.mxu0 %v389
  %631 = vmatprep.subr.bf16.mxu0 %v398
  %632 = vmatpush1.bf16.msra.mxu0 %v397
  %633 = vmatprep.subr.bf16.mxu0 %v406
  %634 = vmatpush1.bf16.msra.mxu0 %v405
  %635 = vmatprep.subr.bf16.mxu0 0
  %636 = vmatpush1.bf16.msra.mxu0 0
  %637 = vmatprep.subr.bf16.mxu0 0
  %638 = vmatpush1.bf16.msra.mxu0 0
  %639 = vmatprep.subr.bf16.mxu0 0
  %640 = vmatpush1.bf16.msra.mxu0 0
  %641 = vmatprep.subr.bf16.mxu0 0
  %642 = vmatpush1.bf16.msra.mxu0 0
  %643 = vmatprep.subr.bf16.mxu0 0
  %644 = vmatpush1.bf16.msra.mxu0 0
  %645 = vmatprep.subr.bf16.mxu0 0
  %646 = vmatpush1.bf16.msra.mxu0 0
  %647 = vmatprep.subr.bf16.mxu0 0
  %648 = vmatpush1.bf16.msra.mxu0 0
  %649 = vmatprep.subr.bf16.mxu0 0
  %650 = vmatpush1.bf16.msra.mxu0 0
  %651 = vmatprep.mubr.bf16.mxu0 0
  %652 = vmatmul.mubr.bf16.gmra.mrb[0].mxu0 %v145
  %v653 = vpop.f32.mrb[0].mxu0
  %v654 = vadd.f32 %v108, %v653
  %v655 = vpop.f32.mrb[0].mxu0
  %v656 = vadd.f32 %v112, %v655
  %v657 = vpop.f32.mrb[0].mxu0
  %v658 = vadd.f32 %v108, %v657
  %v659 = vpop.f32.mrb[0].mxu0
  %v660 = vadd.f32 %v112, %v659
  %661 = vmatprep.mubr.bf16.mxu0 0
  %662 = vmatmul.mubr.bf16.gmra.mrb[0].mxu0 %v146
  %v663 = vpop.f32.mrb[0].mxu0
  %v664 = vadd.f32 %v108, %v663
  %v665 = vpop.f32.mrb[0].mxu0
  %v666 = vadd.f32 %v112, %v665
  %v667 = vpop.f32.mrb[0].mxu0
  %v668 = vadd.f32 %v108, %v667
  %v669 = vpop.f32.mrb[0].mxu0
  %v670 = vadd.f32 %v112, %v669
  %671 = vmatprep.mubr.bf16.mxu0 0
  %672 = vmatmul.mubr.bf16.gmra.mrb[0].mxu0 %v147
  %v673 = vpop.f32.mrb[0].mxu0
  %v674 = vadd.f32 %v108, %v673
  %v675 = vpop.f32.mrb[0].mxu0
  %v676 = vadd.f32 %v112, %v675
  %v677 = vpop.f32.mrb[0].mxu0
  %v678 = vadd.f32 %v108, %v677
  %v679 = vpop.f32.mrb[0].mxu0
  %v680 = vadd.f32 %v112, %v679
  %681 = vmatprep.mubr.bf16.mxu0 0
  %682 = vmatmul.mubr.bf16.gmra.mrb[0].mxu0 %v148
  %v683 = vpop.f32.mrb[0].mxu0
  %v684 = vadd.f32 %v108, %v683
  %v685 = vpop.f32.mrb[0].mxu0
  %v686 = vadd.f32 %v112, %v685
  %v687 = vpop.f32.mrb[0].mxu0
  %v688 = vadd.f32 %v108, %v687
  %v689 = vpop.f32.mrb[0].mxu0
  %v690 = vadd.f32 %v112, %v689
  %691 = vdwg.mxu0
  %692 = vmatprep.subr.bf16.mxu0 %v352
  %693 = vmatpush1.bf16.msra.mxu0 %v351
  %694 = vmatprep.subr.bf16.mxu0 %v360
  %695 = vmatpush1.bf16.msra.mxu0 %v359
  %696 = vmatprep.subr.bf16.mxu0 %v368
  %697 = vmatpush1.bf16.msra.mxu0 %v367
  %698 = vmatprep.subr.bf16.mxu0 %v376
  %699 = vmatpush1.bf16.msra.mxu0 %v375
  %700 = vmatprep.subr.bf16.mxu0 %v384
  %701 = vmatpush1.bf16.msra.mxu0 %v383
  %702 = vmatprep.subr.bf16.mxu0 %v392
  %703 = vmatpush1.bf16.msra.mxu0 %v391
  %704 = vmatprep.subr.bf16.mxu0 %v400
  %705 = vmatpush1.bf16.msra.mxu0 %v399
  %706 = vmatprep.subr.bf16.mxu0 %v408
  %707 = vmatpush1.bf16.msra.mxu0 %v407
  %708 = vmatprep.subr.bf16.mxu0 0
  %709 = vmatpush1.bf16.msra.mxu0 0
  %710 = vmatprep.subr.bf16.mxu0 0
  %711 = vmatpush1.bf16.msra.mxu0 0
  %712 = vmatprep.subr.bf16.mxu0 0
  %713 = vmatpush1.bf16.msra.mxu0 0
  %714 = vmatprep.subr.bf16.mxu0 0
  %715 = vmatpush1.bf16.msra.mxu0 0
  %716 = vmatprep.subr.bf16.mxu0 0
  %717 = vmatpush1.bf16.msra.mxu0 0
  %718 = vmatprep.subr.bf16.mxu0 0
  %719 = vmatpush1.bf16.msra.mxu0 0
  %720 = vmatprep.subr.bf16.mxu0 0
  %721 = vmatpush1.bf16.msra.mxu0 0
  %722 = vmatprep.subr.bf16.mxu0 0
  %723 = vmatpush1.bf16.msra.mxu0 0
  %724 = vmatprep.mubr.bf16.mxu0 0
  %725 = vmatmul.mubr.bf16.gmra.mrb[0].mxu0 %v145
  %v726 = vpop.f32.mrb[0].mxu0
  %v727 = vadd.f32 %v116, %v726
  %v728 = vpop.f32.mrb[0].mxu0
  %v729 = vadd.f32 %v120, %v728
  %v730 = vpop.f32.mrb[0].mxu0
  %v731 = vadd.f32 %v116, %v730
  %v732 = vpop.f32.mrb[0].mxu0
  %v733 = vadd.f32 %v120, %v732
  %734 = vmatprep.mubr.bf16.mxu0 0
  %735 = vmatmul.mubr.bf16.gmra.mrb[0].mxu0 %v146
  %v736 = vpop.f32.mrb[0].mxu0
  %v737 = vadd.f32 %v116, %v736
  %v738 = vpop.f32.mrb[0].mxu0
  %v739 = vadd.f32 %v120, %v738
  %v740 = vpop.f32.mrb[0].mxu0
  %v741 = vadd.f32 %v116, %v740
  %v742 = vpop.f32.mrb[0].mxu0
  %v743 = vadd.f32 %v120, %v742
  %744 = vmatprep.mubr.bf16.mxu0 0
  %745 = vmatmul.mubr.bf16.gmra.mrb[0].mxu0 %v147
  %v746 = vpop.f32.mrb[0].mxu0
  %v747 = vadd.f32 %v116, %v746
  %v748 = vpop.f32.mrb[0].mxu0
  %v749 = vadd.f32 %v120, %v748
  %v750 = vpop.f32.mrb[0].mxu0
  %v751 = vadd.f32 %v116, %v750
  %v752 = vpop.f32.mrb[0].mxu0
  %v753 = vadd.f32 %v120, %v752
  %754 = vmatprep.mubr.bf16.mxu0 0
  %755 = vmatmul.mubr.bf16.gmra.mrb[0].mxu0 %v148
  %v756 = vpop.f32.mrb[0].mxu0
  %v757 = vadd.f32 %v116, %v756
  %v758 = vpop.f32.mrb[0].mxu0
  %v759 = vadd.f32 %v120, %v758
  %v760 = vpop.f32.mrb[0].mxu0
  %v761 = vadd.f32 %v116, %v760
  %v762 = vpop.f32.mrb[0].mxu0
  %v763 = vadd.f32 %v120, %v762
  %764 = vdwg.mxu0
  %765 = vst [vmem:[%s3] sm:$0xff] %v508
  %766 = vst [vmem:[%s3 + $0x8] sm:$0xff] %v510
  %767 = vst [vmem:[%s3 + $0x10] sm:$0xff] %v581
  %768 = vst [vmem:[%s3 + $0x18] sm:$0xff] %v583
  %769 = vst [vmem:[%s3 + $0x20] sm:$0xff] %v654
  %770 = vst [vmem:[%s3 + $0x28] sm:$0xff] %v656
  %771 = vst [vmem:[%s3 + $0x30] sm:$0xff] %v727
  %772 = vst [vmem:[%s3 + $0x38] sm:$0xff] %v729
  %773 = vst [vmem:[%s3 + $0x40] sm:$0xff] %v512
  %774 = vst [vmem:[%s3 + $0x48] sm:$0xff] %v514
  %775 = vst [vmem:[%s3 + $0x50] sm:$0xff] %v585
  %776 = vst [vmem:[%s3 + $0x58] sm:$0xff] %v587
  %777 = vst [vmem:[%s3 + $0x60] sm:$0xff] %v658
  %778 = vst [vmem:[%s3 + $0x68] sm:$0xff] %v660
  %779 = vst [vmem:[%s3 + $0x70] sm:$0xff] %v731
  %780 = vst [vmem:[%s3 + $0x78] sm:$0xff] %v733
  %781 = vst [vmem:[%s3 + $0x80] sm:$0xff] %v518
  %782 = vst [vmem:[%s3 + $0x88] sm:$0xff] %v520
  %783 = vst [vmem:[%s3 + $0x90] sm:$0xff] %v591
  %784 = vst [vmem:[%s3 + $0x98] sm:$0xff] %v593
  %785 = vst [vmem:[%s3 + $0xa0] sm:$0xff] %v664
  %786 = vst [vmem:[%s3 + $0xa8] sm:$0xff] %v666
  %787 = vst [vmem:[%s3 + $0xb0] sm:$0xff] %v737
  %788 = vst [vmem:[%s3 + $0xb8] sm:$0xff] %v739
  %789 = vst [vmem:[%s3 + $0xc0] sm:$0xff] %v522
  %790 = vst [vmem:[%s3 + $0xc8] sm:$0xff] %v524
  %791 = vst [vmem:[%s3 + $0xd0] sm:$0xff] %v595
  %792 = vst [vmem:[%s3 + $0xd8] sm:$0xff] %v597
  %793 = vst [vmem:[%s3 + $0xe0] sm:$0xff] %v668
  %794 = vst [vmem:[%s3 + $0xe8] sm:$0xff] %v670
  %795 = vst [vmem:[%s3 + $0xf0] sm:$0xff] %v741
  %796 = vst [vmem:[%s3 + $0xf8] sm:$0xff] %v743
  %797 = vst [vmem:[%s3 + $0x100] sm:$0xff] %v528
  %798 = vst [vmem:[%s3 + $0x108] sm:$0xff] %v530
  %799 = vst [vmem:[%s3 + $0x110] sm:$0xff] %v601
  %800 = vst [vmem:[%s3 + $0x118] sm:$0xff] %v603
  %801 = vst [vmem:[%s3 + $0x120] sm:$0xff] %v674
  %802 = vst [vmem:[%s3 + $0x128] sm:$0xff] %v676
  %803 = vst [vmem:[%s3 + $0x130] sm:$0xff] %v747
  %804 = vst [vmem:[%s3 + $0x138] sm:$0xff] %v749
  %805 = vst [vmem:[%s3 + $0x140] sm:$0xff] %v532
  %806 = vst [vmem:[%s3 + $0x148] sm:$0xff] %v534
  %807 = vst [vmem:[%s3 + $0x150] sm:$0xff] %v605
  %808 = vst [vmem:[%s3 + $0x158] sm:$0xff] %v607
  %809 = vst [vmem:[%s3 + $0x160] sm:$0xff] %v678
  %810 = vst [vmem:[%s3 + $0x168] sm:$0xff] %v680
  %811 = vst [vmem:[%s3 + $0x170] sm:$0xff] %v751
  %812 = vst [vmem:[%s3 + $0x178] sm:$0xff] %v753
  %813 = vst [vmem:[%s3 + $0x180] sm:$0xff] %v538
  %814 = vst [vmem:[%s3 + $0x188] sm:$0xff] %v540
  %815 = vst [vmem:[%s3 + $0x190] sm:$0xff] %v611
  %816 = vst [vmem:[%s3 + $0x198] sm:$0xff] %v613
  %817 = vst [vmem:[%s3 + $0x1a0] sm:$0xff] %v684
  %818 = vst [vmem:[%s3 + $0x1a8] sm:$0xff] %v686
  %819 = vst [vmem:[%s3 + $0x1b0] sm:$0xff] %v757
  %820 = vst [vmem:[%s3 + $0x1b8] sm:$0xff] %v759
  %821 = vst [vmem:[%s3 + $0x1c0] sm:$0xff] %v542
  %822 = vst [vmem:[%s3 + $0x1c8] sm:$0xff] %v544
  %823 = vst [vmem:[%s3 + $0x1d0] sm:$0xff] %v615
  %824 = vst [vmem:[%s3 + $0x1d8] sm:$0xff] %v617
  %825 = vst [vmem:[%s3 + $0x1e0] sm:$0xff] %v688
  %826 = vst [vmem:[%s3 + $0x1e8] sm:$0xff] %v690
  %827 = vst [vmem:[%s3 + $0x1f0] sm:$0xff] %v761
  %828 = vst [vmem:[%s3 + $0x1f8] sm:$0xff] %v763
  // Predicated region
  $region14: #{encoder_forward.5} parent=0 // pred_check
    _
  $region15: #{encoder_forward.5} parent=0 // pred_check_branch
    %830 = sbr.rel (0) target = $region17
  $region16: #{encoder_forward.5} parent=0 // pred_region
    _
  $region17: #{encoder_forward.5} parent=0 // pred_fallthru
    _
  // Predicated region
  $region18: #{encoder_forward.5} parent=0 // pred_check
    _
  $region19: #{encoder_forward.5} parent=0 // pred_check_branch
    %832 = sbr.rel (0) target = $region21
  $region20: #{encoder_forward.5} parent=0 // pred_region
    _
  $region21: #{encoder_forward.5} parent=0 // pred_fallthru
    _

// kernel: encoder_forward.9
$region0: #{encoder_forward.9}
  #allocation0 [shape = 'u32[]', space=smem, size = 0x4, offset = 0x4, fixed_abs, tag = 'smem constant byte address 0x4 - core index']
  #allocation1 [shape = 'u32[144,128]{1,0:T(1,128)}', space=vmem, size = 0x12000, scoped, tag = 'internal scratch']
  %s0 = inlined_call_operand.vmem [shape: bf16[64,256], index: 0, kind: input, shape index: {}]
  %s1 = inlined_call_operand.vmem [shape: bf16[256,128], index: 1, kind: input, shape index: {}]
  %s2 = inlined_call_operand.vmem [shape: f32[1,128], index: 2, kind: input, shape index: {}]
  %s3 = inlined_call_operand.vmem [shape: f32[64,128], index: 3, kind: output, shape index: {}]
  %s4 = sld [smem:[#allocation0]]
  $region22: #{encoder_forward.9} parent=0
    _
  %s6 = ssub.s32 1, %s4
  %s7 = scalar_select 0, %s6, %s4
  // Predicated region
  $region2: #{encoder_forward.9} parent=0 // pred_check
    _
  $region3: #{encoder_forward.9} parent=0 // pred_check_branch
    %9 = sbr.rel (0) target = $region5
  $region4: #{encoder_forward.9} parent=0 // pred_region
    _
  $region5: #{encoder_forward.9} parent=0 // pred_fallthru
    _
  // Predicated region
  $region6: #{encoder_forward.9} parent=0 // pred_check
    _
  $region7: #{encoder_forward.9} parent=0 // pred_check_branch
    %11 = sbr.rel (0) target = $region9
  $region8: #{encoder_forward.9} parent=0 // pred_region
    _
  $region9: #{encoder_forward.9} parent=0 // pred_fallthru
    _
  // Predicated region
  $region10: #{encoder_forward.9} parent=0 // pred_check
    _
  $region11: #{encoder_forward.9} parent=0 // pred_check_branch
    %13 = sbr.rel (0) target = $region13
  $region12: #{encoder_forward.9} parent=0 // pred_region
    _
  $region13: #{encoder_forward.9} parent=0 // pred_fallthru
    _
  %v15 = vld [vmem:[%s0] sm:$0xff]
  %v16 = vld [vmem:[%s0 + $0x8] sm:$0xff]
  %v17 = vld [vmem:[%s0 + $0x10] sm:$0xff]
  %v18 = vld [vmem:[%s0 + $0x18] sm:$0xff]
  %v19 = vld [vmem:[%s0 + $0x20] sm:$0xff]
  %v20 = vld [vmem:[%s0 + $0x28] sm:$0xff]
  %v21 = vld [vmem:[%s0 + $0x30] sm:$0xff]
  %v22 = vld [vmem:[%s0 + $0x38] sm:$0xff]
  %v23 = vld [vmem:[%s1] sm:$0xf]
  %v24 = vld [vmem:[%s1 + $0x4] sm:$0xf]
  %v25 = vld [vmem:[%s1 + $0x8] sm:$0xf]
  %v26 = vld [vmem:[%s1 + $0xc] sm:$0xf]
  %v27 = vld [vmem:[%s1 + $0x10] sm:$0xf]
  %v28 = vld [vmem:[%s1 + $0x14] sm:$0xf]
  %v29 = vld [vmem:[%s1 + $0x18] sm:$0xf]
  %v30 = vld [vmem:[%s1 + $0x1c] sm:$0xf]
  %v31 = vld [vmem:[%s1 + $0x20] sm:$0xf]
  %v32 = vld [vmem:[%s1 + $0x24] sm:$0xf]
  %v33 = vld [vmem:[%s1 + $0x28] sm:$0xf]
  %v34 = vld [vmem:[%s1 + $0x2c] sm:$0xf]
  %v35 = vld [vmem:[%s1 + $0x30] sm:$0xf]
  %v36 = vld [vmem:[%s1 + $0x34] sm:$0xf]
  %v37 = vld [vmem:[%s1 + $0x38] sm:$0xf]
  %v38 = vld [vmem:[%s1 + $0x3c] sm:$0xf]
  %v39 = vld [vmem:[%s1 + $0x40] sm:$0xf]
  %v40 = vld [vmem:[%s1 + $0x44] sm:$0xf]
  %v41 = vld [vmem:[%s1 + $0x48] sm:$0xf]
  %v42 = vld [vmem:[%s1 + $0x4c] sm:$0xf]
  %v43 = vld [vmem:[%s1 + $0x50] sm:$0xf]
  %v44 = vld [vmem:[%s1 + $0x54] sm:$0xf]
  %v45 = vld [vmem:[%s1 + $0x58] sm:$0xf]
  %v46 = vld [vmem:[%s1 + $0x5c] sm:$0xf]
  %v47 = vld [vmem:[%s1 + $0x60] sm:$0xf]
  %v48 = vld [vmem:[%s1 + $0x64] sm:$0xf]
  %v49 = vld [vmem:[%s1 + $0x68] sm:$0xf]
  %v50 = vld [vmem:[%s1 + $0x6c] sm:$0xf]
  %v51 = vld [vmem:[%s1 + $0x70] sm:$0xf]
  %v52 = vld [vmem:[%s1 + $0x74] sm:$0xf]
  %v53 = vld [vmem:[%s1 + $0x78] sm:$0xf]
  %v54 = vld [vmem:[%s1 + $0x7c] sm:$0xf]
  %v55 = vld [vmem:[%s2] sm:$0x1]
  %v57 = vlaneseq
  %v58 = vshrl.u32 %v57, 7
  %v59 = vsub.s32 0, %v58
  %v60 = vrot.slane %v55, %v59
  %v70 = vunpack.c.l.b16 %v15
  %v71 = vunpack.c.h.b16 %v15
  %v72 = vunpack.c.l.b16 %v16
  %v73 = vunpack.c.h.b16 %v16
  %v74 = vunpack.c.l.b16 %v17
  %v75 = vunpack.c.h.b16 %v17
  %v76 = vunpack.c.l.b16 %v18
  %v77 = vunpack.c.h.b16 %v18
  %v78 = vunpack.c.l.b16 %v19
  %v79 = vunpack.c.h.b16 %v19
  %v80 = vunpack.c.l.b16 %v20
  %v81 = vunpack.c.h.b16 %v20
  %v82 = vunpack.c.l.b16 %v21
  %v83 = vunpack.c.h.b16 %v21
  %v84 = vunpack.c.l.b16 %v22
  %v85 = vunpack.c.h.b16 %v22
  %v86 = vpack.c.b16 %v72, %v70
  %v87 = vpack.c.b16 %v73, %v71
  %v88 = vpack.c.b16 %v76, %v74
  %v89 = vpack.c.b16 %v77, %v75
  %v90 = vpack.c.b16 %v80, %v78
  %v91 = vpack.c.b16 %v81, %v79
  %v92 = vpack.c.b16 %v84, %v82
  %v93 = vpack.c.b16 %v85, %v83
  %v134 = vunpack.c.l.b16 %v23
  %v135 = vunpack.c.l.b16 %v24
  %v136 = vunpack.c.l.b16 %v25
  %v137 = vunpack.c.l.b16 %v26
  %v138 = vunpack.c.l.b16 %v27
  %v139 = vunpack.c.l.b16 %v28
  %v140 = vunpack.c.l.b16 %v29
  %v141 = vunpack.c.l.b16 %v30
  %v142 = vunpack.c.l.b16 %v31
  %v143 = vunpack.c.l.b16 %v32
  %v144 = vunpack.c.l.b16 %v33
  %v145 = vunpack.c.l.b16 %v34
  %v146 = vunpack.c.l.b16 %v35
  %v147 = vunpack.c.l.b16 %v36
  %v148 = vunpack.c.l.b16 %v37
  %v149 = vunpack.c.l.b16 %v38
  %v150 = vunpack.c.l.b16 %v39
  %v151 = vunpack.c.l.b16 %v40
  %v152 = vunpack.c.l.b16 %v41
  %v153 = vunpack.c.l.b16 %v42
  %v154 = vunpack.c.l.b16 %v43
  %v155 = vunpack.c.l.b16 %v44
  %v156 = vunpack.c.l.b16 %v45
  %v157 = vunpack.c.l.b16 %v46
  %v158 = vunpack.c.l.b16 %v47
  %v159 = vunpack.c.l.b16 %v48
  %v160 = vunpack.c.l.b16 %v49
  %v161 = vunpack.c.l.b16 %v50
  %v162 = vunpack.c.l.b16 %v51
  %v163 = vunpack.c.l.b16 %v52
  %v164 = vunpack.c.l.b16 %v53
  %v165 = vunpack.c.l.b16 %v54
  %v166 = vpack.c.b16 %v135, %v134
  %v167 = vpack.c.b16 %v137, %v136
  %v168 = vpack.c.b16 %v139, %v138
  %v169 = vpack.c.b16 %v141, %v140
  %v170 = vpack.c.b16 %v143, %v142
  %v171 = vpack.c.b16 %v145, %v144
  %v172 = vpack.c.b16 %v147, %v146
  %v173 = vpack.c.b16 %v149, %v148
  %v174 = vpack.c.b16 %v151, %v150
  %v175 = vpack.c.b16 %v153, %v152
  %v176 = vpack.c.b16 %v155, %v154
  %v177 = vpack.c.b16 %v157, %v156
  %v178 = vpack.c.b16 %v159, %v158
  %v179 = vpack.c.b16 %v161, %v160
  %v180 = vpack.c.b16 %v163, %v162
  %v181 = vpack.c.b16 %v165, %v164
  %198 = vmatprep.subr.bf16.mxu0 0
  %199 = vmatpush1.bf16.msra.mxu0 %v166
  %200 = vmatprep.subr.bf16.mxu0 0
  %201 = vmatpush1.bf16.msra.mxu0 %v167
  %202 = vmatprep.subr.bf16.mxu0 0
  %203 = vmatpush1.bf16.msra.mxu0 %v168
  %204 = vmatprep.subr.bf16.mxu0 0
  %205 = vmatpush1.bf16.msra.mxu0 %v169
  %206 = vmatprep.subr.bf16.mxu0 0
  %207 = vmatpush1.bf16.msra.mxu0 %v170
  %208 = vmatprep.subr.bf16.mxu0 0
  %209 = vmatpush1.bf16.msra.mxu0 %v171
  %210 = vmatprep.subr.bf16.mxu0 0
  %211 = vmatpush1.bf16.msra.mxu0 %v172
  %212 = vmatprep.subr.bf16.mxu0 0
  %213 = vmatpush1.bf16.msra.mxu0 %v173
  %214 = vmatprep.subr.bf16.mxu0 0
  %215 = vmatpush1.bf16.msra.mxu0 %v174
  %216 = vmatprep.subr.bf16.mxu0 0
  %217 = vmatpush1.bf16.msra.mxu0 %v175
  %218 = vmatprep.subr.bf16.mxu0 0
  %219 = vmatpush1.bf16.msra.mxu0 %v176
  %220 = vmatprep.subr.bf16.mxu0 0
  %221 = vmatpush1.bf16.msra.mxu0 %v177
  %222 = vmatprep.subr.bf16.mxu0 0
  %223 = vmatpush1.bf16.msra.mxu0 %v178
  %224 = vmatprep.subr.bf16.mxu0 0
  %225 = vmatpush1.bf16.msra.mxu0 %v179
  %226 = vmatprep.subr.bf16.mxu0 0
  %227 = vmatpush1.bf16.msra.mxu0 %v180
  %228 = vmatprep.subr.bf16.mxu0 0
  %229 = vmatpush1.bf16.msra.mxu0 %v181
  %230 = vmatprep.mubr.bf16.mxu0 %v87
  %231 = vmatmul.mubr.bf16.gmra.mrb[0].mxu0 %v86
  %v232 = vpop.f32.mrb[0].mxu0
  %v233 = vadd.f32 %v60, %v232
  %v234 = vpop.f32.mrb[0].mxu0
  %v235 = vpop.f32.mrb[0].mxu0
  %v236 = vadd.f32 %v60, %v235
  %v237 = vpop.f32.mrb[0].mxu0
  %238 = vmatprep.mubr.bf16.mxu0 %v89
  %239 = vmatmul.mubr.bf16.gmra.mrb[0].mxu0 %v88
  %v240 = vpop.f32.mrb[0].mxu0
  %v241 = vadd.f32 %v60, %v240
  %v242 = vpop.f32.mrb[0].mxu0
  %v243 = vpop.f32.mrb[0].mxu0
  %v244 = vadd.f32 %v60, %v243
  %v245 = vpop.f32.mrb[0].mxu0
  %246 = vmatprep.mubr.bf16.mxu0 %v91
  %247 = vmatmul.mubr.bf16.gmra.mrb[0].mxu0 %v90
  %v248 = vpop.f32.mrb[0].mxu0
  %v249 = vadd.f32 %v60, %v248
  %v250 = vpop.f32.mrb[0].mxu0
  %v251 = vpop.f32.mrb[0].mxu0
  %v252 = vadd.f32 %v60, %v251
  %v253 = vpop.f32.mrb[0].mxu0
  %254 = vmatprep.mubr.bf16.mxu0 %v93
  %255 = vmatmul.mubr.bf16.gmra.mrb[0].mxu0 %v92
  %v256 = vpop.f32.mrb[0].mxu0
  %v257 = vadd.f32 %v60, %v256
  %v258 = vpop.f32.mrb[0].mxu0
  %v259 = vpop.f32.mrb[0].mxu0
  %v260 = vadd.f32 %v60, %v259
  %v261 = vpop.f32.mrb[0].mxu0
  %262 = vdwg.mxu0
  %263 = vst [vmem:[%s3] sm:$0xff] %v233
  %264 = vst [vmem:[%s3 + $0x8] sm:$0xff] %v236
  %265 = vst [vmem:[%s3 + $0x10] sm:$0xff] %v241
  %266 = vst [vmem:[%s3 + $0x18] sm:$0xff] %v244
  %267 = vst [vmem:[%s3 + $0x20] sm:$0xff] %v249
  %268 = vst [vmem:[%s3 + $0x28] sm:$0xff] %v252
  %269 = vst [vmem:[%s3 + $0x30] sm:$0xff] %v257
  %270 = vst [vmem:[%s3 + $0x38] sm:$0xff] %v260
  // Predicated region
  $region14: #{encoder_forward.9} parent=0 // pred_check
    _
  $region15: #{encoder_forward.9} parent=0 // pred_check_branch
    %272 = sbr.rel (0) target = $region17
  $region16: #{encoder_forward.9} parent=0 // pred_region
    _
  $region17: #{encoder_forward.9} parent=0 // pred_fallthru
    _
  // Predicated region
  $region18: #{encoder_forward.9} parent=0 // pred_check
    _
  $region19: #{encoder_forward.9} parent=0 // pred_check_branch
    %274 = sbr.rel (0) target = $region21
  $region20: #{encoder_forward.9} parent=0 // pred_region
    _
  $region21: #{encoder_forward.9} parent=0 // pred_fallthru
    _

// kernel: encoder_forward.7
$region0: #{encoder_forward.7}
  #allocation0 [shape = 'u32[]', space=smem, size = 0x4, offset = 0x4, fixed_abs, tag = 'smem constant byte address 0x4 - core index']
  #allocation1 [shape = 'u32[144,128]{1,0:T(1,128)}', space=vmem, size = 0x12000, scoped, tag = 'internal scratch']
  %s0 = inlined_call_operand.vmem [shape: bf16[64,256], index: 0, kind: input, shape index: {}]
  %s1 = inlined_call_operand.vmem [shape: bf16[256,1024], index: 1, kind: input, shape index: {}]
  %s2 = inlined_call_operand.vmem [shape: f32[1,1024], index: 2, kind: input, shape index: {}]
  %s3 = inlined_call_operand.vmem [shape: f32[64,1024], index: 3, kind: output, shape index: {}]
  %s4 = sld [smem:[#allocation0]]
  $region22: #{encoder_forward.7} parent=0
    _
  %s6 = ssub.s32 1, %s4
  %s7 = scalar_select 0, %s6, %s4
  // Predicated region
  $region2: #{encoder_forward.7} parent=0 // pred_check
    _
  $region3: #{encoder_forward.7} parent=0 // pred_check_branch
    %9 = sbr.rel (0) target = $region5
  $region4: #{encoder_forward.7} parent=0 // pred_region
    _
  $region5: #{encoder_forward.7} parent=0 // pred_fallthru
    _
  // Predicated region
  $region6: #{encoder_forward.7} parent=0 // pred_check
    _
  $region7: #{encoder_forward.7} parent=0 // pred_check_branch
    %11 = sbr.rel (0) target = $region9
  $region8: #{encoder_forward.7} parent=0 // pred_region
    _
  $region9: #{encoder_forward.7} parent=0 // pred_fallthru
    _
  // Predicated region
  $region10: #{encoder_forward.7} parent=0 // pred_check
    _
  $region11: #{encoder_forward.7} parent=0 // pred_check_branch
    %13 = sbr.rel (0) target = $region13
  $region12: #{encoder_forward.7} parent=0 // pred_region
    _
  $region13: #{encoder_forward.7} parent=0 // pred_fallthru
    _
  %v14 = vld [vmem:[%s0] sm:$0xff]
  %v15 = vld [vmem:[%s0 + $0x8] sm:$0xff]
  %v16 = vld [vmem:[%s0 + $0x10] sm:$0xff]
  %v17 = vld [vmem:[%s0 + $0x18] sm:$0xff]
  %v18 = vld [vmem:[%s0 + $0x20] sm:$0xff]
  %v19 = vld [vmem:[%s0 + $0x28] sm:$0xff]
  %v20 = vld [vmem:[%s0 + $0x30] sm:$0xff]
  %v21 = vld [vmem:[%s0 + $0x38] sm:$0xff]
  %v22 = vld [vmem:[%s1] sm:$0xff]
  %v23 = vld [vmem:[%s1 + $0x8] sm:$0xff]
  %v24 = vld [vmem:[%s1 + $0x10] sm:$0xff]
  %v25 = vld [vmem:[%s1 + $0x18] sm:$0xff]
  %v26 = vld [vmem:[%s1 + $0x20] sm:$0xff]
  %v27 = vld [vmem:[%s1 + $0x28] sm:$0xff]
  %v28 = vld [vmem:[%s1 + $0x30] sm:$0xff]
  %v29 = vld [vmem:[%s1 + $0x38] sm:$0xff]
  %v30 = vld [vmem:[%s1 + $0x40] sm:$0xff]
  %v31 = vld [vmem:[%s1 + $0x48] sm:$0xff]
  %v32 = vld [vmem:[%s1 + $0x50] sm:$0xff]
  %v33 = vld [vmem:[%s1 + $0x58] sm:$0xff]
  %v34 = vld [vmem:[%s1 + $0x60] sm:$0xff]
  %v35 = vld [vmem:[%s1 + $0x68] sm:$0xff]
  %v36 = vld [vmem:[%s1 + $0x70] sm:$0xff]
  %v37 = vld [vmem:[%s1 + $0x78] sm:$0xff]
  %v38 = vld [vmem:[%s1 + $0x80] sm:$0xff]
  %v39 = vld [vmem:[%s1 + $0x88] sm:$0xff]
  %v40 = vld [vmem:[%s1 + $0x90] sm:$0xff]
  %v41 = vld [vmem:[%s1 + $0x98] sm:$0xff]
  %v42 = vld [vmem:[%s1 + $0xa0] sm:$0xff]
  %v43 = vld [vmem:[%s1 + $0xa8] sm:$0xff]
  %v44 = vld [vmem:[%s1 + $0xb0] sm:$0xff]
  %v45 = vld [vmem:[%s1 + $0xb8] sm:$0xff]
  %v46 = vld [vmem:[%s1 + $0xc0] sm:$0xff]
  %v47 = vld [vmem:[%s1 + $0xc8] sm:$0xff]
  %v48 = vld [vmem:[%s1 + $0xd0] sm:$0xff]
  %v49 = vld [vmem:[%s1 + $0xd8] sm:$0xff]
  %v50 = vld [vmem:[%s1 + $0xe0] sm:$0xff]
  %v51 = vld [vmem:[%s1 + $0xe8] sm:$0xff]
  %v52 = vld [vmem:[%s1 + $0xf0] sm:$0xff]
  %v53 = vld [vmem:[%s1 + $0xf8] sm:$0xff]
  %v54 = vld [vmem:[%s1 + $0x100] sm:$0xff]
  %v55 = vld [vmem:[%s1 + $0x108] sm:$0xff]
  %v56 = vld [vmem:[%s1 + $0x110] sm:$0xff]
  %v57 = vld [vmem:[%s1 + $0x118] sm:$0xff]
  %v58 = vld [vmem:[%s1 + $0x120] sm:$0xff]
  %v59 = vld [vmem:[%s1 + $0x128] sm:$0xff]
  %v60 = vld [vmem:[%s1 + $0x130] sm:$0xff]
  %v61 = vld [vmem:[%s1 + $0x138] sm:$0xff]
  %v62 = vld [vmem:[%s1 + $0x140] sm:$0xff]
  %v63 = vld [vmem:[%s1 + $0x148] sm:$0xff]
  %v64 = vld [vmem:[%s1 + $0x150] sm:$0xff]
  %v65 = vld [vmem:[%s1 + $0x158] sm:$0xff]
  %v66 = vld [vmem:[%s1 + $0x160] sm:$0xff]
  %v67 = vld [vmem:[%s1 + $0x168] sm:$0xff]
  %v68 = vld [vmem:[%s1 + $0x170] sm:$0xff]
  %v69 = vld [vmem:[%s1 + $0x178] sm:$0xff]
  %v70 = vld [vmem:[%s1 + $0x180] sm:$0xff]
  %v71 = vld [vmem:[%s1 + $0x188] sm:$0xff]
  %v72 = vld [vmem:[%s1 + $0x190] sm:$0xff]
  %v73 = vld [vmem:[%s1 + $0x198] sm:$0xff]
  %v74 = vld [vmem:[%s1 + $0x1a0] sm:$0xff]
  %v75 = vld [vmem:[%s1 + $0x1a8] sm:$0xff]
  %v76 = vld [vmem:[%s1 + $0x1b0] sm:$0xff]
  %v77 = vld [vmem:[%s1 + $0x1b8] sm:$0xff]
  %v78 = vld [vmem:[%s1 + $0x1c0] sm:$0xff]
  %v79 = vld [vmem:[%s1 + $0x1c8] sm:$0xff]
  %v80 = vld [vmem:[%s1 + $0x1d0] sm:$0xff]
  %v81 = vld [vmem:[%s1 + $0x1d8] sm:$0xff]
  %v82 = vld [vmem:[%s1 + $0x1e0] sm:$0xff]
  %v83 = vld [vmem:[%s1 + $0x1e8] sm:$0xff]
  %v84 = vld [vmem:[%s1 + $0x1f0] sm:$0xff]
  %v85 = vld [vmem:[%s1 + $0x1f8] sm:$0xff]
  %v86 = vld [vmem:[%s1 + $0x200] sm:$0xff]
  %v87 = vld [vmem:[%s1 + $0x208] sm:$0xff]
  %v88 = vld [vmem:[%s1 + $0x210] sm:$0xff]
  %v89 = vld [vmem:[%s1 + $0x218] sm:$0xff]
  %v90 = vld [vmem:[%s1 + $0x220] sm:$0xff]
  %v91 = vld [vmem:[%s1 + $0x228] sm:$0xff]
  %v92 = vld [vmem:[%s1 + $0x230] sm:$0xff]
  %v93 = vld [vmem:[%s1 + $0x238] sm:$0xff]
  %v94 = vld [vmem:[%s1 + $0x240] sm:$0xff]
  %v95 = vld [vmem:[%s1 + $0x248] sm:$0xff]
  %v96 = vld [vmem:[%s1 + $0x250] sm:$0xff]
  %v97 = vld [vmem:[%s1 + $0x258] sm:$0xff]
  %v98 = vld [vmem:[%s1 + $0x260] sm:$0xff]
  %v99 = vld [vmem:[%s1 + $0x268] sm:$0xff]
  %v100 = vld [vmem:[%s1 + $0x270] sm:$0xff]
  %v101 = vld [vmem:[%s1 + $0x278] sm:$0xff]
  %v102 = vld [vmem:[%s1 + $0x280] sm:$0xff]
  %v103 = vld [vmem:[%s1 + $0x288] sm:$0xff]
  %v104 = vld [vmem:[%s1 + $0x290] sm:$0xff]
  %v105 = vld [vmem:[%s1 + $0x298] sm:$0xff]
  %v106 = vld [vmem:[%s1 + $0x2a0] sm:$0xff]
  %v107 = vld [vmem:[%s1 + $0x2a8] sm:$0xff]
  %v108 = vld [vmem:[%s1 + $0x2b0] sm:$0xff]
  %v109 = vld [vmem:[%s1 + $0x2b8] sm:$0xff]
  %v110 = vld [vmem:[%s1 + $0x2c0] sm:$0xff]
  %v111 = vld [vmem:[%s1 + $0x2c8] sm:$0xff]
  %v112 = vld [vmem:[%s1 + $0x2d0] sm:$0xff]
  %v113 = vld [vmem:[%s1 + $0x2d8] sm:$0xff]
  %v114 = vld [vmem:[%s1 + $0x2e0] sm:$0xff]
  %v115 = vld [vmem:[%s1 + $0x2e8] sm:$0xff]
  %v116 = vld [vmem:[%s1 + $0x2f0] sm:$0xff]
  %v117 = vld [vmem:[%s1 + $0x2f8] sm:$0xff]
  %v118 = vld [vmem:[%s1 + $0x300] sm:$0xff]
  %v119 = vld [vmem:[%s1 + $0x308] sm:$0xff]
  %v120 = vld [vmem:[%s1 + $0x310] sm:$0xff]
  %v121 = vld [vmem:[%s1 + $0x318] sm:$0xff]
  %v122 = vld [vmem:[%s1 + $0x320] sm:$0xff]
  %v123 = vld [vmem:[%s1 + $0x328] sm:$0xff]
  %v124 = vld [vmem:[%s1 + $0x330] sm:$0xff]
  %v125 = vld [vmem:[%s1 + $0x338] sm:$0xff]
  %v126 = vld [vmem:[%s1 + $0x340] sm:$0xff]
  %v127 = vld [vmem:[%s1 + $0x348] sm:$0xff]
  %v128 = vld [vmem:[%s1 + $0x350] sm:$0xff]
  %v129 = vld [vmem:[%s1 + $0x358] sm:$0xff]
  %v130 = vld [vmem:[%s1 + $0x360] sm:$0xff]
  %v131 = vld [vmem:[%s1 + $0x368] sm:$0xff]
  %v132 = vld [vmem:[%s1 + $0x370] sm:$0xff]
  %v133 = vld [vmem:[%s1 + $0x378] sm:$0xff]
  %v134 = vld [vmem:[%s1 + $0x380] sm:$0xff]
  %v135 = vld [vmem:[%s1 + $0x388] sm:$0xff]
  %v136 = vld [vmem:[%s1 + $0x390] sm:$0xff]
  %v137 = vld [vmem:[%s1 + $0x398] sm:$0xff]
  %v138 = vld [vmem:[%s1 + $0x3a0] sm:$0xff]
  %v139 = vld [vmem:[%s1 + $0x3a8] sm:$0xff]
  %v140 = vld [vmem:[%s1 + $0x3b0] sm:$0xff]
  %v141 = vld [vmem:[%s1 + $0x3b8] sm:$0xff]
  %v142 = vld [vmem:[%s1 + $0x3c0] sm:$0xff]
  %v143 = vld [vmem:[%s1 + $0x3c8] sm:$0xff]
  %v144 = vld [vmem:[%s1 + $0x3d0] sm:$0xff]
  %v145 = vld [vmem:[%s1 + $0x3d8] sm:$0xff]
  %v146 = vld [vmem:[%s1 + $0x3e0] sm:$0xff]
  %v147 = vld [vmem:[%s1 + $0x3e8] sm:$0xff]
  %v148 = vld [vmem:[%s1 + $0x3f0] sm:$0xff]
  %v149 = vld [vmem:[%s1 + $0x3f8] sm:$0xff]
  %v150 = vld [vmem:[%s2] sm:$0xff]
  %v152 = vlaneseq
  %v153 = vshrl.u32 %v152, 7
  %v154 = vsub.s32 0, %v153
  %v155 = vrot.slane %v150, %v154
  %v156 = vlaneseq
  %v157 = vshrl.u32 %v156, 7
  %v158 = vsub.s32 1, %v157
  %v159 = vrot.slane %v150, %v158
  %v160 = vlaneseq
  %v161 = vshrl.u32 %v160, 7
  %v162 = vsub.s32 2, %v161
  %v163 = vrot.slane %v150, %v162
  %v164 = vlaneseq
  %v165 = vshrl.u32 %v164, 7
  %v166 = vsub.s32 3, %v165
  %v167 = vrot.slane %v150, %v166
  %v168 = vlaneseq
  %v169 = vshrl.u32 %v168, 7
  %v170 = vsub.s32 4, %v169
  %v171 = vrot.slane %v150, %v170
  %v172 = vlaneseq
  %v173 = vshrl.u32 %v172, 7
  %v174 = vsub.s32 5, %v173
  %v175 = vrot.slane %v150, %v174
  %v176 = vlaneseq
  %v177 = vshrl.u32 %v176, 7
  %v178 = vsub.s32 6, %v177
  %v179 = vrot.slane %v150, %v178
  %v180 = vlaneseq
  %v181 = vshrl.u32 %v180, 7
  %v182 = vsub.s32 7, %v181
  %v183 = vrot.slane %v150, %v182
  %v200 = vunpack.c.l.b16 %v14
  %v201 = vunpack.c.h.b16 %v14
  %v202 = vunpack.c.l.b16 %v15
  %v203 = vunpack.c.h.b16 %v15
  %v204 = vunpack.c.l.b16 %v16
  %v205 = vunpack.c.h.b16 %v16
  %v206 = vunpack.c.l.b16 %v17
  %v207 = vunpack.c.h.b16 %v17
  %v208 = vunpack.c.l.b16 %v18
  %v209 = vunpack.c.h.b16 %v18
  %v210 = vunpack.c.l.b16 %v19
  %v211 = vunpack.c.h.b16 %v19
  %v212 = vunpack.c.l.b16 %v20
  %v213 = vunpack.c.h.b16 %v20
  %v214 = vunpack.c.l.b16 %v21
  %v215 = vunpack.c.h.b16 %v21
  %v216 = vpack.c.b16 %v202, %v200
  %v217 = vpack.c.b16 %v203, %v201
  %v218 = vpack.c.b16 %v206, %v204
  %v219 = vpack.c.b16 %v207, %v205
  %v220 = vpack.c.b16 %v210, %v208
  %v221 = vpack.c.b16 %v211, %v209
  %v222 = vpack.c.b16 %v214, %v212
  %v223 = vpack.c.b16 %v215, %v213
  %v360 = vunpack.c.l.b16 %v22
  %v361 = vunpack.c.h.b16 %v22
  %v362 = vunpack.c.l.b16 %v23
  %v363 = vunpack.c.h.b16 %v23
  %v364 = vunpack.c.l.b16 %v24
  %v365 = vunpack.c.h.b16 %v24
  %v366 = vunpack.c.l.b16 %v25
  %v367 = vunpack.c.h.b16 %v25
  %v368 = vunpack.c.l.b16 %v26
  %v369 = vunpack.c.h.b16 %v26
  %v370 = vunpack.c.l.b16 %v27
  %v371 = vunpack.c.h.b16 %v27
  %v372 = vunpack.c.l.b16 %v28
  %v373 = vunpack.c.h.b16 %v28
  %v374 = vunpack.c.l.b16 %v29
  %v375 = vunpack.c.h.b16 %v29
  %v376 = vunpack.c.l.b16 %v30
  %v377 = vunpack.c.h.b16 %v30
  %v378 = vunpack.c.l.b16 %v31
  %v379 = vunpack.c.h.b16 %v31
  %v380 = vunpack.c.l.b16 %v32
  %v381 = vunpack.c.h.b16 %v32
  %v382 = vunpack.c.l.b16 %v33
  %v383 = vunpack.c.h.b16 %v33
  %v384 = vunpack.c.l.b16 %v34
  %v385 = vunpack.c.h.b16 %v34
  %v386 = vunpack.c.l.b16 %v35
  %v387 = vunpack.c.h.b16 %v35
  %v388 = vunpack.c.l.b16 %v36
  %v389 = vunpack.c.h.b16 %v36
  %v390 = vunpack.c.l.b16 %v37
  %v391 = vunpack.c.h.b16 %v37
  %v392 = vunpack.c.l.b16 %v38
  %v393 = vunpack.c.h.b16 %v38
  %v394 = vunpack.c.l.b16 %v39
  %v395 = vunpack.c.h.b16 %v39
  %v396 = vunpack.c.l.b16 %v40
  %v397 = vunpack.c.h.b16 %v40
  %v398 = vunpack.c.l.b16 %v41
  %v399 = vunpack.c.h.b16 %v41
  %v400 = vunpack.c.l.b16 %v42
  %v401 = vunpack.c.h.b16 %v42
  %v402 = vunpack.c.l.b16 %v43
  %v403 = vunpack.c.h.b16 %v43
  %v404 = vunpack.c.l.b16 %v44
  %v405 = vunpack.c.h.b16 %v44
  %v406 = vunpack.c.l.b16 %v45
  %v407 = vunpack.c.h.b16 %v45
  %v408 = vunpack.c.l.b16 %v46
  %v409 = vunpack.c.h.b16 %v46
  %v410 = vunpack.c.l.b16 %v47
  %v411 = vunpack.c.h.b16 %v47
  %v412 = vunpack.c.l.b16 %v48
  %v413 = vunpack.c.h.b16 %v48
  %v414 = vunpack.c.l.b16 %v49
  %v415 = vunpack.c.h.b16 %v49
  %v416 = vunpack.c.l.b16 %v50
  %v417 = vunpack.c.h.b16 %v50
  %v418 = vunpack.c.l.b16 %v51
  %v419 = vunpack.c.h.b16 %v51
  %v420 = vunpack.c.l.b16 %v52
  %v421 = vunpack.c.h.b16 %v52
  %v422 = vunpack.c.l.b16 %v53
  %v423 = vunpack.c.h.b16 %v53
  %v424 = vunpack.c.l.b16 %v54
  %v425 = vunpack.c.h.b16 %v54
  %v426 = vunpack.c.l.b16 %v55
  %v427 = vunpack.c.h.b16 %v55
  %v428 = vunpack.c.l.b16 %v56
  %v429 = vunpack.c.h.b16 %v56
  %v430 = vunpack.c.l.b16 %v57
  %v431 = vunpack.c.h.b16 %v57
  %v432 = vunpack.c.l.b16 %v58
  %v433 = vunpack.c.h.b16 %v58
  %v434 = vunpack.c.l.b16 %v59
  %v435 = vunpack.c.h.b16 %v59
  %v436 = vunpack.c.l.b16 %v60
  %v437 = vunpack.c.h.b16 %v60
  %v438 = vunpack.c.l.b16 %v61
  %v439 = vunpack.c.h.b16 %v61
  %v440 = vunpack.c.l.b16 %v62
  %v441 = vunpack.c.h.b16 %v62
  %v442 = vunpack.c.l.b16 %v63
  %v443 = vunpack.c.h.b16 %v63
  %v444 = vunpack.c.l.b16 %v64
  %v445 = vunpack.c.h.b16 %v64
  %v446 = vunpack.c.l.b16 %v65
  %v447 = vunpack.c.h.b16 %v65
  %v448 = vunpack.c.l.b16 %v66
  %v449 = vunpack.c.h.b16 %v66
  %v450 = vunpack.c.l.b16 %v67
  %v451 = vunpack.c.h.b16 %v67
  %v452 = vunpack.c.l.b16 %v68
  %v453 = vunpack.c.h.b16 %v68
  %v454 = vunpack.c.l.b16 %v69
  %v455 = vunpack.c.h.b16 %v69
  %v456 = vunpack.c.l.b16 %v70
  %v457 = vunpack.c.h.b16 %v70
  %v458 = vunpack.c.l.b16 %v71
  %v459 = vunpack.c.h.b16 %v71
  %v460 = vunpack.c.l.b16 %v72
  %v461 = vunpack.c.h.b16 %v72
  %v462 = vunpack.c.l.b16 %v73
  %v463 = vunpack.c.h.b16 %v73
  %v464 = vunpack.c.l.b16 %v74
  %v465 = vunpack.c.h.b16 %v74
  %v466 = vunpack.c.l.b16 %v75
  %v467 = vunpack.c.h.b16 %v75
  %v468 = vunpack.c.l.b16 %v76
  %v469 = vunpack.c.h.b16 %v76
  %v470 = vunpack.c.l.b16 %v77
  %v471 = vunpack.c.h.b16 %v77
  %v472 = vunpack.c.l.b16 %v78
  %v473 = vunpack.c.h.b16 %v78
  %v474 = vunpack.c.l.b16 %v79
  %v475 = vunpack.c.h.b16 %v79
  %v476 = vunpack.c.l.b16 %v80
  %v477 = vunpack.c.h.b16 %v80
  %v478 = vunpack.c.l.b16 %v81
  %v479 = vunpack.c.h.b16 %v81
  %v480 = vunpack.c.l.b16 %v82
  %v481 = vunpack.c.h.b16 %v82
  %v482 = vunpack.c.l.b16 %v83
  %v483 = vunpack.c.h.b16 %v83
  %v484 = vunpack.c.l.b16 %v84
  %v485 = vunpack.c.h.b16 %v84
  %v486 = vunpack.c.l.b16 %v85
  %v487 = vunpack.c.h.b16 %v85
  %v488 = vunpack.c.l.b16 %v86
  %v489 = vunpack.c.h.b16 %v86
  %v490 = vunpack.c.l.b16 %v87
  %v491 = vunpack.c.h.b16 %v87
  %v492 = vunpack.c.l.b16 %v88
  %v493 = vunpack.c.h.b16 %v88
  %v494 = vunpack.c.l.b16 %v89
  %v495 = vunpack.c.h.b16 %v89
  %v496 = vunpack.c.l.b16 %v90
  %v497 = vunpack.c.h.b16 %v90
  %v498 = vunpack.c.l.b16 %v91
  %v499 = vunpack.c.h.b16 %v91
  %v500 = vunpack.c.l.b16 %v92
  %v501 = vunpack.c.h.b16 %v92
  %v502 = vunpack.c.l.b16 %v93
  %v503 = vunpack.c.h.b16 %v93
  %v504 = vunpack.c.l.b16 %v94
  %v505 = vunpack.c.h.b16 %v94
  %v506 = vunpack.c.l.b16 %v95
  %v507 = vunpack.c.h.b16 %v95
  %v508 = vunpack.c.l.b16 %v96
  %v509 = vunpack.c.h.b16 %v96
  %v510 = vunpack.c.l.b16 %v97
  %v511 = vunpack.c.h.b16 %v97
  %v512 = vunpack.c.l.b16 %v98
  %v513 = vunpack.c.h.b16 %v98
  %v514 = vunpack.c.l.b16 %v99
  %v515 = vunpack.c.h.b16 %v99
  %v516 = vunpack.c.l.b16 %v100
  %v517 = vunpack.c.h.b16 %v100
  %v518 = vunpack.c.l.b16 %v101
  %v519 = vunpack.c.h.b16 %v101
  %v520 = vunpack.c.l.b16 %v102
  %v521 = vunpack.c.h.b16 %v102
  %v522 = vunpack.c.l.b16 %v103
  %v523 = vunpack.c.h.b16 %v103
  %v524 = vunpack.c.l.b16 %v104
  %v525 = vunpack.c.h.b16 %v104
  %v526 = vunpack.c.l.b16 %v105
  %v527 = vunpack.c.h.b16 %v105
  %v528 = vunpack.c.l.b16 %v106
  %v529 = vunpack.c.h.b16 %v106
  %v530 = vunpack.c.l.b16 %v107
  %v531 = vunpack.c.h.b16 %v107
  %v532 = vunpack.c.l.b16 %v108
  %v533 = vunpack.c.h.b16 %v108
  %v534 = vunpack.c.l.b16 %v109
  %v535 = vunpack.c.h.b16 %v109
  %v536 = vunpack.c.l.b16 %v110
  %v537 = vunpack.c.h.b16 %v110
  %v538 = vunpack.c.l.b16 %v111
  %v539 = vunpack.c.h.b16 %v111
  %v540 = vunpack.c.l.b16 %v112
  %v541 = vunpack.c.h.b16 %v112
  %v542 = vunpack.c.l.b16 %v113
  %v543 = vunpack.c.h.b16 %v113
  %v544 = vunpack.c.l.b16 %v114
  %v545 = vunpack.c.h.b16 %v114
  %v546 = vunpack.c.l.b16 %v115
  %v547 = vunpack.c.h.b16 %v115
  %v548 = vunpack.c.l.b16 %v116
  %v549 = vunpack.c.h.b16 %v116
  %v550 = vunpack.c.l.b16 %v117
  %v551 = vunpack.c.h.b16 %v117
  %v552 = vunpack.c.l.b16 %v118
  %v553 = vunpack.c.h.b16 %v118
  %v554 = vunpack.c.l.b16 %v119
  %v555 = vunpack.c.h.b16 %v119
  %v556 = vunpack.c.l.b16 %v120
  %v557 = vunpack.c.h.b16 %v120
  %v558 = vunpack.c.l.b16 %v121
  %v559 = vunpack.c.h.b16 %v121
  %v560 = vunpack.c.l.b16 %v122
  %v561 = vunpack.c.h.b16 %v122
  %v562 = vunpack.c.l.b16 %v123
  %v563 = vunpack.c.h.b16 %v123
  %v564 = vunpack.c.l.b16 %v124
  %v565 = vunpack.c.h.b16 %v124
  %v566 = vunpack.c.l.b16 %v125
  %v567 = vunpack.c.h.b16 %v125
  %v568 = vunpack.c.l.b16 %v126
  %v569 = vunpack.c.h.b16 %v126
  %v570 = vunpack.c.l.b16 %v127
  %v571 = vunpack.c.h.b16 %v127
  %v572 = vunpack.c.l.b16 %v128
  %v573 = vunpack.c.h.b16 %v128
  %v574 = vunpack.c.l.b16 %v129
  %v575 = vunpack.c.h.b16 %v129
  %v576 = vunpack.c.l.b16 %v130
  %v577 = vunpack.c.h.b16 %v130
  %v578 = vunpack.c.l.b16 %v131
  %v579 = vunpack.c.h.b16 %v131
  %v580 = vunpack.c.l.b16 %v132
  %v581 = vunpack.c.h.b16 %v132
  %v582 = vunpack.c.l.b16 %v133
  %v583 = vunpack.c.h.b16 %v133
  %v584 = vunpack.c.l.b16 %v134
  %v585 = vunpack.c.h.b16 %v134
  %v586 = vunpack.c.l.b16 %v135
  %v587 = vunpack.c.h.b16 %v135
  %v588 = vunpack.c.l.b16 %v136
  %v589 = vunpack.c.h.b16 %v136
  %v590 = vunpack.c.l.b16 %v137
  %v591 = vunpack.c.h.b16 %v137
  %v592 = vunpack.c.l.b16 %v138
  %v593 = vunpack.c.h.b16 %v138
  %v594 = vunpack.c.l.b16 %v139
  %v595 = vunpack.c.h.b16 %v139
  %v596 = vunpack.c.l.b16 %v140
  %v597 = vunpack.c.h.b16 %v140
  %v598 = vunpack.c.l.b16 %v141
  %v599 = vunpack.c.h.b16 %v141
  %v600 = vunpack.c.l.b16 %v142
  %v601 = vunpack.c.h.b16 %v142
  %v602 = vunpack.c.l.b16 %v143
  %v603 = vunpack.c.h.b16 %v143
  %v604 = vunpack.c.l.b16 %v144
  %v605 = vunpack.c.h.b16 %v144
  %v606 = vunpack.c.l.b16 %v145
  %v607 = vunpack.c.h.b16 %v145
  %v608 = vunpack.c.l.b16 %v146
  %v609 = vunpack.c.h.b16 %v146
  %v610 = vunpack.c.l.b16 %v147
  %v611 = vunpack.c.h.b16 %v147
  %v612 = vunpack.c.l.b16 %v148
  %v613 = vunpack.c.h.b16 %v148
  %v614 = vunpack.c.l.b16 %v149
  %v615 = vunpack.c.h.b16 %v149
  %v616 = vpack.c.b16 %v368, %v360
  %v617 = vpack.c.b16 %v369, %v361
  %v618 = vpack.c.b16 %v370, %v362
  %v619 = vpack.c.b16 %v371, %v363
  %v620 = vpack.c.b16 %v372, %v364
  %v621 = vpack.c.b16 %v373, %v365
  %v622 = vpack.c.b16 %v374, %v366
  %v623 = vpack.c.b16 %v375, %v367
  %v624 = vpack.c.b16 %v384, %v376
  %v625 = vpack.c.b16 %v385, %v377
  %v626 = vpack.c.b16 %v386, %v378
  %v627 = vpack.c.b16 %v387, %v379
  %v628 = vpack.c.b16 %v388, %v380
  %v629 = vpack.c.b16 %v389, %v381
  %v630 = vpack.c.b16 %v390, %v382
  %v631 = vpack.c.b16 %v391, %v383
  %v632 = vpack.c.b16 %v400, %v392
  %v633 = vpack.c.b16 %v401, %v393
  %v634 = vpack.c.b16 %v402, %v394
  %v635 = vpack.c.b16 %v403, %v395
  %v636 = vpack.c.b16 %v404, %v396
  %v637 = vpack.c.b16 %v405, %v397
  %v638 = vpack.c.b16 %v406, %v398
  %v639 = vpack.c.b16 %v407, %v399
  %v640 = vpack.c.b16 %v416, %v408
  %v641 = vpack.c.b16 %v417, %v409
  %v642 = vpack.c.b16 %v418, %v410
  %v643 = vpack.c.b16 %v419, %v411
  %v644 = vpack.c.b16 %v420, %v412
  %v645 = vpack.c.b16 %v421, %v413
  %v646 = vpack.c.b16 %v422, %v414
  %v647 = vpack.c.b16 %v423, %v415
  %v648 = vpack.c.b16 %v432, %v424
  %v649 = vpack.c.b16 %v433, %v425
  %v650 = vpack.c.b16 %v434, %v426
  %v651 = vpack.c.b16 %v435, %v427
  %v652 = vpack.c.b16 %v436, %v428
  %v653 = vpack.c.b16 %v437, %v429
  %v654 = vpack.c.b16 %v438, %v430
  %v655 = vpack.c.b16 %v439, %v431
  %v656 = vpack.c.b16 %v448, %v440
  %v657 = vpack.c.b16 %v449, %v441
  %v658 = vpack.c.b16 %v450, %v442
  %v659 = vpack.c.b16 %v451, %v443
  %v660 = vpack.c.b16 %v452, %v444
  %v661 = vpack.c.b16 %v453, %v445
  %v662 = vpack.c.b16 %v454, %v446
  %v663 = vpack.c.b16 %v455, %v447
  %v664 = vpack.c.b16 %v464, %v456
  %v665 = vpack.c.b16 %v465, %v457
  %v666 = vpack.c.b16 %v466, %v458
  %v667 = vpack.c.b16 %v467, %v459
  %v668 = vpack.c.b16 %v468, %v460
  %v669 = vpack.c.b16 %v469, %v461
  %v670 = vpack.c.b16 %v470, %v462
  %v671 = vpack.c.b16 %v471, %v463
  %v672 = vpack.c.b16 %v480, %v472
  %v673 = vpack.c.b16 %v481, %v473
  %v674 = vpack.c.b16 %v482, %v474
  %v675 = vpack.c.b16 %v483, %v475
  %v676 = vpack.c.b16 %v484, %v476
  %v677 = vpack.c.b16 %v485, %v477
  %v678 = vpack.c.b16 %v486, %v478
  %v679 = vpack.c.b16 %v487, %v479
  %v680 = vpack.c.b16 %v496, %v488
  %v681 = vpack.c.b16 %v497, %v489
  %v682 = vpack.c.b16 %v498, %v490
  %v683 = vpack.c.b16 %v499, %v491
  %v684 = vpack.c.b16 %v500, %v492
  %v685 = vpack.c.b16 %v501, %v493
  %v686 = vpack.c.b16 %v502, %v494
  %v687 = vpack.c.b16 %v503, %v495
  %v688 = vpack.c.b16 %v512, %v504
  %v689 = vpack.c.b16 %v513, %v505
  %v690 = vpack.c.b16 %v514, %v506
  %v691 = vpack.c.b16 %v515, %v507
  %v692 = vpack.c.b16 %v516, %v508
  %v693 = vpack.c.b16 %v517, %v509
  %v694 = vpack.c.b16 %v518, %v510
  %v695 = vpack.c.b16 %v519, %v511
  %v696 = vpack.c.b16 %v528, %v520
  %v697 = vpack.c.b16 %v529, %v521
  %v698 = vpack.c.b16 %v530, %v522
  %v699 = vpack.c.b16 %v531, %v523
  %v700 = vpack.c.b16 %v532, %v524
  %v701 = vpack.c.b16 %v533, %v525
  %v702 = vpack.c.b16 %v534, %v526
  %v703 = vpack.c.b16 %v535, %v527
  %v704 = vpack.c.b16 %v544, %v536
  %v705 = vpack.c.b16 %v545, %v537
  %v706 = vpack.c.b16 %v546, %v538
  %v707 = vpack.c.b16 %v547, %v539
  %v708 = vpack.c.b16 %v548, %v540
  %v709 = vpack.c.b16 %v549, %v541
  %v710 = vpack.c.b16 %v550, %v542
  %v711 = vpack.c.b16 %v551, %v543
  %v712 = vpack.c.b16 %v560, %v552
  %v713 = vpack.c.b16 %v561, %v553
  %v714 = vpack.c.b16 %v562, %v554
  %v715 = vpack.c.b16 %v563, %v555
  %v716 = vpack.c.b16 %v564, %v556
  %v717 = vpack.c.b16 %v565, %v557
  %v718 = vpack.c.b16 %v566, %v558
  %v719 = vpack.c.b16 %v567, %v559
  %v720 = vpack.c.b16 %v576, %v568
  %v721 = vpack.c.b16 %v577, %v569
  %v722 = vpack.c.b16 %v578, %v570
  %v723 = vpack.c.b16 %v579, %v571
  %v724 = vpack.c.b16 %v580, %v572
  %v725 = vpack.c.b16 %v581, %v573
  %v726 = vpack.c.b16 %v582, %v574
  %v727 = vpack.c.b16 %v583, %v575
  %v728 = vpack.c.b16 %v592, %v584
  %v729 = vpack.c.b16 %v593, %v585
  %v730 = vpack.c.b16 %v594, %v586
  %v731 = vpack.c.b16 %v595, %v587
  %v732 = vpack.c.b16 %v596, %v588
  %v733 = vpack.c.b16 %v597, %v589
  %v734 = vpack.c.b16 %v598, %v590
  %v735 = vpack.c.b16 %v599, %v591
  %v736 = vpack.c.b16 %v608, %v600
  %v737 = vpack.c.b16 %v609, %v601
  %v738 = vpack.c.b16 %v610, %v602
  %v739 = vpack.c.b16 %v611, %v603
  %v740 = vpack.c.b16 %v612, %v604
  %v741 = vpack.c.b16 %v613, %v605
  %v742 = vpack.c.b16 %v614, %v606
  %v743 = vpack.c.b16 %v615, %v607
  %872 = vmatprep.subr.bf16.mxu0 %v617
  %873 = vmatpush1.bf16.msra.mxu0 %v616
  %874 = vmatprep.subr.bf16.mxu0 %v625
  %875 = vmatpush1.bf16.msra.mxu0 %v624
  %876 = vmatprep.subr.bf16.mxu0 %v633
  %877 = vmatpush1.bf16.msra.mxu0 %v632
  %878 = vmatprep.subr.bf16.mxu0 %v641
  %879 = vmatpush1.bf16.msra.mxu0 %v640
  %880 = vmatprep.subr.bf16.mxu0 %v649
  %881 = vmatpush1.bf16.msra.mxu0 %v648
  %882 = vmatprep.subr.bf16.mxu0 %v657
  %883 = vmatpush1.bf16.msra.mxu0 %v656
  %884 = vmatprep.subr.bf16.mxu0 %v665
  %885 = vmatpush1.bf16.msra.mxu0 %v664
  %886 = vmatprep.subr.bf16.mxu0 %v673
  %887 = vmatpush1.bf16.msra.mxu0 %v672
  %888 = vmatprep.subr.bf16.mxu0 %v681
  %889 = vmatpush1.bf16.msra.mxu0 %v680
  %890 = vmatprep.subr.bf16.mxu0 %v689
  %891 = vmatpush1.bf16.msra.mxu0 %v688
  %892 = vmatprep.subr.bf16.mxu0 %v697
  %893 = vmatpush1.bf16.msra.mxu0 %v696
  %894 = vmatprep.subr.bf16.mxu0 %v705
  %895 = vmatpush1.bf16.msra.mxu0 %v704
  %896 = vmatprep.subr.bf16.mxu0 %v713
  %897 = vmatpush1.bf16.msra.mxu0 %v712
  %898 = vmatprep.subr.bf16.mxu0 %v721
  %899 = vmatpush1.bf16.msra.mxu0 %v720
  %900 = vmatprep.subr.bf16.mxu0 %v729
  %901 = vmatpush1.bf16.msra.mxu0 %v728
  %902 = vmatprep.subr.bf16.mxu0 %v737
  %903 = vmatpush1.bf16.msra.mxu0 %v736
  %904 = vmatprep.mubr.bf16.mxu0 %v217
  %905 = vmatmul.mubr.bf16.gmra.mrb[0].mxu0 %v216
  %v906 = vpop.f32.mrb[0].mxu0
  %v907 = vadd.f32 %v155, %v906
  %v908 = vpop.f32.mrb[0].mxu0
  %v909 = vadd.f32 %v159, %v908
  %v910 = vpop.f32.mrb[0].mxu0
  %v911 = vadd.f32 %v155, %v910
  %v912 = vpop.f32.mrb[0].mxu0
  %v913 = vadd.f32 %v159, %v912
  %914 = vmatprep.mubr.bf16.mxu0 %v219
  %915 = vmatmul.mubr.bf16.gmra.mrb[0].mxu0 %v218
  %v916 = vpop.f32.mrb[0].mxu0
  %v917 = vadd.f32 %v155, %v916
  %v918 = vpop.f32.mrb[0].mxu0
  %v919 = vadd.f32 %v159, %v918
  %v920 = vpop.f32.mrb[0].mxu0
  %v921 = vadd.f32 %v155, %v920
  %v922 = vpop.f32.mrb[0].mxu0
  %v923 = vadd.f32 %v159, %v922
  %924 = vmatprep.mubr.bf16.mxu0 %v221
  %925 = vmatmul.mubr.bf16.gmra.mrb[0].mxu0 %v220
  %v926 = vpop.f32.mrb[0].mxu0
  %v927 = vadd.f32 %v155, %v926
  %v928 = vpop.f32.mrb[0].mxu0
  %v929 = vadd.f32 %v159, %v928
  %v930 = vpop.f32.mrb[0].mxu0
  %v931 = vadd.f32 %v155, %v930
  %v932 = vpop.f32.mrb[0].mxu0
  %v933 = vadd.f32 %v159, %v932
  %934 = vmatprep.mubr.bf16.mxu0 %v223
  %935 = vmatmul.mubr.bf16.gmra.mrb[0].mxu0 %v222
  %v936 = vpop.f32.mrb[0].mxu0
  %v937 = vadd.f32 %v155, %v936
  %v938 = vpop.f32.mrb[0].mxu0
  %v939 = vadd.f32 %v159, %v938
  %v940 = vpop.f32.mrb[0].mxu0
  %v941 = vadd.f32 %v155, %v940
  %v942 = vpop.f32.mrb[0].mxu0
  %v943 = vadd.f32 %v159, %v942
  %944 = vdwg.mxu0
  %945 = vmatprep.subr.bf16.mxu0 %v619
  %946 = vmatpush1.bf16.msra.mxu0 %v618
  %947 = vmatprep.subr.bf16.mxu0 %v627
  %948 = vmatpush1.bf16.msra.mxu0 %v626
  %949 = vmatprep.subr.bf16.mxu0 %v635
  %950 = vmatpush1.bf16.msra.mxu0 %v634
  %951 = vmatprep.subr.bf16.mxu0 %v643
  %952 = vmatpush1.bf16.msra.mxu0 %v642
  %953 = vmatprep.subr.bf16.mxu0 %v651
  %954 = vmatpush1.bf16.msra.mxu0 %v650
  %955 = vmatprep.subr.bf16.mxu0 %v659
  %956 = vmatpush1.bf16.msra.mxu0 %v658
  %957 = vmatprep.subr.bf16.mxu0 %v667
  %958 = vmatpush1.bf16.msra.mxu0 %v666
  %959 = vmatprep.subr.bf16.mxu0 %v675
  %960 = vmatpush1.bf16.msra.mxu0 %v674
  %961 = vmatprep.subr.bf16.mxu0 %v683
  %962 = vmatpush1.bf16.msra.mxu0 %v682
  %963 = vmatprep.subr.bf16.mxu0 %v691
  %964 = vmatpush1.bf16.msra.mxu0 %v690
  %965 = vmatprep.subr.bf16.mxu0 %v699
  %966 = vmatpush1.bf16.msra.mxu0 %v698
  %967 = vmatprep.subr.bf16.mxu0 %v707
  %968 = vmatpush1.bf16.msra.mxu0 %v706
  %969 = vmatprep.subr.bf16.mxu0 %v715
  %970 = vmatpush1.bf16.msra.mxu0 %v714
  %971 = vmatprep.subr.bf16.mxu0 %v723
  %972 = vmatpush1.bf16.msra.mxu0 %v722
  %973 = vmatprep.subr.bf16.mxu0 %v731
  %974 = vmatpush1.bf16.msra.mxu0 %v730
  %975 = vmatprep.subr.bf16.mxu0 %v739
  %976 = vmatpush1.bf16.msra.mxu0 %v738
  %977 = vmatprep.mubr.bf16.mxu0 %v217
  %978 = vmatmul.mubr.bf16.gmra.mrb[0].mxu0 %v216
  %v979 = vpop.f32.mrb[0].mxu0
  %v980 = vadd.f32 %v163, %v979
  %v981 = vpop.f32.mrb[0].mxu0
  %v982 = vadd.f32 %v167, %v981
  %v983 = vpop.f32.mrb[0].mxu0
  %v984 = vadd.f32 %v163, %v983
  %v985 = vpop.f32.mrb[0].mxu0
  %v986 = vadd.f32 %v167, %v985
  %987 = vmatprep.mubr.bf16.mxu0 %v219
  %988 = vmatmul.mubr.bf16.gmra.mrb[0].mxu0 %v218
  %v989 = vpop.f32.mrb[0].mxu0
  %v990 = vadd.f32 %v163, %v989
  %v991 = vpop.f32.mrb[0].mxu0
  %v992 = vadd.f32 %v167, %v991
  %v993 = vpop.f32.mrb[0].mxu0
  %v994 = vadd.f32 %v163, %v993
  %v995 = vpop.f32.mrb[0].mxu0
  %v996 = vadd.f32 %v167, %v995
  %997 = vmatprep.mubr.bf16.mxu0 %v221
  %998 = vmatmul.mubr.bf16.gmra.mrb[0].mxu0 %v220
  %v999 = vpop.f32.mrb[0].mxu0
  %v1000 = vadd.f32 %v163, %v999
  %v1001 = vpop.f32.mrb[0].mxu0
  %v1002 = vadd.f32 %v167, %v1001
  %v1003 = vpop.f32.mrb[0].mxu0
  %v1004 = vadd.f32 %v163, %v1003
  %v1005 = vpop.f32.mrb[0].mxu0
  %v1006 = vadd.f32 %v167, %v1005
  %1007 = vmatprep.mubr.bf16.mxu0 %v223
  %1008 = vmatmul.mubr.bf16.gmra.mrb[0].mxu0 %v222
  %v1009 = vpop.f32.mrb[0].mxu0
  %v1010 = vadd.f32 %v163, %v1009
  %v1011 = vpop.f32.mrb[0].mxu0
  %v1012 = vadd.f32 %v167, %v1011
  %v1013 = vpop.f32.mrb[0].mxu0
  %v1014 = vadd.f32 %v163, %v1013
  %v1015 = vpop.f32.mrb[0].mxu0
  %v1016 = vadd.f32 %v167, %v1015
  %1017 = vdwg.mxu0
  %1018 = vmatprep.subr.bf16.mxu0 %v621
  %1019 = vmatpush1.bf16.msra.mxu0 %v620
  %1020 = vmatprep.subr.bf16.mxu0 %v629
  %1021 = vmatpush1.bf16.msra.mxu0 %v628
  %1022 = vmatprep.subr.bf16.mxu0 %v637
  %1023 = vmatpush1.bf16.msra.mxu0 %v636
  %1024 = vmatprep.subr.bf16.mxu0 %v645
  %1025 = vmatpush1.bf16.msra.mxu0 %v644
  %1026 = vmatprep.subr.bf16.mxu0 %v653
  %1027 = vmatpush1.bf16.msra.mxu0 %v652
  %1028 = vmatprep.subr.bf16.mxu0 %v661
  %1029 = vmatpush1.bf16.msra.mxu0 %v660
  %1030 = vmatprep.subr.bf16.mxu0 %v669
  %1031 = vmatpush1.bf16.msra.mxu0 %v668
  %1032 = vmatprep.subr.bf16.mxu0 %v677
  %1033 = vmatpush1.bf16.msra.mxu0 %v676
  %1034 = vmatprep.subr.bf16.mxu0 %v685
  %1035 = vmatpush1.bf16.msra.mxu0 %v684
  %1036 = vmatprep.subr.bf16.mxu0 %v693
  %1037 = vmatpush1.bf16.msra.mxu0 %v692
  %1038 = vmatprep.subr.bf16.mxu0 %v701
  %1039 = vmatpush1.bf16.msra.mxu0 %v700
  %1040 = vmatprep.subr.bf16.mxu0 %v709
  %1041 = vmatpush1.bf16.msra.mxu0 %v708
  %1042 = vmatprep.subr.bf16.mxu0 %v717
  %1043 = vmatpush1.bf16.msra.mxu0 %v716
  %1044 = vmatprep.subr.bf16.mxu0 %v725
  %1045 = vmatpush1.bf16.msra.mxu0 %v724
  %1046 = vmatprep.subr.bf16.mxu0 %v733
  %1047 = vmatpush1.bf16.msra.mxu0 %v732
  %1048 = vmatprep.subr.bf16.mxu0 %v741
  %1049 = vmatpush1.bf16.msra.mxu0 %v740
  %1050 = vmatprep.mubr.bf16.mxu0 %v217
  %1051 = vmatmul.mubr.bf16.gmra.mrb[0].mxu0 %v216
  %v1052 = vpop.f32.mrb[0].mxu0
  %v1053 = vadd.f32 %v171, %v1052
  %v1054 = vpop.f32.mrb[0].mxu0
  %v1055 = vadd.f32 %v175, %v1054
  %v1056 = vpop.f32.mrb[0].mxu0
  %v1057 = vadd.f32 %v171, %v1056
  %v1058 = vpop.f32.mrb[0].mxu0
  %v1059 = vadd.f32 %v175, %v1058
  %1060 = vmatprep.mubr.bf16.mxu0 %v219
  %1061 = vmatmul.mubr.bf16.gmra.mrb[0].mxu0 %v218
  %v1062 = vpop.f32.mrb[0].mxu0
  %v1063 = vadd.f32 %v171, %v1062
  %v1064 = vpop.f32.mrb[0].mxu0
  %v1065 = vadd.f32 %v175, %v1064
  %v1066 = vpop.f32.mrb[0].mxu0
  %v1067 = vadd.f32 %v171, %v1066
  %v1068 = vpop.f32.mrb[0].mxu0
  %v1069 = vadd.f32 %v175, %v1068
  %1070 = vmatprep.mubr.bf16.mxu0 %v221
  %1071 = vmatmul.mubr.bf16.gmra.mrb[0].mxu0 %v220
  %v1072 = vpop.f32.mrb[0].mxu0
  %v1073 = vadd.f32 %v171, %v1072
  %v1074 = vpop.f32.mrb[0].mxu0
  %v1075 = vadd.f32 %v175, %v1074
  %v1076 = vpop.f32.mrb[0].mxu0
  %v1077 = vadd.f32 %v171, %v1076
  %v1078 = vpop.f32.mrb[0].mxu0
  %v1079 = vadd.f32 %v175, %v1078
  %1080 = vmatprep.mubr.bf16.mxu0 %v223
  %1081 = vmatmul.mubr.bf16.gmra.mrb[0].mxu0 %v222
  %v1082 = vpop.f32.mrb[0].mxu0
  %v1083 = vadd.f32 %v171, %v1082
  %v1084 = vpop.f32.mrb[0].mxu0
  %v1085 = vadd.f32 %v175, %v1084
  %v1086 = vpop.f32.mrb[0].mxu0
  %v1087 = vadd.f32 %v171, %v1086
  %v1088 = vpop.f32.mrb[0].mxu0
  %v1089 = vadd.f32 %v175, %v1088
  %1090 = vdwg.mxu0
  %1091 = vmatprep.subr.bf16.mxu0 %v623
  %1092 = vmatpush1.bf16.msra.mxu0 %v622
  %1093 = vmatprep.subr.bf16.mxu0 %v631
  %1094 = vmatpush1.bf16.msra.mxu0 %v630
  %1095 = vmatprep.subr.bf16.mxu0 %v639
  %1096 = vmatpush1.bf16.msra.mxu0 %v638
  %1097 = vmatprep.subr.bf16.mxu0 %v647
  %1098 = vmatpush1.bf16.msra.mxu0 %v646
  %1099 = vmatprep.subr.bf16.mxu0 %v655
  %1100 = vmatpush1.bf16.msra.mxu0 %v654
  %1101 = vmatprep.subr.bf16.mxu0 %v663
  %1102 = vmatpush1.bf16.msra.mxu0 %v662
  %1103 = vmatprep.subr.bf16.mxu0 %v671
  %1104 = vmatpush1.bf16.msra.mxu0 %v670
  %1105 = vmatprep.subr.bf16.mxu0 %v679
  %1106 = vmatpush1.bf16.msra.mxu0 %v678
  %1107 = vmatprep.subr.bf16.mxu0 %v687
  %1108 = vmatpush1.bf16.msra.mxu0 %v686
  %1109 = vmatprep.subr.bf16.mxu0 %v695
  %1110 = vmatpush1.bf16.msra.mxu0 %v694
  %1111 = vmatprep.subr.bf16.mxu0 %v703
  %1112 = vmatpush1.bf16.msra.mxu0 %v702
  %1113 = vmatprep.subr.bf16.mxu0 %v711
  %1114 = vmatpush1.bf16.msra.mxu0 %v710
  %1115 = vmatprep.subr.bf16.mxu0 %v719
  %1116 = vmatpush1.bf16.msra.mxu0 %v718
  %1117 = vmatprep.subr.bf16.mxu0 %v727
  %1118 = vmatpush1.bf16.msra.mxu0 %v726
  %1119 = vmatprep.subr.bf16.mxu0 %v735
  %1120 = vmatpush1.bf16.msra.mxu0 %v734
  %1121 = vmatprep.subr.bf16.mxu0 %v743
  %1122 = vmatpush1.bf16.msra.mxu0 %v742
  %1123 = vmatprep.mubr.bf16.mxu0 %v217
  %1124 = vmatmul.mubr.bf16.gmra.mrb[0].mxu0 %v216
  %v1125 = vpop.f32.mrb[0].mxu0
  %v1126 = vadd.f32 %v179, %v1125
  %v1127 = vpop.f32.mrb[0].mxu0
  %v1128 = vadd.f32 %v183, %v1127
  %v1129 = vpop.f32.mrb[0].mxu0
  %v1130 = vadd.f32 %v179, %v1129
  %v1131 = vpop.f32.mrb[0].mxu0
  %v1132 = vadd.f32 %v183, %v1131
  %1133 = vmatprep.mubr.bf16.mxu0 %v219
  %1134 = vmatmul.mubr.bf16.gmra.mrb[0].mxu0 %v218
  %v1135 = vpop.f32.mrb[0].mxu0
  %v1136 = vadd.f32 %v179, %v1135
  %v1137 = vpop.f32.mrb[0].mxu0
  %v1138 = vadd.f32 %v183, %v1137
  %v1139 = vpop.f32.mrb[0].mxu0
  %v1140 = vadd.f32 %v179, %v1139
  %v1141 = vpop.f32.mrb[0].mxu0
  %v1142 = vadd.f32 %v183, %v1141
  %1143 = vmatprep.mubr.bf16.mxu0 %v221
  %1144 = vmatmul.mubr.bf16.gmra.mrb[0].mxu0 %v220
  %v1145 = vpop.f32.mrb[0].mxu0
  %v1146 = vadd.f32 %v179, %v1145
  %v1147 = vpop.f32.mrb[0].mxu0
  %v1148 = vadd.f32 %v183, %v1147
  %v1149 = vpop.f32.mrb[0].mxu0
  %v1150 = vadd.f32 %v179, %v1149
  %v1151 = vpop.f32.mrb[0].mxu0
  %v1152 = vadd.f32 %v183, %v1151
  %1153 = vmatprep.mubr.bf16.mxu0 %v223
  %1154 = vmatmul.mubr.bf16.gmra.mrb[0].mxu0 %v222
  %v1155 = vpop.f32.mrb[0].mxu0
  %v1156 = vadd.f32 %v179, %v1155
  %v1157 = vpop.f32.mrb[0].mxu0
  %v1158 = vadd.f32 %v183, %v1157
  %v1159 = vpop.f32.mrb[0].mxu0
  %v1160 = vadd.f32 %v179, %v1159
  %v1161 = vpop.f32.mrb[0].mxu0
  %v1162 = vadd.f32 %v183, %v1161
  %1163 = vdwg.mxu0
  %1164 = vst [vmem:[%s3] sm:$0xff] %v907
  %1165 = vst [vmem:[%s3 + $0x8] sm:$0xff] %v909
  %1166 = vst [vmem:[%s3 + $0x10] sm:$0xff] %v980
  %1167 = vst [vmem:[%s3 + $0x18] sm:$0xff] %v982
  %1168 = vst [vmem:[%s3 + $0x20] sm:$0xff] %v1053
  %1169 = vst [vmem:[%s3 + $0x28] sm:$0xff] %v1055
  %1170 = vst [vmem:[%s3 + $0x30] sm:$0xff] %v1126
  %1171 = vst [vmem:[%s3 + $0x38] sm:$0xff] %v1128
  %1172 = vst [vmem:[%s3 + $0x40] sm:$0xff] %v911
  %1173 = vst [vmem:[%s3 + $0x48] sm:$0xff] %v913
  %1174 = vst [vmem:[%s3 + $0x50] sm:$0xff] %v984
  %1175 = vst [vmem:[%s3 + $0x58] sm:$0xff] %v986
  %1176 = vst [vmem:[%s3 + $0x60] sm:$0xff] %v1057
  %1177 = vst [vmem:[%s3 + $0x68] sm:$0xff] %v1059
  %1178 = vst [vmem:[%s3 + $0x70] sm:$0xff] %v1130
  %1179 = vst [vmem:[%s3 + $0x78] sm:$0xff] %v1132
  %1180 = vst [vmem:[%s3 + $0x80] sm:$0xff] %v917
  %1181 = vst [vmem:[%s3 + $0x88] sm:$0xff] %v919
  %1182 = vst [vmem:[%s3 + $0x90] sm:$0xff] %v990
  %1183 = vst [vmem:[%s3 + $0x98] sm:$0xff] %v992
  %1184 = vst [vmem:[%s3 + $0xa0] sm:$0xff] %v1063
  %1185 = vst [vmem:[%s3 + $0xa8] sm:$0xff] %v1065
  %1186 = vst [vmem:[%s3 + $0xb0] sm:$0xff] %v1136
  %1187 = vst [vmem:[%s3 + $0xb8] sm:$0xff] %v1138
  %1188 = vst [vmem:[%s3 + $0xc0] sm:$0xff] %v921
  %1189 = vst [vmem:[%s3 + $0xc8] sm:$0xff] %v923
  %1190 = vst [vmem:[%s3 + $0xd0] sm:$0xff] %v994
  %1191 = vst [vmem:[%s3 + $0xd8] sm:$0xff] %v996
  %1192 = vst [vmem:[%s3 + $0xe0] sm:$0xff] %v1067
  %1193 = vst [vmem:[%s3 + $0xe8] sm:$0xff] %v1069
  %1194 = vst [vmem:[%s3 + $0xf0] sm:$0xff] %v1140
  %1195 = vst [vmem:[%s3 + $0xf8] sm:$0xff] %v1142
  %1196 = vst [vmem:[%s3 + $0x100] sm:$0xff] %v927
  %1197 = vst [vmem:[%s3 + $0x108] sm:$0xff] %v929
  %1198 = vst [vmem:[%s3 + $0x110] sm:$0xff] %v1000
  %1199 = vst [vmem:[%s3 + $0x118] sm:$0xff] %v1002
  %1200 = vst [vmem:[%s3 + $0x120] sm:$0xff] %v1073
  %1201 = vst [vmem:[%s3 + $0x128] sm:$0xff] %v1075
  %1202 = vst [vmem:[%s3 + $0x130] sm:$0xff] %v1146
  %1203 = vst [vmem:[%s3 + $0x138] sm:$0xff] %v1148
  %1204 = vst [vmem:[%s3 + $0x140] sm:$0xff] %v931
  %1205 = vst [vmem:[%s3 + $0x148] sm:$0xff] %v933
  %1206 = vst [vmem:[%s3 + $0x150] sm:$0xff] %v1004
  %1207 = vst [vmem:[%s3 + $0x158] sm:$0xff] %v1006
  %1208 = vst [vmem:[%s3 + $0x160] sm:$0xff] %v1077
  %1209 = vst [vmem:[%s3 + $0x168] sm:$0xff] %v1079
  %1210 = vst [vmem:[%s3 + $0x170] sm:$0xff] %v1150
  %1211 = vst [vmem:[%s3 + $0x178] sm:$0xff] %v1152
  %1212 = vst [vmem:[%s3 + $0x180] sm:$0xff] %v937
  %1213 = vst [vmem:[%s3 + $0x188] sm:$0xff] %v939
  %1214 = vst [vmem:[%s3 + $0x190] sm:$0xff] %v1010
  %1215 = vst [vmem:[%s3 + $0x198] sm:$0xff] %v1012
  %1216 = vst [vmem:[%s3 + $0x1a0] sm:$0xff] %v1083
  %1217 = vst [vmem:[%s3 + $0x1a8] sm:$0xff] %v1085
  %1218 = vst [vmem:[%s3 + $0x1b0] sm:$0xff] %v1156
  %1219 = vst [vmem:[%s3 + $0x1b8] sm:$0xff] %v1158
  %1220 = vst [vmem:[%s3 + $0x1c0] sm:$0xff] %v941
  %1221 = vst [vmem:[%s3 + $0x1c8] sm:$0xff] %v943
  %1222 = vst [vmem:[%s3 + $0x1d0] sm:$0xff] %v1014
  %1223 = vst [vmem:[%s3 + $0x1d8] sm:$0xff] %v1016
  %1224 = vst [vmem:[%s3 + $0x1e0] sm:$0xff] %v1087
  %1225 = vst [vmem:[%s3 + $0x1e8] sm:$0xff] %v1089
  %1226 = vst [vmem:[%s3 + $0x1f0] sm:$0xff] %v1160
  %1227 = vst [vmem:[%s3 + $0x1f8] sm:$0xff] %v1162
  // Predicated region
  $region14: #{encoder_forward.7} parent=0 // pred_check
    _
  $region15: #{encoder_forward.7} parent=0 // pred_check_branch
    %1229 = sbr.rel (0) target = $region17
  $region16: #{encoder_forward.7} parent=0 // pred_region
    _
  $region17: #{encoder_forward.7} parent=0 // pred_fallthru
    _
  // Predicated region
  $region18: #{encoder_forward.7} parent=0 // pred_check
    _
  $region19: #{encoder_forward.7} parent=0 // pred_check_branch
    %1231 = sbr.rel (0) target = $region21
  $region20: #{encoder_forward.7} parent=0 // pred_region
    _
  $region21: #{encoder_forward.7} parent=0 // pred_fallthru
    _

// kernel: encoder_forward.6
$region0: #{encoder_forward.6}
  #allocation0 [shape = 'u32[]', space=smem, size = 0x4, offset = 0x4, fixed_abs, tag = 'smem constant byte address 0x4 - core index']
  #allocation1 [shape = 'u32[144,128]{1,0:T(1,128)}', space=vmem, size = 0x12000, scoped, tag = 'internal scratch']
  #allocation2 [shape = 'f32[4,128]{1,0:T(4,128)}', space=vmem, size = 0x800, scoped, tag = 'scratch operand']
  #allocation3 [shape = 'f32[4,128]{1,0:T(4,128)}', space=vmem, size = 0x800, scoped, tag = 'scratch operand']
  %s0 = inlined_call_operand.vmem [shape: f32[16,4,1024], index: 0, kind: input, shape index: {}]
  %s1 = inlined_call_operand.vmem [shape: f32[16,4,1], index: 1, kind: input, shape index: {}]
  %s2 = inlined_call_operand.vmem [shape: bf16[2,128,512], index: 2, kind: input, shape index: {}]
  %s3 = inlined_call_operand.vmem [shape: f32[16,4,256], index: 3, kind: output, shape index: {}]
  %s4 = sld [smem:[#allocation0]]
  $region109: #{encoder_forward.6} parent=0
    _
  %s6 = ssub.s32 1, %s4
  %s7 = scalar_select 0, %s6, %s4
  $region1: #{encoder_forward.6} parent=0
    #allocation4 [shape = 'u8[131072]{0}', space=vmem, size = 0x20000, scoped, tag = 'input window, operand 0']
    #allocation5 [shape = 'u8[32768]{0}', space=vmem, size = 0x8000, scoped, tag = 'output window, operand 0']
    loop: start=0, step=1, limit=6
    $region2: #{encoder_forward.6} parent=1 // loop_pre_header
      _
    $region3: #{encoder_forward.6} parent=1 // loop_header
      %s9 = sphi 0, %s13
      %p10 = scmp.ge.s32.totalorder %s9, 6
      %s16 = sphi 0, %s28
      %s17 = sphi 0, %s24
      %s18 = sphi 0, %s16
      %s19 = sphi 0, %s17
      %s20 = sphi 0, %s18
      %s21 = sphi 0, %s19
      %s41 = sphi 0, %s43
      %s44 = sphi 0, %s41
      %s45 = sphi 0, %s44
      %s61 = sphi 0, %s45
      %s75 = sphi 0, %s77
      %s78 = sphi 0, %s75
      %s79 = sphi 0, %s78
      %s95 = sphi 0, %s79
      %s101 = sphi 0, %s103
      %s104 = sphi 0, %s101
      %s105 = sphi 0, %s104
      %s121 = sphi 0, %s105
      %s137 = sphi 0, %s139
      %s140 = sphi 0, %s137
      %s141 = sphi 0, %s140
      %s157 = sphi 0, %s141
    $region4: #{encoder_forward.6} parent=1 // loop_header_branch
      %12 = sbr.rel (%p10) target = $region8
    $region5: #{encoder_forward.6} parent=1 // loop_body
      %s14 = ssub.s32 %s9, 1
      %s15 = ssub.s32 %s9, 2
      %s22 = sadd.s32 1, %s17
      %p23 = scmp.ge.s32.totalorder %s22, 2
      %s24 = scalar_select %p23, 0, %s22
      %s25 = sadd.s32 1, %s16
      %s26 = scalar_select %p23, %s25, %s16
      %p27 = scmp.ge.s32.totalorder %s26, 2
      %s28 = scalar_select %p27, 0, %s26
      %s29 = smul.u32 %s17, 2
      %s30 = ssub.s32 1, %s29
      %s31 = smul.u32 %s16, %s30
      %s32 = sadd.s32 %s17, %s31
      %s33 = smul.u32 %s24, 2
      %s34 = ssub.s32 1, %s33
      %s35 = smul.u32 %s28, %s34
      %s36 = sadd.s32 %s24, %s35
      %s37 = ssub.s32 %s32, %s36
      %s38 = ssub.s32 %s16, %s28
      %s39 = sor.u32 %s37, %s38
      %p40 = scmp.eq.s32.totalorder %s39, 0
      %s42 = sadd.s32 %s41, 1
      %s43 = scalar_select %p40, %s41, %s42
      %p46 = pneg %p40
      %p47 = scmp.eq.s32.totalorder %s9, 3
      %p48 = por %p46, %p47
      %p49 = scmp.ne.s32.totalorder %s41, %s44
      %p50 = scmp.eq.s32.totalorder %s9, 0
      %p51 = por %p49, %p50
      %p52 = scmp.ne.s32.totalorder %s41, %s44
      %p53 = scmp.eq.s32.totalorder %s14, 3
      %p54 = por %p52, %p53
      %p55 = scmp.ne.s32.totalorder %s44, %s45
      %p56 = scmp.eq.s32.totalorder %s14, 0
      %p57 = por %p55, %p56
      %p58 = scmp.ne.s32.totalorder %s44, %s45
      %p59 = scmp.eq.s32.totalorder %s15, 3
      %p60 = por %p58, %p59
      %p62 = scmp.ne.s32.totalorder %s45, %s61
      %p63 = scmp.eq.s32.totalorder %s15, 0
      %p64 = por %p62, %p63
      %s65 = smul.u32 %s17, 2
      %s66 = ssub.s32 1, %s65
      %s67 = smul.u32 %s16, %s66
      %s68 = sadd.s32 %s17, %s67
      %s69 = smul.u32 %s24, 2
      %s70 = ssub.s32 1, %s69
      %s71 = smul.u32 %s28, %s70
      %s72 = sadd.s32 %s24, %s71
      %s73 = ssub.s32 %s68, %s72
      %p74 = scmp.eq.s32.totalorder %s73, 0
      %s76 = sadd.s32 %s75, 1
      %s77 = scalar_select %p74, %s75, %s76
      %p80 = pneg %p74
      %p81 = scmp.eq.s32.totalorder %s9, 3
      %p82 = por %p80, %p81
      %p83 = scmp.ne.s32.totalorder %s75, %s78
      %p84 = scmp.eq.s32.totalorder %s9, 0
      %p85 = por %p83, %p84
      %p86 = scmp.ne.s32.totalorder %s75, %s78
      %p87 = scmp.eq.s32.totalorder %s14, 3
      %p88 = por %p86, %p87
      %p89 = scmp.ne.s32.totalorder %s78, %s79
      %p90 = scmp.eq.s32.totalorder %s14, 0
      %p91 = por %p89, %p90
      %p92 = scmp.ne.s32.totalorder %s78, %s79
      %p93 = scmp.eq.s32.totalorder %s15, 3
      %p94 = por %p92, %p93
      %p96 = scmp.ne.s32.totalorder %s79, %s95
      %p97 = scmp.eq.s32.totalorder %s15, 0
      %p98 = por %p96, %p97
      %s99 = ssub.s32 %s16, %s28
      %p100 = scmp.eq.s32.totalorder %s99, 0
      %s102 = sadd.s32 %s101, 1
      %s103 = scalar_select %p100, %s101, %s102
      %p106 = pneg %p100
      %p107 = scmp.eq.s32.totalorder %s9, 3
      %p108 = por %p106, %p107
      %p109 = scmp.ne.s32.totalorder %s101, %s104
      %p110 = scmp.eq.s32.totalorder %s9, 0
      %p111 = por %p109, %p110
      %p112 = scmp.ne.s32.totalorder %s101, %s104
      %p113 = scmp.eq.s32.totalorder %s14, 3
      %p114 = por %p112, %p113
      %p115 = scmp.ne.s32.totalorder %s104, %s105
      %p116 = scmp.eq.s32.totalorder %s14, 0
      %p117 = por %p115, %p116
      %p118 = scmp.ne.s32.totalorder %s104, %s105
      %p119 = scmp.eq.s32.totalorder %s15, 3
      %p120 = por %p118, %p119
      %p122 = scmp.ne.s32.totalorder %s105, %s121
      %p123 = scmp.eq.s32.totalorder %s15, 0
      %p124 = por %p122, %p123
      %s125 = smul.u32 %s17, 2
      %s126 = ssub.s32 1, %s125
      %s127 = smul.u32 %s16, %s126
      %s128 = sadd.s32 %s17, %s127
      %s129 = smul.u32 %s24, 2
      %s130 = ssub.s32 1, %s129
      %s131 = smul.u32 %s28, %s130
      %s132 = sadd.s32 %s24, %s131
      %s133 = ssub.s32 %s128, %s132
      %s134 = ssub.s32 %s16, %s28
      %s135 = sor.u32 %s133, %s134
      %p136 = scmp.eq.s32.totalorder %s135, 0
      %s138 = sadd.s32 %s137, 1
      %s139 = scalar_select %p136, %s137, %s138
      %p142 = pneg %p136
      %p143 = scmp.eq.s32.totalorder %s9, 3
      %p144 = por %p142, %p143
      %p145 = scmp.ne.s32.totalorder %s137, %s140
      %p146 = scmp.eq.s32.totalorder %s9, 0
      %p147 = por %p145, %p146
      %p148 = scmp.ne.s32.totalorder %s137, %s140
      %p149 = scmp.eq.s32.totalorder %s14, 3
      %p150 = por %p148, %p149
      %p151 = scmp.ne.s32.totalorder %s140, %s141
      %p152 = scmp.eq.s32.totalorder %s14, 0
      %p153 = por %p151, %p152
      %p154 = scmp.ne.s32.totalorder %s140, %s141
      %p155 = scmp.eq.s32.totalorder %s15, 3
      %p156 = por %p154, %p155
      %p158 = scmp.ne.s32.totalorder %s141, %s157
      %p159 = scmp.eq.s32.totalorder %s15, 0
      %p160 = por %p158, %p159
      %p161 = scmp.le.s32.totalorder 1, %s9
      %p162 = scmp.lt.s32.totalorder %s9, 5
      %p163 = pnand %p161, %p162
      %p164 = pneg %p163
      // Predicated region
      $region9: #{encoder_forward.6} parent=5 // pred_check
        _
      $region10: #{encoder_forward.6} parent=5 // pred_check_branch
        %166 = sbr.rel (%p163) target = $region12
      $region11: #{encoder_forward.6} parent=5 // pred_region
        %s167 = ssub.s32 %s9, 1
      $region12: #{encoder_forward.6} parent=5 // pred_fallthru
        _
      %p168 = scmp.lt.s32.totalorder %s9, 4
      // Predicated region
      $region13: #{encoder_forward.6} parent=5 // pred_check
        %p169 = pneg %p168
      $region14: #{encoder_forward.6} parent=5 // pred_check_branch
        %171 = sbr.rel (%p169) target = $region16
      $region15: #{encoder_forward.6} parent=5 // pred_region
        // Predicated region
        $region17: #{encoder_forward.6} parent=15 // pred_check
          %p172 = pneg %p51
        $region18: #{encoder_forward.6} parent=15 // pred_check_branch
          %174 = sbr.rel (%p172) target = $region20
        $region19: #{encoder_forward.6} parent=15 // pred_region
          %s175 = sand.u32 %s41, 1
          %s176 = sand.u32 %s41, 1
          %s177 = smul.addr %s176, 128
          %s178 = scalar_lea.vmem [#allocation4], %s177
          %s179 = smul.u32 %s17, 2
          %s180 = ssub.s32 1, %s179
          %s181 = smul.u32 %s16, %s180
          %s182 = sadd.s32 %s17, %s181
          %s183 = smul.u32 8, %s182
          %s184 = smul.u32 4, %s16
          %s185 = smul.addr %s183, 8
          %s186 = sadd.s32 %s184, %s185
          %s187 = smul.addr %s186, 4
          %s188 = scalar_lea.vmem %s0, %s187
          // Predicated region
          $region21: #{encoder_forward.6} parent=19 // pred_check
            _
          $region22: #{encoder_forward.6} parent=19 // pred_check_branch
            %190 = sbr.rel (0) target = $region24
          $region23: #{encoder_forward.6} parent=19 // pred_region
            // Predicated region
            $region25: #{encoder_forward.6} parent=23 // pred_check
              _
            $region26: #{encoder_forward.6} parent=23 // pred_check_branch
              %192 = sbr.rel (0) target = $region28
            $region27: #{encoder_forward.6} parent=23 // pred_region
              loop: start=0, step=1, limit=1
              $region29: #{encoder_forward.6} parent=27 // loop_pre_header
                _
              $region30: #{encoder_forward.6} parent=27 // loop_header
                %s194 = sphi 0, %s198
                %p195 = scmp.ge.s32.totalorder %s194, 1
                %s199 = sphi %s188, %s188
                %s200 = sphi %s178, %s178
              $region31: #{encoder_forward.6} parent=27 // loop_header_branch
                %197 = sbr.rel (%p195) target = $region35
              $region32: #{encoder_forward.6} parent=27 // loop_body
                %v201 = vld [vmem:[%s199] sm:$0xff]
                %202 = vst [vmem:[%s200] sm:$0xff] %v201
                %v203 = vld [vmem:[%s199 + $0x8] sm:$0xff]
                %204 = vst [vmem:[%s200 + $0x8] sm:$0xff] %v203
                %v205 = vld [vmem:[%s199 + $0x20] sm:$0xff]
                %206 = vst [vmem:[%s200 + $0x10] sm:$0xff] %v205
                %v207 = vld [vmem:[%s199 + $0x28] sm:$0xff]
                %208 = vst [vmem:[%s200 + $0x18] sm:$0xff] %v207
                %v209 = vld [vmem:[%s199 + $0x40] sm:$0xff]
                %210 = vst [vmem:[%s200 + $0x20] sm:$0xff] %v209
                %v211 = vld [vmem:[%s199 + $0x48] sm:$0xff]
                %212 = vst [vmem:[%s200 + $0x28] sm:$0xff] %v211
                %v213 = vld [vmem:[%s199 + $0x60] sm:$0xff]
                %214 = vst [vmem:[%s200 + $0x30] sm:$0xff] %v213
                %v215 = vld [vmem:[%s199 + $0x68] sm:$0xff]
                %216 = vst [vmem:[%s200 + $0x38] sm:$0xff] %v215
                %v217 = vld [vmem:[%s199 + $0x80] sm:$0xff]
                %218 = vst [vmem:[%s200 + $0x40] sm:$0xff] %v217
                %v219 = vld [vmem:[%s199 + $0x88] sm:$0xff]
                %220 = vst [vmem:[%s200 + $0x48] sm:$0xff] %v219
                %v221 = vld [vmem:[%s199 + $0xa0] sm:$0xff]
                %222 = vst [vmem:[%s200 + $0x50] sm:$0xff] %v221
                %v223 = vld [vmem:[%s199 + $0xa8] sm:$0xff]
                %224 = vst [vmem:[%s200 + $0x58] sm:$0xff] %v223
                %v225 = vld [vmem:[%s199 + $0xc0] sm:$0xff]
                %226 = vst [vmem:[%s200 + $0x60] sm:$0xff] %v225
                %v227 = vld [vmem:[%s199 + $0xc8] sm:$0xff]
                %228 = vst [vmem:[%s200 + $0x68] sm:$0xff] %v227
                %v229 = vld [vmem:[%s199 + $0xe0] sm:$0xff]
                %230 = vst [vmem:[%s200 + $0x70] sm:$0xff] %v229
                %v231 = vld [vmem:[%s199 + $0xe8] sm:$0xff]
                %232 = vst [vmem:[%s200 + $0x78] sm:$0xff] %v231
              $region33: #{encoder_forward.6} parent=27 // loop_footer
                %s198 = sadd.s32 1, %s194
              $region34: #{encoder_forward.6} parent=27 // loop_footer_branch
                %193 = sbr.rel target = $region30
              $region35: #{encoder_forward.6} parent=27 // loop_exit
                _
            $region28: #{encoder_forward.6} parent=23 // pred_fallthru
              _
            // Predicated region
            $region36: #{encoder_forward.6} parent=23 // pred_check
              _
            $region37: #{encoder_forward.6} parent=23 // pred_check_branch
              %234 = sbr.rel target = $region39
            $region38: #{encoder_forward.6} parent=23 // pred_region
              _
            $region39: #{encoder_forward.6} parent=23 // pred_fallthru
              _
          $region24: #{encoder_forward.6} parent=19 // pred_fallthru
            _
          %235 = vnop
        $region20: #{encoder_forward.6} parent=15 // pred_fallthru
          _
        // Predicated region
        $region40: #{encoder_forward.6} parent=15 // pred_check
          %p236 = pneg %p85
        $region41: #{encoder_forward.6} parent=15 // pred_check_branch
          %238 = sbr.rel (%p236) target = $region43
        $region42: #{encoder_forward.6} parent=15 // pred_region
          %s239 = smul.u32 %s17, 2
          %s240 = ssub.s32 1, %s239
          %s241 = smul.u32 %s16, %s240
          %s242 = sadd.s32 %s17, %s241
          %s243 = smul.u32 8, %s242
          %p244 = scmp.lt.s32.totalorder %s243, 15
          %s245 = scalar_select %p244, %s243, 15
          %s246 = smul.addr %s245, 4
          %s247 = scalar_lea.vmem %s1, %s246
          %s248 = smul.u32 %s17, 2
          %s249 = ssub.s32 1, %s248
          %s250 = smul.u32 %s16, %s249
          %s251 = sadd.s32 %s17, %s250
          %s252 = smul.u32 8, %s251
        $region43: #{encoder_forward.6} parent=15 // pred_fallthru
          _
        // Predicated region
        $region44: #{encoder_forward.6} parent=15 // pred_check
          %p253 = pneg %p111
        $region45: #{encoder_forward.6} parent=15 // pred_check_branch
          %255 = sbr.rel (%p253) target = $region47
        $region46: #{encoder_forward.6} parent=15 // pred_region
          %p256 = scmp.lt.s32.totalorder %s16, 1
          %s257 = scalar_select %p256, %s16, 1
          %s258 = smul.addr %s257, 64
          %s259 = smul.addr %s258, 4
          %s260 = scalar_lea.vmem %s2, %s259
        $region47: #{encoder_forward.6} parent=15 // pred_fallthru
          _
      $region16: #{encoder_forward.6} parent=5 // pred_fallthru
        _
      %p261 = scmp.le.s32.totalorder 1, %s9
      %p262 = scmp.lt.s32.totalorder %s9, 5
      %p263 = pnand %p261, %p262
      %p264 = pneg %p263
      // Predicated region
      $region48: #{encoder_forward.6} parent=5 // pred_check
        _
      $region49: #{encoder_forward.6} parent=5 // pred_check_branch
        %266 = sbr.rel (%p263) target = $region51
      $region50: #{encoder_forward.6} parent=5 // pred_region
        %s267 = ssub.s32 %s9, 1
        %s268 = sand.u32 %s44, 1
        %s269 = sand.u32 %s44, 1
        %s270 = smul.addr %s269, 128
        %s271 = scalar_lea.vmem [#allocation4], %s270
        // Predicated region
        $region52: #{encoder_forward.6} parent=50 // pred_check
          %p272 = pneg %p57
        $region53: #{encoder_forward.6} parent=50 // pred_check_branch
          %274 = sbr.rel (%p272) target = $region55
        $region54: #{encoder_forward.6} parent=50 // pred_region
          _
        $region55: #{encoder_forward.6} parent=50 // pred_fallthru
          _
        %s275 = sand.u32 %s44, 1
        %s276 = sand.u32 %s44, 1
        %s277 = smul.addr %s276, 128
        %s278 = scalar_lea.vmem [#allocation4], %s277
        %p279 = pneg %p57
        %p280 = pneg %p54
        %s281 = smul.u32 %s19, 2
        %s282 = ssub.s32 1, %s281
        %s283 = smul.u32 %s18, %s282
        %s284 = sadd.s32 %s19, %s283
        %s285 = smul.u32 8, %s284
        %p286 = scmp.lt.s32.totalorder %s285, 15
        %s287 = scalar_select %p286, %s285, 15
        %s288 = smul.addr %s287, 4
        %s289 = scalar_lea.vmem %s1, %s288
        %p290 = pneg %p91
        %p291 = pneg %p88
        %p292 = scmp.lt.s32.totalorder %s18, 1
        %s293 = scalar_select %p292, %s18, 1
        %s294 = smul.addr %s293, 64
        %s295 = smul.addr %s294, 4
        %s296 = scalar_lea.vmem %s2, %s295
        %p297 = pneg %p117
        %p298 = pneg %p114
        %p299 = pneg %p153
        %p300 = pneg %p150
        %s301 = sand.u32 %s140, 1
        %s302 = sand.u32 %s140, 1
        %s303 = smul.addr %s302, 32
        %s304 = scalar_lea.vmem [#allocation5], %s303
        %s305 = smul.u32 %s19, 2
        %s306 = ssub.s32 1, %s305
        %s307 = smul.u32 %s18, %s306
        %s308 = sadd.s32 %s19, %s307
        %s309 = smul.u32 8, %s308
        %s310 = smul.u32 4, %s18
        %s311 = smul.u32 %s19, 2
        %s312 = ssub.s32 1, %s311
        %s313 = smul.u32 %s18, %s312
        %s314 = sadd.s32 %s19, %s313
        %s315 = smul.u32 8, %s314
        %p316 = scmp.lt.s32.totalorder %s315, 15
        %s317 = scalar_select %p316, %s315, 15
        %s318 = smul.addr %s317, 4
        %s319 = scalar_lea.vmem %s1, %s318
        %s320 = smul.u32 %s19, 2
        %s321 = ssub.s32 1, %s320
        %s322 = smul.u32 %s18, %s321
        %s323 = sadd.s32 %s19, %s322
        %s324 = smul.u32 8, %s323
        %p325 = scmp.lt.s32.totalorder %s18, 1
        %s326 = scalar_select %p325, %s18, 1
        %s327 = smul.addr %s326, 64
        %s328 = smul.addr %s327, 4
        %s329 = scalar_lea.vmem %s2, %s328
        %s330 = smul.u32 %s19, 2
        %s331 = ssub.s32 1, %s330
        %s332 = smul.u32 %s18, %s331
        %s333 = sadd.s32 %s19, %s332
        %s334 = smul.u32 8, %s333
        %p336 = scmp.eq.s32.totalorder %s19, 0
        // Predicated region
        $region56: #{encoder_forward.6} parent=50 // pred_check
          %p337 = pneg %p336
        $region57: #{encoder_forward.6} parent=50 // pred_check_branch
          %339 = sbr.rel (%p337) target = $region59
        $region58: #{encoder_forward.6} parent=50 // pred_region
          %340 = vst [vmem:[#allocation2] sm:$0xf] 0.0
          %341 = vst [vmem:[#allocation3] sm:$0xf] 0.0
        $region59: #{encoder_forward.6} parent=50 // pred_fallthru
          _
        %v342 = vld [vmem:[#allocation2] sm:$0xf]
        %v343 = vld [vmem:[#allocation3] sm:$0xf]
        %p344 = scmp.eq.s32.totalorder %s18, 0
        %s345 = scalar_select %p344, 0, 7
        %s346 = smul.u32 %s345, 4
        %s347 = smul.addr %s346, 4
        %s348 = scalar_lea.vmem %s271, %s347 [#allocation4]
        %v349 = vld [vmem:[%s348] sm:$0xff]
        %v350 = vld [vmem:[%s348 + $0x8] sm:$0xff]
        %s351 = scalar_lea.vmem %s319, %s346
        %v352 = vld [vmem:[%s351] sm:$0xf]
        %v353 = vpack.c.bf16 %v342, %v342
        %v354 = vld [vmem:[%s329] sm:$0xff]
        %v355 = vld [vmem:[%s329 + $0x8] sm:$0xff]
        %v356 = vld [vmem:[%s329 + $0x10] sm:$0xff]
        %v357 = vld [vmem:[%s329 + $0x18] sm:$0xff]
        %v358 = vld [vmem:[%s329 + $0x20] sm:$0xff]
        %v359 = vld [vmem:[%s329 + $0x28] sm:$0xff]
        %v360 = vld [vmem:[%s329 + $0x30] sm:$0xff]
        %v361 = vld [vmem:[%s329 + $0x38] sm:$0xff]
        %v362 = vld [vmem:[%s329 + $0x40] sm:$0xff]
        %v363 = vld [vmem:[%s329 + $0x48] sm:$0xff]
        %v364 = vld [vmem:[%s329 + $0x50] sm:$0xff]
        %v365 = vld [vmem:[%s329 + $0x58] sm:$0xff]
        %v366 = vld [vmem:[%s329 + $0x60] sm:$0xff]
        %v367 = vld [vmem:[%s329 + $0x68] sm:$0xff]
        %v368 = vld [vmem:[%s329 + $0x70] sm:$0xff]
        %v369 = vld [vmem:[%s329 + $0x78] sm:$0xff]
        %v370 = vld [vmem:[%s329 + $0x80] sm:$0xff]
        %v371 = vld [vmem:[%s329 + $0x88] sm:$0xff]
        %v372 = vld [vmem:[%s329 + $0x90] sm:$0xff]
        %v373 = vld [vmem:[%s329 + $0x98] sm:$0xff]
        %v374 = vld [vmem:[%s329 + $0xa0] sm:$0xff]
        %v375 = vld [vmem:[%s329 + $0xa8] sm:$0xff]
        %v376 = vld [vmem:[%s329 + $0xb0] sm:$0xff]
        %v377 = vld [vmem:[%s329 + $0xb8] sm:$0xff]
        %v378 = vld [vmem:[%s329 + $0xc0] sm:$0xff]
        %v379 = vld [vmem:[%s329 + $0xc8] sm:$0xff]
        %v380 = vld [vmem:[%s329 + $0xd0] sm:$0xff]
        %v381 = vld [vmem:[%s329 + $0xd8] sm:$0xff]
        %v382 = vld [vmem:[%s329 + $0xe0] sm:$0xff]
        %v383 = vld [vmem:[%s329 + $0xe8] sm:$0xff]
        %v384 = vld [vmem:[%s329 + $0xf0] sm:$0xff]
        %v385 = vld [vmem:[%s329 + $0xf8] sm:$0xff]
        %v418 = vunpack.c.l.b16 %v354
        %v419 = vunpack.c.h.b16 %v354
        %v420 = vunpack.c.l.b16 %v355
        %v421 = vunpack.c.h.b16 %v355
        %v422 = vunpack.c.l.b16 %v356
        %v423 = vunpack.c.h.b16 %v356
        %v424 = vunpack.c.l.b16 %v357
        %v425 = vunpack.c.h.b16 %v357
        %v426 = vunpack.c.l.b16 %v358
        %v427 = vunpack.c.h.b16 %v358
        %v428 = vunpack.c.l.b16 %v359
        %v429 = vunpack.c.h.b16 %v359
        %v430 = vunpack.c.l.b16 %v360
        %v431 = vunpack.c.h.b16 %v360
        %v432 = vunpack.c.l.b16 %v361
        %v433 = vunpack.c.h.b16 %v361
        %v434 = vunpack.c.l.b16 %v362
        %v435 = vunpack.c.h.b16 %v362
        %v436 = vunpack.c.l.b16 %v363
        %v437 = vunpack.c.h.b16 %v363
        %v438 = vunpack.c.l.b16 %v364
        %v439 = vunpack.c.h.b16 %v364
        %v440 = vunpack.c.l.b16 %v365
        %v441 = vunpack.c.h.b16 %v365
        %v442 = vunpack.c.l.b16 %v366
        %v443 = vunpack.c.h.b16 %v366
        %v444 = vunpack.c.l.b16 %v367
        %v445 = vunpack.c.h.b16 %v367
        %v446 = vunpack.c.l.b16 %v368
        %v447 = vunpack.c.h.b16 %v368
        %v448 = vunpack.c.l.b16 %v369
        %v449 = vunpack.c.h.b16 %v369
        %v450 = vunpack.c.l.b16 %v370
        %v451 = vunpack.c.h.b16 %v370
        %v452 = vunpack.c.l.b16 %v371
        %v453 = vunpack.c.h.b16 %v371
        %v454 = vunpack.c.l.b16 %v372
        %v455 = vunpack.c.h.b16 %v372
        %v456 = vunpack.c.l.b16 %v373
        %v457 = vunpack.c.h.b16 %v373
        %v458 = vunpack.c.l.b16 %v374
        %v459 = vunpack.c.h.b16 %v374
        %v460 = vunpack.c.l.b16 %v375
        %v461 = vunpack.c.h.b16 %v375
        %v462 = vunpack.c.l.b16 %v376
        %v463 = vunpack.c.h.b16 %v376
        %v464 = vunpack.c.l.b16 %v377
        %v465 = vunpack.c.h.b16 %v377
        %v466 = vunpack.c.l.b16 %v378
        %v467 = vunpack.c.h.b16 %v378
        %v468 = vunpack.c.l.b16 %v379
        %v469 = vunpack.c.h.b16 %v379
        %v470 = vunpack.c.l.b16 %v380
        %v471 = vunpack.c.h.b16 %v380
        %v472 = vunpack.c.l.b16 %v381
        %v473 = vunpack.c.h.b16 %v381
        %v474 = vunpack.c.l.b16 %v382
        %v475 = vunpack.c.h.b16 %v382
        %v476 = vunpack.c.l.b16 %v383
        %v477 = vunpack.c.h.b16 %v383
        %v478 = vunpack.c.l.b16 %v384
        %v479 = vunpack.c.h.b16 %v384
        %v480 = vunpack.c.l.b16 %v385
        %v481 = vunpack.c.h.b16 %v385
        %v482 = vpack.c.b16 %v422, %v418
        %v483 = vpack.c.b16 %v423, %v419
        %v484 = vpack.c.b16 %v424, %v420
        %v485 = vpack.c.b16 %v425, %v421
        %v486 = vpack.c.b16 %v430, %v426
        %v487 = vpack.c.b16 %v431, %v427
        %v488 = vpack.c.b16 %v432, %v428
        %v489 = vpack.c.b16 %v433, %v429
        %v490 = vpack.c.b16 %v438, %v434
        %v491 = vpack.c.b16 %v439, %v435
        %v492 = vpack.c.b16 %v440, %v436
        %v493 = vpack.c.b16 %v441, %v437
        %v494 = vpack.c.b16 %v446, %v442
        %v495 = vpack.c.b16 %v447, %v443
        %v496 = vpack.c.b16 %v448, %v444
        %v497 = vpack.c.b16 %v449, %v445
        %v498 = vpack.c.b16 %v454, %v450
        %v499 = vpack.c.b16 %v455, %v451
        %v500 = vpack.c.b16 %v456, %v452
        %v501 = vpack.c.b16 %v457, %v453
        %v502 = vpack.c.b16 %v462, %v458
        %v503 = vpack.c.b16 %v463, %v459
        %v504 = vpack.c.b16 %v464, %v460
        %v505 = vpack.c.b16 %v465, %v461
        %v506 = vpack.c.b16 %v470, %v466
        %v507 = vpack.c.b16 %v471, %v467
        %v508 = vpack.c.b16 %v472, %v468
        %v509 = vpack.c.b16 %v473, %v469
        %v510 = vpack.c.b16 %v478, %v474
        %v511 = vpack.c.b16 %v479, %v475
        %v512 = vpack.c.b16 %v480, %v476
        %v513 = vpack.c.b16 %v481, %v477
        %546 = vmatprep.subr.bf16.mxu0 %v483
        %547 = vmatpush1.bf16.msra.mxu0 %v482
        %548 = vmatprep.subr.bf16.mxu0 %v487
        %549 = vmatpush1.bf16.msra.mxu0 %v486
        %550 = vmatprep.subr.bf16.mxu0 %v491
        %551 = vmatpush1.bf16.msra.mxu0 %v490
        %552 = vmatprep.subr.bf16.mxu0 %v495
        %553 = vmatpush1.bf16.msra.mxu0 %v494
        %554 = vmatprep.subr.bf16.mxu0 %v499
        %555 = vmatpush1.bf16.msra.mxu0 %v498
        %556 = vmatprep.subr.bf16.mxu0 %v503
        %557 = vmatpush1.bf16.msra.mxu0 %v502
        %558 = vmatprep.subr.bf16.mxu0 %v507
        %559 = vmatpush1.bf16.msra.mxu0 %v506
        %560 = vmatprep.subr.bf16.mxu0 %v511
        %561 = vmatpush1.bf16.msra.mxu0 %v510
        %562 = vmatprep.subr.bf16.mxu0 0
        %563 = vmatpush1.bf16.msra.mxu0 0
        %564 = vmatprep.subr.bf16.mxu0 0
        %565 = vmatpush1.bf16.msra.mxu0 0
        %566 = vmatprep.subr.bf16.mxu0 0
        %567 = vmatpush1.bf16.msra.mxu0 0
        %568 = vmatprep.subr.bf16.mxu0 0
        %569 = vmatpush1.bf16.msra.mxu0 0
        %570 = vmatprep.subr.bf16.mxu0 0
        %571 = vmatpush1.bf16.msra.mxu0 0
        %572 = vmatprep.subr.bf16.mxu0 0
        %573 = vmatpush1.bf16.msra.mxu0 0
        %574 = vmatprep.subr.bf16.mxu0 0
        %575 = vmatpush1.bf16.msra.mxu0 0
        %576 = vmatprep.subr.bf16.mxu0 0
        %577 = vmatpush1.bf16.msra.mxu0 0
        %578 = vmatprep.mubr.bf16.mxu0 0
        %579 = vmatmul.mubr.bf16.gmra.mrb[0].mxu0 %v353
        %v580 = vpop.f32.mrb[0].mxu0
        %v581 = vadd.f32 0.0, %v580
        %v582 = vpop.f32.mrb[0].mxu0
        %v583 = vadd.f32 0.0, %v582
        %v584 = vpop.f32.mrb[0].mxu0
        %v585 = vpop.f32.mrb[0].mxu0
        %586 = vdwg.mxu0
        %587 = vmatprep.subr.bf16.mxu0 %v485
        %588 = vmatpush1.bf16.msra.mxu0 %v484
        %589 = vmatprep.subr.bf16.mxu0 %v489
        %590 = vmatpush1.bf16.msra.mxu0 %v488
        %591 = vmatprep.subr.bf16.mxu0 %v493
        %592 = vmatpush1.bf16.msra.mxu0 %v492
        %593 = vmatprep.subr.bf16.mxu0 %v497
        %594 = vmatpush1.bf16.msra.mxu0 %v496
        %595 = vmatprep.subr.bf16.mxu0 %v501
        %596 = vmatpush1.bf16.msra.mxu0 %v500
        %597 = vmatprep.subr.bf16.mxu0 %v505
        %598 = vmatpush1.bf16.msra.mxu0 %v504
        %599 = vmatprep.subr.bf16.mxu0 %v509
        %600 = vmatpush1.bf16.msra.mxu0 %v508
        %601 = vmatprep.subr.bf16.mxu0 %v513
        %602 = vmatpush1.bf16.msra.mxu0 %v512
        %603 = vmatprep.subr.bf16.mxu0 0
        %604 = vmatpush1.bf16.msra.mxu0 0
        %605 = vmatprep.subr.bf16.mxu0 0
        %606 = vmatpush1.bf16.msra.mxu0 0
        %607 = vmatprep.subr.bf16.mxu0 0
        %608 = vmatpush1.bf16.msra.mxu0 0
        %609 = vmatprep.subr.bf16.mxu0 0
        %610 = vmatpush1.bf16.msra.mxu0 0
        %611 = vmatprep.subr.bf16.mxu0 0
        %612 = vmatpush1.bf16.msra.mxu0 0
        %613 = vmatprep.subr.bf16.mxu0 0
        %614 = vmatpush1.bf16.msra.mxu0 0
        %615 = vmatprep.subr.bf16.mxu0 0
        %616 = vmatpush1.bf16.msra.mxu0 0
        %617 = vmatprep.subr.bf16.mxu0 0
        %618 = vmatpush1.bf16.msra.mxu0 0
        %619 = vmatprep.mubr.bf16.mxu0 0
        %620 = vmatmul.mubr.bf16.gmra.mrb[0].mxu0 %v353
        %v621 = vpop.f32.mrb[0].mxu0
        %v622 = vadd.f32 0.0, %v621
        %v623 = vpop.f32.mrb[0].mxu0
        %v624 = vadd.f32 0.0, %v623
        %v625 = vpop.f32.mrb[0].mxu0
        %v626 = vpop.f32.mrb[0].mxu0
        %627 = vdwg.mxu0
        %v632 = vcombine.low %v581, %v583
        %v633 = vcombine.low %v622, %v624
        %v636 = vadd.f32 %v349, %v632
        %v637 = vadd.f32 %v350, %v633
        %v638 = vxor.u32 %v636, 2147483648
        %v639 = vmul.f32 %v638, 1.442695
        %v640 = vpow.pop %v639
        %v641 = vadd.f32 %v640, 1.0
        %v642 = vrcp.pop %v641
        %v643 = vmul.f32 1.0, %v642
        %v645 = vrot.slane %v636, 4
        %v647 = vxor.u32 %v645, 2147483648
        %v648 = vmul.f32 %v647, 1.442695
        %v649 = vpow.pop %v648
        %v650 = vadd.f32 %v649, 1.0
        %v651 = vrcp.pop %v650
        %v652 = vmul.f32 1.0, %v651
        %v653 = vtanh.pop %v637
        %v655 = vrot.slane %v637, 4
        %v657 = vxor.u32 %v655, 2147483648
        %v658 = vmul.f32 %v657, 1.442695
        %v659 = vpow.pop %v658
        %v660 = vadd.f32 %v659, 1.0
        %v661 = vrcp.pop %v660
        %v662 = vmul.f32 1.0, %v661
        %v663 = vmul.f32 %v652, %v343
        %v664 = vmul.f32 %v643, %v653
        %v665 = vadd.f32 %v663, %v664
        %v666 = vtanh.pop %v665
        %v667 = vmul.f32 %v662, %v666
        %669 = vset.pattern.permute.xlu0 0
        %670 = vperm.xlu0 %669, %v352
        %v671 = vpop.permute.xlu0 %670
        %v673 = vmul.f32 %v671, %v667
        %v674 = vsub.f32 1.0, %v352
        %676 = vset.pattern.permute.xlu0 0
        %677 = vperm.xlu0 %676, %v674
        %v678 = vpop.permute.xlu0 %677
        %v680 = vmul.f32 %v678, %v342
        %v681 = vadd.f32 %v673, %v680
        %v682 = vmul.f32 %v671, %v665
        %v683 = vmul.f32 %v678, %v343
        %v684 = vadd.f32 %v682, %v683
        %v685 = vmul.f32 %v671, %v681
        %s686 = scalar_lea.vmem %s304, %s346 [#allocation5]
        %687 = vst [vmem:[%s686] sm:$0xf] %v685
        %s688 = scalar_select %p344, 1, 6
        %s689 = smul.u32 %s688, 4
        %s690 = smul.addr %s689, 4
        %s691 = scalar_lea.vmem %s271, %s690 [#allocation4]
        %v692 = vld [vmem:[%s691] sm:$0xff]
        %v693 = vld [vmem:[%s691 + $0x8] sm:$0xff]
        %s694 = scalar_lea.vmem %s319, %s689
        %v695 = vld [vmem:[%s694] sm:$0xf]
        %v696 = vpack.c.bf16 %v681, %v681
        %v697 = vld [vmem:[%s329] sm:$0xff]
        %v698 = vld [vmem:[%s329 + $0x8] sm:$0xff]
        %v699 = vld [vmem:[%s329 + $0x10] sm:$0xff]
        %v700 = vld [vmem:[%s329 + $0x18] sm:$0xff]
        %v701 = vld [vmem:[%s329 + $0x20] sm:$0xff]
        %v702 = vld [vmem:[%s329 + $0x28] sm:$0xff]
        %v703 = vld [vmem:[%s329 + $0x30] sm:$0xff]
        %v704 = vld [vmem:[%s329 + $0x38] sm:$0xff]
        %v705 = vld [vmem:[%s329 + $0x40] sm:$0xff]
        %v706 = vld [vmem:[%s329 + $0x48] sm:$0xff]
        %v707 = vld [vmem:[%s329 + $0x50] sm:$0xff]
        %v708 = vld [vmem:[%s329 + $0x58] sm:$0xff]
        %v709 = vld [vmem:[%s329 + $0x60] sm:$0xff]
        %v710 = vld [vmem:[%s329 + $0x68] sm:$0xff]
        %v711 = vld [vmem:[%s329 + $0x70] sm:$0xff]
        %v712 = vld [vmem:[%s329 + $0x78] sm:$0xff]
        %v713 = vld [vmem:[%s329 + $0x80] sm:$0xff]
        %v714 = vld [vmem:[%s329 + $0x88] sm:$0xff]
        %v715 = vld [vmem:[%s329 + $0x90] sm:$0xff]
        %v716 = vld [vmem:[%s329 + $0x98] sm:$0xff]
        %v717 = vld [vmem:[%s329 + $0xa0] sm:$0xff]
        %v718 = vld [vmem:[%s329 + $0xa8] sm:$0xff]
        %v719 = vld [vmem:[%s329 + $0xb0] sm:$0xff]
        %v720 = vld [vmem:[%s329 + $0xb8] sm:$0xff]
        %v721 = vld [vmem:[%s329 + $0xc0] sm:$0xff]
        %v722 = vld [vmem:[%s329 + $0xc8] sm:$0xff]
        %v723 = vld [vmem:[%s329 + $0xd0] sm:$0xff]
        %v724 = vld [vmem:[%s329 + $0xd8] sm:$0xff]
        %v725 = vld [vmem:[%s329 + $0xe0] sm:$0xff]
        %v726 = vld [vmem:[%s329 + $0xe8] sm:$0xff]
        %v727 = vld [vmem:[%s329 + $0xf0] sm:$0xff]
        %v728 = vld [vmem:[%s329 + $0xf8] sm:$0xff]
        %v761 = vunpack.c.l.b16 %v697
        %v762 = vunpack.c.h.b16 %v697
        %v763 = vunpack.c.l.b16 %v698
        %v764 = vunpack.c.h.b16 %v698
        %v765 = vunpack.c.l.b16 %v699
        %v766 = vunpack.c.h.b16 %v699
        %v767 = vunpack.c.l.b16 %v700
        %v768 = vunpack.c.h.b16 %v700
        %v769 = vunpack.c.l.b16 %v701
        %v770 = vunpack.c.h.b16 %v701
        %v771 = vunpack.c.l.b16 %v702
        %v772 = vunpack.c.h.b16 %v702
        %v773 = vunpack.c.l.b16 %v703
        %v774 = vunpack.c.h.b16 %v703
        %v775 = vunpack.c.l.b16 %v704
        %v776 = vunpack.c.h.b16 %v704
        %v777 = vunpack.c.l.b16 %v705
        %v778 = vunpack.c.h.b16 %v705
        %v779 = vunpack.c.l.b16 %v706
        %v780 = vunpack.c.h.b16 %v706
        %v781 = vunpack.c.l.b16 %v707
        %v782 = vunpack.c.h.b16 %v707
        %v783 = vunpack.c.l.b16 %v708
        %v784 = vunpack.c.h.b16 %v708
        %v785 = vunpack.c.l.b16 %v709
        %v786 = vunpack.c.h.b16 %v709
        %v787 = vunpack.c.l.b16 %v710
        %v788 = vunpack.c.h.b16 %v710
        %v789 = vunpack.c.l.b16 %v711
        %v790 = vunpack.c.h.b16 %v711
        %v791 = vunpack.c.l.b16 %v712
        %v792 = vunpack.c.h.b16 %v712
        %v793 = vunpack.c.l.b16 %v713
        %v794 = vunpack.c.h.b16 %v713
        %v795 = vunpack.c.l.b16 %v714
        %v796 = vunpack.c.h.b16 %v714
        %v797 = vunpack.c.l.b16 %v715
        %v798 = vunpack.c.h.b16 %v715
        %v799 = vunpack.c.l.b16 %v716
        %v800 = vunpack.c.h.b16 %v716
        %v801 = vunpack.c.l.b16 %v717
        %v802 = vunpack.c.h.b16 %v717
        %v803 = vunpack.c.l.b16 %v718
        %v804 = vunpack.c.h.b16 %v718
        %v805 = vunpack.c.l.b16 %v719
        %v806 = vunpack.c.h.b16 %v719
        %v807 = vunpack.c.l.b16 %v720
        %v808 = vunpack.c.h.b16 %v720
        %v809 = vunpack.c.l.b16 %v721
        %v810 = vunpack.c.h.b16 %v721
        %v811 = vunpack.c.l.b16 %v722
        %v812 = vunpack.c.h.b16 %v722
        %v813 = vunpack.c.l.b16 %v723
        %v814 = vunpack.c.h.b16 %v723
        %v815 = vunpack.c.l.b16 %v724
        %v816 = vunpack.c.h.b16 %v724
        %v817 = vunpack.c.l.b16 %v725
        %v818 = vunpack.c.h.b16 %v725
        %v819 = vunpack.c.l.b16 %v726
        %v820 = vunpack.c.h.b16 %v726
        %v821 = vunpack.c.l.b16 %v727
        %v822 = vunpack.c.h.b16 %v727
        %v823 = vunpack.c.l.b16 %v728
        %v824 = vunpack.c.h.b16 %v728
        %v825 = vpack.c.b16 %v765, %v761
        %v826 = vpack.c.b16 %v766, %v762
        %v827 = vpack.c.b16 %v767, %v763
        %v828 = vpack.c.b16 %v768, %v764
        %v829 = vpack.c.b16 %v773, %v769
        %v830 = vpack.c.b16 %v774, %v770
        %v831 = vpack.c.b16 %v775, %v771
        %v832 = vpack.c.b16 %v776, %v772
        %v833 = vpack.c.b16 %v781, %v777
        %v834 = vpack.c.b16 %v782, %v778
        %v835 = vpack.c.b16 %v783, %v779
        %v836 = vpack.c.b16 %v784, %v780
        %v837 = vpack.c.b16 %v789, %v785
        %v838 = vpack.c.b16 %v790, %v786
        %v839 = vpack.c.b16 %v791, %v787
        %v840 = vpack.c.b16 %v792, %v788
        %v841 = vpack.c.b16 %v797, %v793
        %v842 = vpack.c.b16 %v798, %v794
        %v843 = vpack.c.b16 %v799, %v795
        %v844 = vpack.c.b16 %v800, %v796
        %v845 = vpack.c.b16 %v805, %v801
        %v846 = vpack.c.b16 %v806, %v802
        %v847 = vpack.c.b16 %v807, %v803
        %v848 = vpack.c.b16 %v808, %v804
        %v849 = vpack.c.b16 %v813, %v809
        %v850 = vpack.c.b16 %v814, %v810
        %v851 = vpack.c.b16 %v815, %v811
        %v852 = vpack.c.b16 %v816, %v812
        %v853 = vpack.c.b16 %v821, %v817
        %v854 = vpack.c.b16 %v822, %v818
        %v855 = vpack.c.b16 %v823, %v819
        %v856 = vpack.c.b16 %v824, %v820
        %889 = vmatprep.subr.bf16.mxu0 %v826
        %890 = vmatpush1.bf16.msra.mxu0 %v825
        %891 = vmatprep.subr.bf16.mxu0 %v830
        %892 = vmatpush1.bf16.msra.mxu0 %v829
        %893 = vmatprep.subr.bf16.mxu0 %v834
        %894 = vmatpush1.bf16.msra.mxu0 %v833
        %895 = vmatprep.subr.bf16.mxu0 %v838
        %896 = vmatpush1.bf16.msra.mxu0 %v837
        %897 = vmatprep.subr.bf16.mxu0 %v842
        %898 = vmatpush1.bf16.msra.mxu0 %v841
        %899 = vmatprep.subr.bf16.mxu0 %v846
        %900 = vmatpush1.bf16.msra.mxu0 %v845
        %901 = vmatprep.subr.bf16.mxu0 %v850
        %902 = vmatpush1.bf16.msra.mxu0 %v849
        %903 = vmatprep.subr.bf16.mxu0 %v854
        %904 = vmatpush1.bf16.msra.mxu0 %v853
        %905 = vmatprep.subr.bf16.mxu0 0
        %906 = vmatpush1.bf16.msra.mxu0 0
        %907 = vmatprep.subr.bf16.mxu0 0
        %908 = vmatpush1.bf16.msra.mxu0 0
        %909 = vmatprep.subr.bf16.mxu0 0
        %910 = vmatpush1.bf16.msra.mxu0 0
        %911 = vmatprep.subr.bf16.mxu0 0
        %912 = vmatpush1.bf16.msra.mxu0 0
        %913 = vmatprep.subr.bf16.mxu0 0
        %914 = vmatpush1.bf16.msra.mxu0 0
        %915 = vmatprep.subr.bf16.mxu0 0
        %916 = vmatpush1.bf16.msra.mxu0 0
        %917 = vmatprep.subr.bf16.mxu0 0
        %918 = vmatpush1.bf16.msra.mxu0 0
        %919 = vmatprep.subr.bf16.mxu0 0
        %920 = vmatpush1.bf16.msra.mxu0 0
        %921 = vmatprep.mubr.bf16.mxu0 0
        %922 = vmatmul.mubr.bf16.gmra.mrb[0].mxu0 %v696
        %v923 = vpop.f32.mrb[0].mxu0
        %v924 = vadd.f32 0.0, %v923
        %v925 = vpop.f32.mrb[0].mxu0
        %v926 = vadd.f32 0.0, %v925
        %v927 = vpop.f32.mrb[0].mxu0
        %v928 = vpop.f32.mrb[0].mxu0
        %929 = vdwg.mxu0
        %930 = vmatprep.subr.bf16.mxu0 %v828
        %931 = vmatpush1.bf16.msra.mxu0 %v827
        %932 = vmatprep.subr.bf16.mxu0 %v832
        %933 = vmatpush1.bf16.msra.mxu0 %v831
        %934 = vmatprep.subr.bf16.mxu0 %v836
        %935 = vmatpush1.bf16.msra.mxu0 %v835
        %936 = vmatprep.subr.bf16.mxu0 %v840
        %937 = vmatpush1.bf16.msra.mxu0 %v839
        %938 = vmatprep.subr.bf16.mxu0 %v844
        %939 = vmatpush1.bf16.msra.mxu0 %v843
        %940 = vmatprep.subr.bf16.mxu0 %v848
        %941 = vmatpush1.bf16.msra.mxu0 %v847
        %942 = vmatprep.subr.bf16.mxu0 %v852
        %943 = vmatpush1.bf16.msra.mxu0 %v851
        %944 = vmatprep.subr.bf16.mxu0 %v856
        %945 = vmatpush1.bf16.msra.mxu0 %v855
        %946 = vmatprep.subr.bf16.mxu0 0
        %947 = vmatpush1.bf16.msra.mxu0 0
        %948 = vmatprep.subr.bf16.mxu0 0
        %949 = vmatpush1.bf16.msra.mxu0 0
        %950 = vmatprep.subr.bf16.mxu0 0
        %951 = vmatpush1.bf16.msra.mxu0 0
        %952 = vmatprep.subr.bf16.mxu0 0
        %953 = vmatpush1.bf16.msra.mxu0 0
        %954 = vmatprep.subr.bf16.mxu0 0
        %955 = vmatpush1.bf16.msra.mxu0 0
        %956 = vmatprep.subr.bf16.mxu0 0
        %957 = vmatpush1.bf16.msra.mxu0 0
        %958 = vmatprep.subr.bf16.mxu0 0
        %959 = vmatpush1.bf16.msra.mxu0 0
        %960 = vmatprep.subr.bf16.mxu0 0
        %961 = vmatpush1.bf16.msra.mxu0 0
        %962 = vmatprep.mubr.bf16.mxu0 0
        %963 = vmatmul.mubr.bf16.gmra.mrb[0].mxu0 %v696
        %v964 = vpop.f32.mrb[0].mxu0
        %v965 = vadd.f32 0.0, %v964
        %v966 = vpop.f32.mrb[0].mxu0
        %v967 = vadd.f32 0.0, %v966
        %v968 = vpop.f32.mrb[0].mxu0
        %v969 = vpop.f32.mrb[0].mxu0
        %970 = vdwg.mxu0
        %v975 = vcombine.low %v924, %v926
        %v976 = vcombine.low %v965, %v967
        %v979 = vadd.f32 %v692, %v975
        %v980 = vadd.f32 %v693, %v976
        %v981 = vxor.u32 %v979, 2147483648
        %v982 = vmul.f32 %v981, 1.442695
        %v983 = vpow.pop %v982
        %v984 = vadd.f32 %v983, 1.0
        %v985 = vrcp.pop %v984
        %v986 = vmul.f32 1.0, %v985
        %v988 = vrot.slane %v979, 4
        %v990 = vxor.u32 %v988, 2147483648
        %v991 = vmul.f32 %v990, 1.442695
        %v992 = vpow.pop %v991
        %v993 = vadd.f32 %v992, 1.0
        %v994 = vrcp.pop %v993
        %v995 = vmul.f32 1.0, %v994
        %v996 = vtanh.pop %v980
        %v998 = vrot.slane %v980, 4
        %v1000 = vxor.u32 %v998, 2147483648
        %v1001 = vmul.f32 %v1000, 1.442695
        %v1002 = vpow.pop %v1001
        %v1003 = vadd.f32 %v1002, 1.0
        %v1004 = vrcp.pop %v1003
        %v1005 = vmul.f32 1.0, %v1004
        %v1006 = vmul.f32 %v995, %v684
        %v1007 = vmul.f32 %v986, %v996
        %v1008 = vadd.f32 %v1006, %v1007
        %v1009 = vtanh.pop %v1008
        %v1010 = vmul.f32 %v1005, %v1009
        %1012 = vset.pattern.permute.xlu0 0
        %1013 = vperm.xlu0 %1012, %v695
        %v1014 = vpop.permute.xlu0 %1013
        %v1016 = vmul.f32 %v1014, %v1010
        %v1017 = vsub.f32 1.0, %v695
        %1019 = vset.pattern.permute.xlu0 0
        %1020 = vperm.xlu0 %1019, %v1017
        %v1021 = vpop.permute.xlu0 %1020
        %v1023 = vmul.f32 %v1021, %v681
        %v1024 = vadd.f32 %v1016, %v1023
        %v1025 = vmul.f32 %v1014, %v1008
        %v1026 = vmul.f32 %v1021, %v684
        %v1027 = vadd.f32 %v1025, %v1026
        %v1028 = vmul.f32 %v1014, %v1024
        %s1029 = scalar_lea.vmem %s304, %s689 [#allocation5]
        %1030 = vst [vmem:[%s1029] sm:$0xf] %v1028
        %s1031 = scalar_select %p344, 2, 5
        %s1032 = smul.u32 %s1031, 4
        %s1033 = smul.addr %s1032, 4
        %s1034 = scalar_lea.vmem %s271, %s1033 [#allocation4]
        %v1035 = vld [vmem:[%s1034] sm:$0xff]
        %v1036 = vld [vmem:[%s1034 + $0x8] sm:$0xff]
        %s1037 = scalar_lea.vmem %s319, %s1032
        %v1038 = vld [vmem:[%s1037] sm:$0xf]
        %v1039 = vpack.c.bf16 %v1024, %v1024
        %v1040 = vld [vmem:[%s329] sm:$0xff]
        %v1041 = vld [vmem:[%s329 + $0x8] sm:$0xff]
        %v1042 = vld [vmem:[%s329 + $0x10] sm:$0xff]
        %v1043 = vld [vmem:[%s329 + $0x18] sm:$0xff]
        %v1044 = vld [vmem:[%s329 + $0x20] sm:$0xff]
        %v1045 = vld [vmem:[%s329 + $0x28] sm:$0xff]
        %v1046 = vld [vmem:[%s329 + $0x30] sm:$0xff]
        %v1047 = vld [vmem:[%s329 + $0x38] sm:$0xff]
        %v1048 = vld [vmem:[%s329 + $0x40] sm:$0xff]
        %v1049 = vld [vmem:[%s329 + $0x48] sm:$0xff]
        %v1050 = vld [vmem:[%s329 + $0x50] sm:$0xff]
        %v1051 = vld [vmem:[%s329 + $0x58] sm:$0xff]
        %v1052 = vld [vmem:[%s329 + $0x60] sm:$0xff]
        %v1053 = vld [vmem:[%s329 + $0x68] sm:$0xff]
        %v1054 = vld [vmem:[%s329 + $0x70] sm:$0xff]
        %v1055 = vld [vmem:[%s329 + $0x78] sm:$0xff]
        %v1056 = vld [vmem:[%s329 + $0x80] sm:$0xff]
        %v1057 = vld [vmem:[%s329 + $0x88] sm:$0xff]
        %v1058 = vld [vmem:[%s329 + $0x90] sm:$0xff]
        %v1059 = vld [vmem:[%s329 + $0x98] sm:$0xff]
        %v1060 = vld [vmem:[%s329 + $0xa0] sm:$0xff]
        %v1061 = vld [vmem:[%s329 + $0xa8] sm:$0xff]
        %v1062 = vld [vmem:[%s329 + $0xb0] sm:$0xff]
        %v1063 = vld [vmem:[%s329 + $0xb8] sm:$0xff]
        %v1064 = vld [vmem:[%s329 + $0xc0] sm:$0xff]
        %v1065 = vld [vmem:[%s329 + $0xc8] sm:$0xff]
        %v1066 = vld [vmem:[%s329 + $0xd0] sm:$0xff]
        %v1067 = vld [vmem:[%s329 + $0xd8] sm:$0xff]
        %v1068 = vld [vmem:[%s329 + $0xe0] sm:$0xff]
        %v1069 = vld [vmem:[%s329 + $0xe8] sm:$0xff]
        %v1070 = vld [vmem:[%s329 + $0xf0] sm:$0xff]
        %v1071 = vld [vmem:[%s329 + $0xf8] sm:$0xff]
        %v1104 = vunpack.c.l.b16 %v1040
        %v1105 = vunpack.c.h.b16 %v1040
        %v1106 = vunpack.c.l.b16 %v1041
        %v1107 = vunpack.c.h.b16 %v1041
        %v1108 = vunpack.c.l.b16 %v1042
        %v1109 = vunpack.c.h.b16 %v1042
        %v1110 = vunpack.c.l.b16 %v1043
        %v1111 = vunpack.c.h.b16 %v1043
        %v1112 = vunpack.c.l.b16 %v1044
        %v1113 = vunpack.c.h.b16 %v1044
        %v1114 = vunpack.c.l.b16 %v1045
        %v1115 = vunpack.c.h.b16 %v1045
        %v1116 = vunpack.c.l.b16 %v1046
        %v1117 = vunpack.c.h.b16 %v1046
        %v1118 = vunpack.c.l.b16 %v1047
        %v1119 = vunpack.c.h.b16 %v1047
        %v1120 = vunpack.c.l.b16 %v1048
        %v1121 = vunpack.c.h.b16 %v1048
        %v1122 = vunpack.c.l.b16 %v1049
        %v1123 = vunpack.c.h.b16 %v1049
        %v1124 = vunpack.c.l.b16 %v1050
        %v1125 = vunpack.c.h.b16 %v1050
        %v1126 = vunpack.c.l.b16 %v1051
        %v1127 = vunpack.c.h.b16 %v1051
        %v1128 = vunpack.c.l.b16 %v1052
        %v1129 = vunpack.c.h.b16 %v1052
        %v1130 = vunpack.c.l.b16 %v1053
        %v1131 = vunpack.c.h.b16 %v1053
        %v1132 = vunpack.c.l.b16 %v1054
        %v1133 = vunpack.c.h.b16 %v1054
        %v1134 = vunpack.c.l.b16 %v1055
        %v1135 = vunpack.c.h.b16 %v1055
        %v1136 = vunpack.c.l.b16 %v1056
        %v1137 = vunpack.c.h.b16 %v1056
        %v1138 = vunpack.c.l.b16 %v1057
        %v1139 = vunpack.c.h.b16 %v1057
        %v1140 = vunpack.c.l.b16 %v1058
        %v1141 = vunpack.c.h.b16 %v1058
        %v1142 = vunpack.c.l.b16 %v1059
        %v1143 = vunpack.c.h.b16 %v1059
        %v1144 = vunpack.c.l.b16 %v1060
        %v1145 = vunpack.c.h.b16 %v1060
        %v1146 = vunpack.c.l.b16 %v1061
        %v1147 = vunpack.c.h.b16 %v1061
        %v1148 = vunpack.c.l.b16 %v1062
        %v1149 = vunpack.c.h.b16 %v1062
        %v1150 = vunpack.c.l.b16 %v1063
        %v1151 = vunpack.c.h.b16 %v1063
        %v1152 = vunpack.c.l.b16 %v1064
        %v1153 = vunpack.c.h.b16 %v1064
        %v1154 = vunpack.c.l.b16 %v1065
        %v1155 = vunpack.c.h.b16 %v1065
        %v1156 = vunpack.c.l.b16 %v1066
        %v1157 = vunpack.c.h.b16 %v1066
        %v1158 = vunpack.c.l.b16 %v1067
        %v1159 = vunpack.c.h.b16 %v1067
        %v1160 = vunpack.c.l.b16 %v1068
        %v1161 = vunpack.c.h.b16 %v1068
        %v1162 = vunpack.c.l.b16 %v1069
        %v1163 = vunpack.c.h.b16 %v1069
        %v1164 = vunpack.c.l.b16 %v1070
        %v1165 = vunpack.c.h.b16 %v1070
        %v1166 = vunpack.c.l.b16 %v1071
        %v1167 = vunpack.c.h.b16 %v1071
        %v1168 = vpack.c.b16 %v1108, %v1104
        %v1169 = vpack.c.b16 %v1109, %v1105
        %v1170 = vpack.c.b16 %v1110, %v1106
        %v1171 = vpack.c.b16 %v1111, %v1107
        %v1172 = vpack.c.b16 %v1116, %v1112
        %v1173 = vpack.c.b16 %v1117, %v1113
        %v1174 = vpack.c.b16 %v1118, %v1114
        %v1175 = vpack.c.b16 %v1119, %v1115
        %v1176 = vpack.c.b16 %v1124, %v1120
        %v1177 = vpack.c.b16 %v1125, %v1121
        %v1178 = vpack.c.b16 %v1126, %v1122
        %v1179 = vpack.c.b16 %v1127, %v1123
        %v1180 = vpack.c.b16 %v1132, %v1128
        %v1181 = vpack.c.b16 %v1133, %v1129
        %v1182 = vpack.c.b16 %v1134, %v1130
        %v1183 = vpack.c.b16 %v1135, %v1131
        %v1184 = vpack.c.b16 %v1140, %v1136
        %v1185 = vpack.c.b16 %v1141, %v1137
        %v1186 = vpack.c.b16 %v1142, %v1138
        %v1187 = vpack.c.b16 %v1143, %v1139
        %v1188 = vpack.c.b16 %v1148, %v1144
        %v1189 = vpack.c.b16 %v1149, %v1145
        %v1190 = vpack.c.b16 %v1150, %v1146
        %v1191 = vpack.c.b16 %v1151, %v1147
        %v1192 = vpack.c.b16 %v1156, %v1152
        %v1193 = vpack.c.b16 %v1157, %v1153
        %v1194 = vpack.c.b16 %v1158, %v1154
        %v1195 = vpack.c.b16 %v1159, %v1155
        %v1196 = vpack.c.b16 %v1164, %v1160
        %v1197 = vpack.c.b16 %v1165, %v1161
        %v1198 = vpack.c.b16 %v1166, %v1162
        %v1199 = vpack.c.b16 %v1167, %v1163
        %1232 = vmatprep.subr.bf16.mxu0 %v1169
        %1233 = vmatpush1.bf16.msra.mxu0 %v1168
        %1234 = vmatprep.subr.bf16.mxu0 %v1173
        %1235 = vmatpush1.bf16.msra.mxu0 %v1172
        %1236 = vmatprep.subr.bf16.mxu0 %v1177
        %1237 = vmatpush1.bf16.msra.mxu0 %v1176
        %1238 = vmatprep.subr.bf16.mxu0 %v1181
        %1239 = vmatpush1.bf16.msra.mxu0 %v1180
        %1240 = vmatprep.subr.bf16.mxu0 %v1185
        %1241 = vmatpush1.bf16.msra.mxu0 %v1184
        %1242 = vmatprep.subr.bf16.mxu0 %v1189
        %1243 = vmatpush1.bf16.msra.mxu0 %v1188
        %1244 = vmatprep.subr.bf16.mxu0 %v1193
        %1245 = vmatpush1.bf16.msra.mxu0 %v1192
        %1246 = vmatprep.subr.bf16.mxu0 %v1197
        %1247 = vmatpush1.bf16.msra.mxu0 %v1196
        %1248 = vmatprep.subr.bf16.mxu0 0
        %1249 = vmatpush1.bf16.msra.mxu0 0
        %1250 = vmatprep.subr.bf16.mxu0 0
        %1251 = vmatpush1.bf16.msra.mxu0 0
        %1252 = vmatprep.subr.bf16.mxu0 0
        %1253 = vmatpush1.bf16.msra.mxu0 0
        %1254 = vmatprep.subr.bf16.mxu0 0
        %1255 = vmatpush1.bf16.msra.mxu0 0
        %1256 = vmatprep.subr.bf16.mxu0 0
        %1257 = vmatpush1.bf16.msra.mxu0 0
        %1258 = vmatprep.subr.bf16.mxu0 0
        %1259 = vmatpush1.bf16.msra.mxu0 0
        %1260 = vmatprep.subr.bf16.mxu0 0
        %1261 = vmatpush1.bf16.msra.mxu0 0
        %1262 = vmatprep.subr.bf16.mxu0 0
        %1263 = vmatpush1.bf16.msra.mxu0 0
        %1264 = vmatprep.mubr.bf16.mxu0 0
        %1265 = vmatmul.mubr.bf16.gmra.mrb[0].mxu0 %v1039
        %v1266 = vpop.f32.mrb[0].mxu0
        %v1267 = vadd.f32 0.0, %v1266
        %v1268 = vpop.f32.mrb[0].mxu0
        %v1269 = vadd.f32 0.0, %v1268
        %v1270 = vpop.f32.mrb[0].mxu0
        %v1271 = vpop.f32.mrb[0].mxu0
        %1272 = vdwg.mxu0
        %1273 = vmatprep.subr.bf16.mxu0 %v1171
        %1274 = vmatpush1.bf16.msra.mxu0 %v1170
        %1275 = vmatprep.subr.bf16.mxu0 %v1175
        %1276 = vmatpush1.bf16.msra.mxu0 %v1174
        %1277 = vmatprep.subr.bf16.mxu0 %v1179
        %1278 = vmatpush1.bf16.msra.mxu0 %v1178
        %1279 = vmatprep.subr.bf16.mxu0 %v1183
        %1280 = vmatpush1.bf16.msra.mxu0 %v1182
        %1281 = vmatprep.subr.bf16.mxu0 %v1187
        %1282 = vmatpush1.bf16.msra.mxu0 %v1186
        %1283 = vmatprep.subr.bf16.mxu0 %v1191
        %1284 = vmatpush1.bf16.msra.mxu0 %v1190
        %1285 = vmatprep.subr.bf16.mxu0 %v1195
        %1286 = vmatpush1.bf16.msra.mxu0 %v1194
        %1287 = vmatprep.subr.bf16.mxu0 %v1199
        %1288 = vmatpush1.bf16.msra.mxu0 %v1198
        %1289 = vmatprep.subr.bf16.mxu0 0
        %1290 = vmatpush1.bf16.msra.mxu0 0
        %1291 = vmatprep.subr.bf16.mxu0 0
        %1292 = vmatpush1.bf16.msra.mxu0 0
        %1293 = vmatprep.subr.bf16.mxu0 0
        %1294 = vmatpush1.bf16.msra.mxu0 0
        %1295 = vmatprep.subr.bf16.mxu0 0
        %1296 = vmatpush1.bf16.msra.mxu0 0
        %1297 = vmatprep.subr.bf16.mxu0 0
        %1298 = vmatpush1.bf16.msra.mxu0 0
        %1299 = vmatprep.subr.bf16.mxu0 0
        %1300 = vmatpush1.bf16.msra.mxu0 0
        %1301 = vmatprep.subr.bf16.mxu0 0
        %1302 = vmatpush1.bf16.msra.mxu0 0
        %1303 = vmatprep.subr.bf16.mxu0 0
        %1304 = vmatpush1.bf16.msra.mxu0 0
        %1305 = vmatprep.mubr.bf16.mxu0 0
        %1306 = vmatmul.mubr.bf16.gmra.mrb[0].mxu0 %v1039
        %v1307 = vpop.f32.mrb[0].mxu0
        %v1308 = vadd.f32 0.0, %v1307
        %v1309 = vpop.f32.mrb[0].mxu0
        %v1310 = vadd.f32 0.0, %v1309
        %v1311 = vpop.f32.mrb[0].mxu0
        %v1312 = vpop.f32.mrb[0].mxu0
        %1313 = vdwg.mxu0
        %v1318 = vcombine.low %v1267, %v1269
        %v1319 = vcombine.low %v1308, %v1310
        %v1322 = vadd.f32 %v1035, %v1318
        %v1323 = vadd.f32 %v1036, %v1319
        %v1324 = vxor.u32 %v1322, 2147483648
        %v1325 = vmul.f32 %v1324, 1.442695
        %v1326 = vpow.pop %v1325
        %v1327 = vadd.f32 %v1326, 1.0
        %v1328 = vrcp.pop %v1327
        %v1329 = vmul.f32 1.0, %v1328
        %v1331 = vrot.slane %v1322, 4
        %v1333 = vxor.u32 %v1331, 2147483648
        %v1334 = vmul.f32 %v1333, 1.442695
        %v1335 = vpow.pop %v1334
        %v1336 = vadd.f32 %v1335, 1.0
        %v1337 = vrcp.pop %v1336
        %v1338 = vmul.f32 1.0, %v1337
        %v1339 = vtanh.pop %v1323
        %v1341 = vrot.slane %v1323, 4
        %v1343 = vxor.u32 %v1341, 2147483648
        %v1344 = vmul.f32 %v1343, 1.442695
        %v1345 = vpow.pop %v1344
        %v1346 = vadd.f32 %v1345, 1.0
        %v1347 = vrcp.pop %v1346
        %v1348 = vmul.f32 1.0, %v1347
        %v1349 = vmul.f32 %v1338, %v1027
        %v1350 = vmul.f32 %v1329, %v1339
        %v1351 = vadd.f32 %v1349, %v1350
        %v1352 = vtanh.pop %v1351
        %v1353 = vmul.f32 %v1348, %v1352
        %1355 = vset.pattern.permute.xlu0 0
        %1356 = vperm.xlu0 %1355, %v1038
        %v1357 = vpop.permute.xlu0 %1356
        %v1359 = vmul.f32 %v1357, %v1353
        %v1360 = vsub.f32 1.0, %v1038
        %1362 = vset.pattern.permute.xlu0 0
        %1363 = vperm.xlu0 %1362, %v1360
        %v1364 = vpop.permute.xlu0 %1363
        %v1366 = vmul.f32 %v1364, %v1024
        %v1367 = vadd.f32 %v1359, %v1366
        %v1368 = vmul.f32 %v1357, %v1351
        %v1369 = vmul.f32 %v1364, %v1027
        %v1370 = vadd.f32 %v1368, %v1369
        %v1371 = vmul.f32 %v1357, %v1367
        %s1372 = scalar_lea.vmem %s304, %s1032 [#allocation5]
        %1373 = vst [vmem:[%s1372] sm:$0xf] %v1371
        %s1374 = scalar_select %p344, 3, 4
        %s1375 = smul.u32 %s1374, 4
        %s1376 = smul.addr %s1375, 4
        %s1377 = scalar_lea.vmem %s271, %s1376 [#allocation4]
        %v1378 = vld [vmem:[%s1377] sm:$0xff]
        %v1379 = vld [vmem:[%s1377 + $0x8] sm:$0xff]
        %s1380 = scalar_lea.vmem %s319, %s1375
        %v1381 = vld [vmem:[%s1380] sm:$0xf]
        %v1382 = vpack.c.bf16 %v1367, %v1367
        %v1383 = vld [vmem:[%s329] sm:$0xff]
        %v1384 = vld [vmem:[%s329 + $0x8] sm:$0xff]
        %v1385 = vld [vmem:[%s329 + $0x10] sm:$0xff]
        %v1386 = vld [vmem:[%s329 + $0x18] sm:$0xff]
        %v1387 = vld [vmem:[%s329 + $0x20] sm:$0xff]
        %v1388 = vld [vmem:[%s329 + $0x28] sm:$0xff]
        %v1389 = vld [vmem:[%s329 + $0x30] sm:$0xff]
        %v1390 = vld [vmem:[%s329 + $0x38] sm:$0xff]
        %v1391 = vld [vmem:[%s329 + $0x40] sm:$0xff]
        %v1392 = vld [vmem:[%s329 + $0x48] sm:$0xff]
        %v1393 = vld [vmem:[%s329 + $0x50] sm:$0xff]
        %v1394 = vld [vmem:[%s329 + $0x58] sm:$0xff]
        %v1395 = vld [vmem:[%s329 + $0x60] sm:$0xff]
        %v1396 = vld [vmem:[%s329 + $0x68] sm:$0xff]
        %v1397 = vld [vmem:[%s329 + $0x70] sm:$0xff]
        %v1398 = vld [vmem:[%s329 + $0x78] sm:$0xff]
        %v1399 = vld [vmem:[%s329 + $0x80] sm:$0xff]
        %v1400 = vld [vmem:[%s329 + $0x88] sm:$0xff]
        %v1401 = vld [vmem:[%s329 + $0x90] sm:$0xff]
        %v1402 = vld [vmem:[%s329 + $0x98] sm:$0xff]
        %v1403 = vld [vmem:[%s329 + $0xa0] sm:$0xff]
        %v1404 = vld [vmem:[%s329 + $0xa8] sm:$0xff]
        %v1405 = vld [vmem:[%s329 + $0xb0] sm:$0xff]
        %v1406 = vld [vmem:[%s329 + $0xb8] sm:$0xff]
        %v1407 = vld [vmem:[%s329 + $0xc0] sm:$0xff]
        %v1408 = vld [vmem:[%s329 + $0xc8] sm:$0xff]
        %v1409 = vld [vmem:[%s329 + $0xd0] sm:$0xff]
        %v1410 = vld [vmem:[%s329 + $0xd8] sm:$0xff]
        %v1411 = vld [vmem:[%s329 + $0xe0] sm:$0xff]
        %v1412 = vld [vmem:[%s329 + $0xe8] sm:$0xff]
        %v1413 = vld [vmem:[%s329 + $0xf0] sm:$0xff]
        %v1414 = vld [vmem:[%s329 + $0xf8] sm:$0xff]
        %v1447 = vunpack.c.l.b16 %v1383
        %v1448 = vunpack.c.h.b16 %v1383
        %v1449 = vunpack.c.l.b16 %v1384
        %v1450 = vunpack.c.h.b16 %v1384
        %v1451 = vunpack.c.l.b16 %v1385
        %v1452 = vunpack.c.h.b16 %v1385
        %v1453 = vunpack.c.l.b16 %v1386
        %v1454 = vunpack.c.h.b16 %v1386
        %v1455 = vunpack.c.l.b16 %v1387
        %v1456 = vunpack.c.h.b16 %v1387
        %v1457 = vunpack.c.l.b16 %v1388
        %v1458 = vunpack.c.h.b16 %v1388
        %v1459 = vunpack.c.l.b16 %v1389
        %v1460 = vunpack.c.h.b16 %v1389
        %v1461 = vunpack.c.l.b16 %v1390
        %v1462 = vunpack.c.h.b16 %v1390
        %v1463 = vunpack.c.l.b16 %v1391
        %v1464 = vunpack.c.h.b16 %v1391
        %v1465 = vunpack.c.l.b16 %v1392
        %v1466 = vunpack.c.h.b16 %v1392
        %v1467 = vunpack.c.l.b16 %v1393
        %v1468 = vunpack.c.h.b16 %v1393
        %v1469 = vunpack.c.l.b16 %v1394
        %v1470 = vunpack.c.h.b16 %v1394
        %v1471 = vunpack.c.l.b16 %v1395
        %v1472 = vunpack.c.h.b16 %v1395
        %v1473 = vunpack.c.l.b16 %v1396
        %v1474 = vunpack.c.h.b16 %v1396
        %v1475 = vunpack.c.l.b16 %v1397
        %v1476 = vunpack.c.h.b16 %v1397
        %v1477 = vunpack.c.l.b16 %v1398
        %v1478 = vunpack.c.h.b16 %v1398
        %v1479 = vunpack.c.l.b16 %v1399
        %v1480 = vunpack.c.h.b16 %v1399
        %v1481 = vunpack.c.l.b16 %v1400
        %v1482 = vunpack.c.h.b16 %v1400
        %v1483 = vunpack.c.l.b16 %v1401
        %v1484 = vunpack.c.h.b16 %v1401
        %v1485 = vunpack.c.l.b16 %v1402
        %v1486 = vunpack.c.h.b16 %v1402
        %v1487 = vunpack.c.l.b16 %v1403
        %v1488 = vunpack.c.h.b16 %v1403
        %v1489 = vunpack.c.l.b16 %v1404
        %v1490 = vunpack.c.h.b16 %v1404
        %v1491 = vunpack.c.l.b16 %v1405
        %v1492 = vunpack.c.h.b16 %v1405
        %v1493 = vunpack.c.l.b16 %v1406
        %v1494 = vunpack.c.h.b16 %v1406
        %v1495 = vunpack.c.l.b16 %v1407
        %v1496 = vunpack.c.h.b16 %v1407
        %v1497 = vunpack.c.l.b16 %v1408
        %v1498 = vunpack.c.h.b16 %v1408
        %v1499 = vunpack.c.l.b16 %v1409
        %v1500 = vunpack.c.h.b16 %v1409
        %v1501 = vunpack.c.l.b16 %v1410
        %v1502 = vunpack.c.h.b16 %v1410
        %v1503 = vunpack.c.l.b16 %v1411
        %v1504 = vunpack.c.h.b16 %v1411
        %v1505 = vunpack.c.l.b16 %v1412
        %v1506 = vunpack.c.h.b16 %v1412
        %v1507 = vunpack.c.l.b16 %v1413
        %v1508 = vunpack.c.h.b16 %v1413
        %v1509 = vunpack.c.l.b16 %v1414
        %v1510 = vunpack.c.h.b16 %v1414
        %v1511 = vpack.c.b16 %v1451, %v1447
        %v1512 = vpack.c.b16 %v1452, %v1448
        %v1513 = vpack.c.b16 %v1453, %v1449
        %v1514 = vpack.c.b16 %v1454, %v1450
        %v1515 = vpack.c.b16 %v1459, %v1455
        %v1516 = vpack.c.b16 %v1460, %v1456
        %v1517 = vpack.c.b16 %v1461, %v1457
        %v1518 = vpack.c.b16 %v1462, %v1458
        %v1519 = vpack.c.b16 %v1467, %v1463
        %v1520 = vpack.c.b16 %v1468, %v1464
        %v1521 = vpack.c.b16 %v1469, %v1465
        %v1522 = vpack.c.b16 %v1470, %v1466
        %v1523 = vpack.c.b16 %v1475, %v1471
        %v1524 = vpack.c.b16 %v1476, %v1472
        %v1525 = vpack.c.b16 %v1477, %v1473
        %v1526 = vpack.c.b16 %v1478, %v1474
        %v1527 = vpack.c.b16 %v1483, %v1479
        %v1528 = vpack.c.b16 %v1484, %v1480
        %v1529 = vpack.c.b16 %v1485, %v1481
        %v1530 = vpack.c.b16 %v1486, %v1482
        %v1531 = vpack.c.b16 %v1491, %v1487
        %v1532 = vpack.c.b16 %v1492, %v1488
        %v1533 = vpack.c.b16 %v1493, %v1489
        %v1534 = vpack.c.b16 %v1494, %v1490
        %v1535 = vpack.c.b16 %v1499, %v1495
        %v1536 = vpack.c.b16 %v1500, %v1496
        %v1537 = vpack.c.b16 %v1501, %v1497
        %v1538 = vpack.c.b16 %v1502, %v1498
        %v1539 = vpack.c.b16 %v1507, %v1503
        %v1540 = vpack.c.b16 %v1508, %v1504
        %v1541 = vpack.c.b16 %v1509, %v1505
        %v1542 = vpack.c.b16 %v1510, %v1506
        %1575 = vmatprep.subr.bf16.mxu0 %v1512
        %1576 = vmatpush1.bf16.msra.mxu0 %v1511
        %1577 = vmatprep.subr.bf16.mxu0 %v1516
        %1578 = vmatpush1.bf16.msra.mxu0 %v1515
        %1579 = vmatprep.subr.bf16.mxu0 %v1520
        %1580 = vmatpush1.bf16.msra.mxu0 %v1519
        %1581 = vmatprep.subr.bf16.mxu0 %v1524
        %1582 = vmatpush1.bf16.msra.mxu0 %v1523
        %1583 = vmatprep.subr.bf16.mxu0 %v1528
        %1584 = vmatpush1.bf16.msra.mxu0 %v1527
        %1585 = vmatprep.subr.bf16.mxu0 %v1532
        %1586 = vmatpush1.bf16.msra.mxu0 %v1531
        %1587 = vmatprep.subr.bf16.mxu0 %v1536
        %1588 = vmatpush1.bf16.msra.mxu0 %v1535
        %1589 = vmatprep.subr.bf16.mxu0 %v1540
        %1590 = vmatpush1.bf16.msra.mxu0 %v1539
        %1591 = vmatprep.subr.bf16.mxu0 0
        %1592 = vmatpush1.bf16.msra.mxu0 0
        %1593 = vmatprep.subr.bf16.mxu0 0
        %1594 = vmatpush1.bf16.msra.mxu0 0
        %1595 = vmatprep.subr.bf16.mxu0 0
        %1596 = vmatpush1.bf16.msra.mxu0 0
        %1597 = vmatprep.subr.bf16.mxu0 0
        %1598 = vmatpush1.bf16.msra.mxu0 0
        %1599 = vmatprep.subr.bf16.mxu0 0
        %1600 = vmatpush1.bf16.msra.mxu0 0
        %1601 = vmatprep.subr.bf16.mxu0 0
        %1602 = vmatpush1.bf16.msra.mxu0 0
        %1603 = vmatprep.subr.bf16.mxu0 0
        %1604 = vmatpush1.bf16.msra.mxu0 0
        %1605 = vmatprep.subr.bf16.mxu0 0
        %1606 = vmatpush1.bf16.msra.mxu0 0
        %1607 = vmatprep.mubr.bf16.mxu0 0
        %1608 = vmatmul.mubr.bf16.gmra.mrb[0].mxu0 %v1382
        %v1609 = vpop.f32.mrb[0].mxu0
        %v1610 = vadd.f32 0.0, %v1609
        %v1611 = vpop.f32.mrb[0].mxu0
        %v1612 = vadd.f32 0.0, %v1611
        %v1613 = vpop.f32.mrb[0].mxu0
        %v1614 = vpop.f32.mrb[0].mxu0
        %1615 = vdwg.mxu0
        %1616 = vmatprep.subr.bf16.mxu0 %v1514
        %1617 = vmatpush1.bf16.msra.mxu0 %v1513
        %1618 = vmatprep.subr.bf16.mxu0 %v1518
        %1619 = vmatpush1.bf16.msra.mxu0 %v1517
        %1620 = vmatprep.subr.bf16.mxu0 %v1522
        %1621 = vmatpush1.bf16.msra.mxu0 %v1521
        %1622 = vmatprep.subr.bf16.mxu0 %v1526
        %1623 = vmatpush1.bf16.msra.mxu0 %v1525
        %1624 = vmatprep.subr.bf16.mxu0 %v1530
        %1625 = vmatpush1.bf16.msra.mxu0 %v1529
        %1626 = vmatprep.subr.bf16.mxu0 %v1534
        %1627 = vmatpush1.bf16.msra.mxu0 %v1533
        %1628 = vmatprep.subr.bf16.mxu0 %v1538
        %1629 = vmatpush1.bf16.msra.mxu0 %v1537
        %1630 = vmatprep.subr.bf16.mxu0 %v1542
        %1631 = vmatpush1.bf16.msra.mxu0 %v1541
        %1632 = vmatprep.subr.bf16.mxu0 0
        %1633 = vmatpush1.bf16.msra.mxu0 0
        %1634 = vmatprep.subr.bf16.mxu0 0
        %1635 = vmatpush1.bf16.msra.mxu0 0
        %1636 = vmatprep.subr.bf16.mxu0 0
        %1637 = vmatpush1.bf16.msra.mxu0 0
        %1638 = vmatprep.subr.bf16.mxu0 0
        %1639 = vmatpush1.bf16.msra.mxu0 0
        %1640 = vmatprep.subr.bf16.mxu0 0
        %1641 = vmatpush1.bf16.msra.mxu0 0
        %1642 = vmatprep.subr.bf16.mxu0 0
        %1643 = vmatpush1.bf16.msra.mxu0 0
        %1644 = vmatprep.subr.bf16.mxu0 0
        %1645 = vmatpush1.bf16.msra.mxu0 0
        %1646 = vmatprep.subr.bf16.mxu0 0
        %1647 = vmatpush1.bf16.msra.mxu0 0
        %1648 = vmatprep.mubr.bf16.mxu0 0
        %1649 = vmatmul.mubr.bf16.gmra.mrb[0].mxu0 %v1382
        %v1650 = vpop.f32.mrb[0].mxu0
        %v1651 = vadd.f32 0.0, %v1650
        %v1652 = vpop.f32.mrb[0].mxu0
        %v1653 = vadd.f32 0.0, %v1652
        %v1654 = vpop.f32.mrb[0].mxu0
        %v1655 = vpop.f32.mrb[0].mxu0
        %1656 = vdwg.mxu0
        %v1661 = vcombine.low %v1610, %v1612
        %v1662 = vcombine.low %v1651, %v1653
        %v1665 = vadd.f32 %v1378, %v1661
        %v1666 = vadd.f32 %v1379, %v1662
        %v1667 = vxor.u32 %v1665, 2147483648
        %v1668 = vmul.f32 %v1667, 1.442695
        %v1669 = vpow.pop %v1668
        %v1670 = vadd.f32 %v1669, 1.0
        %v1671 = vrcp.pop %v1670
        %v1672 = vmul.f32 1.0, %v1671
        %v1674 = vrot.slane %v1665, 4
        %v1676 = vxor.u32 %v1674, 2147483648
        %v1677 = vmul.f32 %v1676, 1.442695
        %v1678 = vpow.pop %v1677
        %v1679 = vadd.f32 %v1678, 1.0
        %v1680 = vrcp.pop %v1679
        %v1681 = vmul.f32 1.0, %v1680
        %v1682 = vtanh.pop %v1666
        %v1684 = vrot.slane %v1666, 4
        %v1686 = vxor.u32 %v1684, 2147483648
        %v1687 = vmul.f32 %v1686, 1.442695
        %v1688 = vpow.pop %v1687
        %v1689 = vadd.f32 %v1688, 1.0
        %v1690 = vrcp.pop %v1689
        %v1691 = vmul.f32 1.0, %v1690
        %v1692 = vmul.f32 %v1681, %v1370
        %v1693 = vmul.f32 %v1672, %v1682
        %v1694 = vadd.f32 %v1692, %v1693
        %v1695 = vtanh.pop %v1694
        %v1696 = vmul.f32 %v1691, %v1695
        %1698 = vset.pattern.permute.xlu0 0
        %1699 = vperm.xlu0 %1698, %v1381
        %v1700 = vpop.permute.xlu0 %1699
        %v1702 = vmul.f32 %v1700, %v1696
        %v1703 = vsub.f32 1.0, %v1381
        %1705 = vset.pattern.permute.xlu0 0
        %1706 = vperm.xlu0 %1705, %v1703
        %v1707 = vpop.permute.xlu0 %1706
        %v1709 = vmul.f32 %v1707, %v1367
        %v1710 = vadd.f32 %v1702, %v1709
        %v1711 = vmul.f32 %v1700, %v1694
        %v1712 = vmul.f32 %v1707, %v1370
        %v1713 = vadd.f32 %v1711, %v1712
        %v1714 = vmul.f32 %v1700, %v1710
        %s1715 = scalar_lea.vmem %s304, %s1375 [#allocation5]
        %1716 = vst [vmem:[%s1715] sm:$0xf] %v1714
        %s1717 = scalar_select %p344, 4, 3
        %s1718 = smul.u32 %s1717, 4
        %s1719 = smul.addr %s1718, 4
        %s1720 = scalar_lea.vmem %s271, %s1719 [#allocation4]
        %v1721 = vld [vmem:[%s1720] sm:$0xff]
        %v1722 = vld [vmem:[%s1720 + $0x8] sm:$0xff]
        %s1723 = scalar_lea.vmem %s319, %s1718
        %v1724 = vld [vmem:[%s1723] sm:$0xf]
        %v1725 = vpack.c.bf16 %v1710, %v1710
        %v1726 = vld [vmem:[%s329] sm:$0xff]
        %v1727 = vld [vmem:[%s329 + $0x8] sm:$0xff]
        %v1728 = vld [vmem:[%s329 + $0x10] sm:$0xff]
        %v1729 = vld [vmem:[%s329 + $0x18] sm:$0xff]
        %v1730 = vld [vmem:[%s329 + $0x20] sm:$0xff]
        %v1731 = vld [vmem:[%s329 + $0x28] sm:$0xff]
        %v1732 = vld [vmem:[%s329 + $0x30] sm:$0xff]
        %v1733 = vld [vmem:[%s329 + $0x38] sm:$0xff]
        %v1734 = vld [vmem:[%s329 + $0x40] sm:$0xff]
        %v1735 = vld [vmem:[%s329 + $0x48] sm:$0xff]
        %v1736 = vld [vmem:[%s329 + $0x50] sm:$0xff]
        %v1737 = vld [vmem:[%s329 + $0x58] sm:$0xff]
        %v1738 = vld [vmem:[%s329 + $0x60] sm:$0xff]
        %v1739 = vld [vmem:[%s329 + $0x68] sm:$0xff]
        %v1740 = vld [vmem:[%s329 + $0x70] sm:$0xff]
        %v1741 = vld [vmem:[%s329 + $0x78] sm:$0xff]
        %v1742 = vld [vmem:[%s329 + $0x80] sm:$0xff]
        %v1743 = vld [vmem:[%s329 + $0x88] sm:$0xff]
        %v1744 = vld [vmem:[%s329 + $0x90] sm:$0xff]
        %v1745 = vld [vmem:[%s329 + $0x98] sm:$0xff]
        %v1746 = vld [vmem:[%s329 + $0xa0] sm:$0xff]
        %v1747 = vld [vmem:[%s329 + $0xa8] sm:$0xff]
        %v1748 = vld [vmem:[%s329 + $0xb0] sm:$0xff]
        %v1749 = vld [vmem:[%s329 + $0xb8] sm:$0xff]
        %v1750 = vld [vmem:[%s329 + $0xc0] sm:$0xff]
        %v1751 = vld [vmem:[%s329 + $0xc8] sm:$0xff]
        %v1752 = vld [vmem:[%s329 + $0xd0] sm:$0xff]
        %v1753 = vld [vmem:[%s329 + $0xd8] sm:$0xff]
        %v1754 = vld [vmem:[%s329 + $0xe0] sm:$0xff]
        %v1755 = vld [vmem:[%s329 + $0xe8] sm:$0xff]
        %v1756 = vld [vmem:[%s329 + $0xf0] sm:$0xff]
        %v1757 = vld [vmem:[%s329 + $0xf8] sm:$0xff]
        %v1790 = vunpack.c.l.b16 %v1726
        %v1791 = vunpack.c.h.b16 %v1726
        %v1792 = vunpack.c.l.b16 %v1727
        %v1793 = vunpack.c.h.b16 %v1727
        %v1794 = vunpack.c.l.b16 %v1728
        %v1795 = vunpack.c.h.b16 %v1728
        %v1796 = vunpack.c.l.b16 %v1729
        %v1797 = vunpack.c.h.b16 %v1729
        %v1798 = vunpack.c.l.b16 %v1730
        %v1799 = vunpack.c.h.b16 %v1730
        %v1800 = vunpack.c.l.b16 %v1731
        %v1801 = vunpack.c.h.b16 %v1731
        %v1802 = vunpack.c.l.b16 %v1732
        %v1803 = vunpack.c.h.b16 %v1732
        %v1804 = vunpack.c.l.b16 %v1733
        %v1805 = vunpack.c.h.b16 %v1733
        %v1806 = vunpack.c.l.b16 %v1734
        %v1807 = vunpack.c.h.b16 %v1734
        %v1808 = vunpack.c.l.b16 %v1735
        %v1809 = vunpack.c.h.b16 %v1735
        %v1810 = vunpack.c.l.b16 %v1736
        %v1811 = vunpack.c.h.b16 %v1736
        %v1812 = vunpack.c.l.b16 %v1737
        %v1813 = vunpack.c.h.b16 %v1737
        %v1814 = vunpack.c.l.b16 %v1738
        %v1815 = vunpack.c.h.b16 %v1738
        %v1816 = vunpack.c.l.b16 %v1739
        %v1817 = vunpack.c.h.b16 %v1739
        %v1818 = vunpack.c.l.b16 %v1740
        %v1819 = vunpack.c.h.b16 %v1740
        %v1820 = vunpack.c.l.b16 %v1741
        %v1821 = vunpack.c.h.b16 %v1741
        %v1822 = vunpack.c.l.b16 %v1742
        %v1823 = vunpack.c.h.b16 %v1742
        %v1824 = vunpack.c.l.b16 %v1743
        %v1825 = vunpack.c.h.b16 %v1743
        %v1826 = vunpack.c.l.b16 %v1744
        %v1827 = vunpack.c.h.b16 %v1744
        %v1828 = vunpack.c.l.b16 %v1745
        %v1829 = vunpack.c.h.b16 %v1745
        %v1830 = vunpack.c.l.b16 %v1746
        %v1831 = vunpack.c.h.b16 %v1746
        %v1832 = vunpack.c.l.b16 %v1747
        %v1833 = vunpack.c.h.b16 %v1747
        %v1834 = vunpack.c.l.b16 %v1748
        %v1835 = vunpack.c.h.b16 %v1748
        %v1836 = vunpack.c.l.b16 %v1749
        %v1837 = vunpack.c.h.b16 %v1749
        %v1838 = vunpack.c.l.b16 %v1750
        %v1839 = vunpack.c.h.b16 %v1750
        %v1840 = vunpack.c.l.b16 %v1751
        %v1841 = vunpack.c.h.b16 %v1751
        %v1842 = vunpack.c.l.b16 %v1752
        %v1843 = vunpack.c.h.b16 %v1752
        %v1844 = vunpack.c.l.b16 %v1753
        %v1845 = vunpack.c.h.b16 %v1753
        %v1846 = vunpack.c.l.b16 %v1754
        %v1847 = vunpack.c.h.b16 %v1754
        %v1848 = vunpack.c.l.b16 %v1755
        %v1849 = vunpack.c.h.b16 %v1755
        %v1850 = vunpack.c.l.b16 %v1756
        %v1851 = vunpack.c.h.b16 %v1756
        %v1852 = vunpack.c.l.b16 %v1757
        %v1853 = vunpack.c.h.b16 %v1757
        %v1854 = vpack.c.b16 %v1794, %v1790
        %v1855 = vpack.c.b16 %v1795, %v1791
        %v1856 = vpack.c.b16 %v1796, %v1792
        %v1857 = vpack.c.b16 %v1797, %v1793
        %v1858 = vpack.c.b16 %v1802, %v1798
        %v1859 = vpack.c.b16 %v1803, %v1799
        %v1860 = vpack.c.b16 %v1804, %v1800
        %v1861 = vpack.c.b16 %v1805, %v1801
        %v1862 = vpack.c.b16 %v1810, %v1806
        %v1863 = vpack.c.b16 %v1811, %v1807
        %v1864 = vpack.c.b16 %v1812, %v1808
        %v1865 = vpack.c.b16 %v1813, %v1809
        %v1866 = vpack.c.b16 %v1818, %v1814
        %v1867 = vpack.c.b16 %v1819, %v1815
        %v1868 = vpack.c.b16 %v1820, %v1816
        %v1869 = vpack.c.b16 %v1821, %v1817
        %v1870 = vpack.c.b16 %v1826, %v1822
        %v1871 = vpack.c.b16 %v1827, %v1823
        %v1872 = vpack.c.b16 %v1828, %v1824
        %v1873 = vpack.c.b16 %v1829, %v1825
        %v1874 = vpack.c.b16 %v1834, %v1830
        %v1875 = vpack.c.b16 %v1835, %v1831
        %v1876 = vpack.c.b16 %v1836, %v1832
        %v1877 = vpack.c.b16 %v1837, %v1833
        %v1878 = vpack.c.b16 %v1842, %v1838
        %v1879 = vpack.c.b16 %v1843, %v1839
        %v1880 = vpack.c.b16 %v1844, %v1840
        %v1881 = vpack.c.b16 %v1845, %v1841
        %v1882 = vpack.c.b16 %v1850, %v1846
        %v1883 = vpack.c.b16 %v1851, %v1847
        %v1884 = vpack.c.b16 %v1852, %v1848
        %v1885 = vpack.c.b16 %v1853, %v1849
        %1918 = vmatprep.subr.bf16.mxu0 %v1855
        %1919 = vmatpush1.bf16.msra.mxu0 %v1854
        %1920 = vmatprep.subr.bf16.mxu0 %v1859
        %1921 = vmatpush1.bf16.msra.mxu0 %v1858
        %1922 = vmatprep.subr.bf16.mxu0 %v1863
        %1923 = vmatpush1.bf16.msra.mxu0 %v1862
        %1924 = vmatprep.subr.bf16.mxu0 %v1867
        %1925 = vmatpush1.bf16.msra.mxu0 %v1866
        %1926 = vmatprep.subr.bf16.mxu0 %v1871
        %1927 = vmatpush1.bf16.msra.mxu0 %v1870
        %1928 = vmatprep.subr.bf16.mxu0 %v1875
        %1929 = vmatpush1.bf16.msra.mxu0 %v1874
        %1930 = vmatprep.subr.bf16.mxu0 %v1879
        %1931 = vmatpush1.bf16.msra.mxu0 %v1878
        %1932 = vmatprep.subr.bf16.mxu0 %v1883
        %1933 = vmatpush1.bf16.msra.mxu0 %v1882
        %1934 = vmatprep.subr.bf16.mxu0 0
        %1935 = vmatpush1.bf16.msra.mxu0 0
        %1936 = vmatprep.subr.bf16.mxu0 0
        %1937 = vmatpush1.bf16.msra.mxu0 0
        %1938 = vmatprep.subr.bf16.mxu0 0
        %1939 = vmatpush1.bf16.msra.mxu0 0
        %1940 = vmatprep.subr.bf16.mxu0 0
        %1941 = vmatpush1.bf16.msra.mxu0 0
        %1942 = vmatprep.subr.bf16.mxu0 0
        %1943 = vmatpush1.bf16.msra.mxu0 0
        %1944 = vmatprep.subr.bf16.mxu0 0
        %1945 = vmatpush1.bf16.msra.mxu0 0
        %1946 = vmatprep.subr.bf16.mxu0 0
        %1947 = vmatpush1.bf16.msra.mxu0 0
        %1948 = vmatprep.subr.bf16.mxu0 0
        %1949 = vmatpush1.bf16.msra.mxu0 0
        %1950 = vmatprep.mubr.bf16.mxu0 0
        %1951 = vmatmul.mubr.bf16.gmra.mrb[0].mxu0 %v1725
        %v1952 = vpop.f32.mrb[0].mxu0
        %v1953 = vadd.f32 0.0, %v1952
        %v1954 = vpop.f32.mrb[0].mxu0
        %v1955 = vadd.f32 0.0, %v1954
        %v1956 = vpop.f32.mrb[0].mxu0
        %v1957 = vpop.f32.mrb[0].mxu0
        %1958 = vdwg.mxu0
        %1959 = vmatprep.subr.bf16.mxu0 %v1857
        %1960 = vmatpush1.bf16.msra.mxu0 %v1856
        %1961 = vmatprep.subr.bf16.mxu0 %v1861
        %1962 = vmatpush1.bf16.msra.mxu0 %v1860
        %1963 = vmatprep.subr.bf16.mxu0 %v1865
        %1964 = vmatpush1.bf16.msra.mxu0 %v1864
        %1965 = vmatprep.subr.bf16.mxu0 %v1869
        %1966 = vmatpush1.bf16.msra.mxu0 %v1868
        %1967 = vmatprep.subr.bf16.mxu0 %v1873
        %1968 = vmatpush1.bf16.msra.mxu0 %v1872
        %1969 = vmatprep.subr.bf16.mxu0 %v1877
        %1970 = vmatpush1.bf16.msra.mxu0 %v1876
        %1971 = vmatprep.subr.bf16.mxu0 %v1881
        %1972 = vmatpush1.bf16.msra.mxu0 %v1880
        %1973 = vmatprep.subr.bf16.mxu0 %v1885
        %1974 = vmatpush1.bf16.msra.mxu0 %v1884
        %1975 = vmatprep.subr.bf16.mxu0 0
        %1976 = vmatpush1.bf16.msra.mxu0 0
        %1977 = vmatprep.subr.bf16.mxu0 0
        %1978 = vmatpush1.bf16.msra.mxu0 0
        %1979 = vmatprep.subr.bf16.mxu0 0
        %1980 = vmatpush1.bf16.msra.mxu0 0
        %1981 = vmatprep.subr.bf16.mxu0 0
        %1982 = vmatpush1.bf16.msra.mxu0 0
        %1983 = vmatprep.subr.bf16.mxu0 0
        %1984 = vmatpush1.bf16.msra.mxu0 0
        %1985 = vmatprep.subr.bf16.mxu0 0
        %1986 = vmatpush1.bf16.msra.mxu0 0
        %1987 = vmatprep.subr.bf16.mxu0 0
        %1988 = vmatpush1.bf16.msra.mxu0 0
        %1989 = vmatprep.subr.bf16.mxu0 0
        %1990 = vmatpush1.bf16.msra.mxu0 0
        %1991 = vmatprep.mubr.bf16.mxu0 0
        %1992 = vmatmul.mubr.bf16.gmra.mrb[0].mxu0 %v1725
        %v1993 = vpop.f32.mrb[0].mxu0
        %v1994 = vadd.f32 0.0, %v1993
        %v1995 = vpop.f32.mrb[0].mxu0
        %v1996 = vadd.f32 0.0, %v1995
        %v1997 = vpop.f32.mrb[0].mxu0
        %v1998 = vpop.f32.mrb[0].mxu0
        %1999 = vdwg.mxu0
        %v2004 = vcombine.low %v1953, %v1955
        %v2005 = vcombine.low %v1994, %v1996
        %v2008 = vadd.f32 %v1721, %v2004
        %v2009 = vadd.f32 %v1722, %v2005
        %v2010 = vxor.u32 %v2008, 2147483648
        %v2011 = vmul.f32 %v2010, 1.442695
        %v2012 = vpow.pop %v2011
        %v2013 = vadd.f32 %v2012, 1.0
        %v2014 = vrcp.pop %v2013
        %v2015 = vmul.f32 1.0, %v2014
        %v2017 = vrot.slane %v2008, 4
        %v2019 = vxor.u32 %v2017, 2147483648
        %v2020 = vmul.f32 %v2019, 1.442695
        %v2021 = vpow.pop %v2020
        %v2022 = vadd.f32 %v2021, 1.0
        %v2023 = vrcp.pop %v2022
        %v2024 = vmul.f32 1.0, %v2023
        %v2025 = vtanh.pop %v2009
        %v2027 = vrot.slane %v2009, 4
        %v2029 = vxor.u32 %v2027, 2147483648
        %v2030 = vmul.f32 %v2029, 1.442695
        %v2031 = vpow.pop %v2030
        %v2032 = vadd.f32 %v2031, 1.0
        %v2033 = vrcp.pop %v2032
        %v2034 = vmul.f32 1.0, %v2033
        %v2035 = vmul.f32 %v2024, %v1713
        %v2036 = vmul.f32 %v2015, %v2025
        %v2037 = vadd.f32 %v2035, %v2036
        %v2038 = vtanh.pop %v2037
        %v2039 = vmul.f32 %v2034, %v2038
        %2041 = vset.pattern.permute.xlu0 0
        %2042 = vperm.xlu0 %2041, %v1724
        %v2043 = vpop.permute.xlu0 %2042
        %v2045 = vmul.f32 %v2043, %v2039
        %v2046 = vsub.f32 1.0, %v1724
        %2048 = vset.pattern.permute.xlu0 0
        %2049 = vperm.xlu0 %2048, %v2046
        %v2050 = vpop.permute.xlu0 %2049
        %v2052 = vmul.f32 %v2050, %v1710
        %v2053 = vadd.f32 %v2045, %v2052
        %v2054 = vmul.f32 %v2043, %v2037
        %v2055 = vmul.f32 %v2050, %v1713
        %v2056 = vadd.f32 %v2054, %v2055
        %v2057 = vmul.f32 %v2043, %v2053
        %s2058 = scalar_lea.vmem %s304, %s1718 [#allocation5]
        %2059 = vst [vmem:[%s2058] sm:$0xf] %v2057
        %s2060 = scalar_select %p344, 5, 2
        %s2061 = smul.u32 %s2060, 4
        %s2062 = smul.addr %s2061, 4
        %s2063 = scalar_lea.vmem %s271, %s2062 [#allocation4]
        %v2064 = vld [vmem:[%s2063] sm:$0xff]
        %v2065 = vld [vmem:[%s2063 + $0x8] sm:$0xff]
        %s2066 = scalar_lea.vmem %s319, %s2061
        %v2067 = vld [vmem:[%s2066] sm:$0xf]
        %v2068 = vpack.c.bf16 %v2053, %v2053
        %v2069 = vld [vmem:[%s329] sm:$0xff]
        %v2070 = vld [vmem:[%s329 + $0x8] sm:$0xff]
        %v2071 = vld [vmem:[%s329 + $0x10] sm:$0xff]
        %v2072 = vld [vmem:[%s329 + $0x18] sm:$0xff]
        %v2073 = vld [vmem:[%s329 + $0x20] sm:$0xff]
        %v2074 = vld [vmem:[%s329 + $0x28] sm:$0xff]
        %v2075 = vld [vmem:[%s329 + $0x30] sm:$0xff]
        %v2076 = vld [vmem:[%s329 + $0x38] sm:$0xff]
        %v2077 = vld [vmem:[%s329 + $0x40] sm:$0xff]
        %v2078 = vld [vmem:[%s329 + $0x48] sm:$0xff]
        %v2079 = vld [vmem:[%s329 + $0x50] sm:$0xff]
        %v2080 = vld [vmem:[%s329 + $0x58] sm:$0xff]
        %v2081 = vld [vmem:[%s329 + $0x60] sm:$0xff]
        %v2082 = vld [vmem:[%s329 + $0x68] sm:$0xff]
        %v2083 = vld [vmem:[%s329 + $0x70] sm:$0xff]
        %v2084 = vld [vmem:[%s329 + $0x78] sm:$0xff]
        %v2085 = vld [vmem:[%s329 + $0x80] sm:$0xff]
        %v2086 = vld [vmem:[%s329 + $0x88] sm:$0xff]
        %v2087 = vld [vmem:[%s329 + $0x90] sm:$0xff]
        %v2088 = vld [vmem:[%s329 + $0x98] sm:$0xff]
        %v2089 = vld [vmem:[%s329 + $0xa0] sm:$0xff]
        %v2090 = vld [vmem:[%s329 + $0xa8] sm:$0xff]
        %v2091 = vld [vmem:[%s329 + $0xb0] sm:$0xff]
        %v2092 = vld [vmem:[%s329 + $0xb8] sm:$0xff]
        %v2093 = vld [vmem:[%s329 + $0xc0] sm:$0xff]
        %v2094 = vld [vmem:[%s329 + $0xc8] sm:$0xff]
        %v2095 = vld [vmem:[%s329 + $0xd0] sm:$0xff]
        %v2096 = vld [vmem:[%s329 + $0xd8] sm:$0xff]
        %v2097 = vld [vmem:[%s329 + $0xe0] sm:$0xff]
        %v2098 = vld [vmem:[%s329 + $0xe8] sm:$0xff]
        %v2099 = vld [vmem:[%s329 + $0xf0] sm:$0xff]
        %v2100 = vld [vmem:[%s329 + $0xf8] sm:$0xff]
        %v2133 = vunpack.c.l.b16 %v2069
        %v2134 = vunpack.c.h.b16 %v2069
        %v2135 = vunpack.c.l.b16 %v2070
        %v2136 = vunpack.c.h.b16 %v2070
        %v2137 = vunpack.c.l.b16 %v2071
        %v2138 = vunpack.c.h.b16 %v2071
        %v2139 = vunpack.c.l.b16 %v2072
        %v2140 = vunpack.c.h.b16 %v2072
        %v2141 = vunpack.c.l.b16 %v2073
        %v2142 = vunpack.c.h.b16 %v2073
        %v2143 = vunpack.c.l.b16 %v2074
        %v2144 = vunpack.c.h.b16 %v2074
        %v2145 = vunpack.c.l.b16 %v2075
        %v2146 = vunpack.c.h.b16 %v2075
        %v2147 = vunpack.c.l.b16 %v2076
        %v2148 = vunpack.c.h.b16 %v2076
        %v2149 = vunpack.c.l.b16 %v2077
        %v2150 = vunpack.c.h.b16 %v2077
        %v2151 = vunpack.c.l.b16 %v2078
        %v2152 = vunpack.c.h.b16 %v2078
        %v2153 = vunpack.c.l.b16 %v2079
        %v2154 = vunpack.c.h.b16 %v2079
        %v2155 = vunpack.c.l.b16 %v2080
        %v2156 = vunpack.c.h.b16 %v2080
        %v2157 = vunpack.c.l.b16 %v2081
        %v2158 = vunpack.c.h.b16 %v2081
        %v2159 = vunpack.c.l.b16 %v2082
        %v2160 = vunpack.c.h.b16 %v2082
        %v2161 = vunpack.c.l.b16 %v2083
        %v2162 = vunpack.c.h.b16 %v2083
        %v2163 = vunpack.c.l.b16 %v2084
        %v2164 = vunpack.c.h.b16 %v2084
        %v2165 = vunpack.c.l.b16 %v2085
        %v2166 = vunpack.c.h.b16 %v2085
        %v2167 = vunpack.c.l.b16 %v2086
        %v2168 = vunpack.c.h.b16 %v2086
        %v2169 = vunpack.c.l.b16 %v2087
        %v2170 = vunpack.c.h.b16 %v2087
        %v2171 = vunpack.c.l.b16 %v2088
        %v2172 = vunpack.c.h.b16 %v2088
        %v2173 = vunpack.c.l.b16 %v2089
        %v2174 = vunpack.c.h.b16 %v2089
        %v2175 = vunpack.c.l.b16 %v2090
        %v2176 = vunpack.c.h.b16 %v2090
        %v2177 = vunpack.c.l.b16 %v2091
        %v2178 = vunpack.c.h.b16 %v2091
        %v2179 = vunpack.c.l.b16 %v2092
        %v2180 = vunpack.c.h.b16 %v2092
        %v2181 = vunpack.c.l.b16 %v2093
        %v2182 = vunpack.c.h.b16 %v2093
        %v2183 = vunpack.c.l.b16 %v2094
        %v2184 = vunpack.c.h.b16 %v2094
        %v2185 = vunpack.c.l.b16 %v2095
        %v2186 = vunpack.c.h.b16 %v2095
        %v2187 = vunpack.c.l.b16 %v2096
        %v2188 = vunpack.c.h.b16 %v2096
        %v2189 = vunpack.c.l.b16 %v2097
        %v2190 = vunpack.c.h.b16 %v2097
        %v2191 = vunpack.c.l.b16 %v2098
        %v2192 = vunpack.c.h.b16 %v2098
        %v2193 = vunpack.c.l.b16 %v2099
        %v2194 = vunpack.c.h.b16 %v2099
        %v2195 = vunpack.c.l.b16 %v2100
        %v2196 = vunpack.c.h.b16 %v2100
        %v2197 = vpack.c.b16 %v2137, %v2133
        %v2198 = vpack.c.b16 %v2138, %v2134
        %v2199 = vpack.c.b16 %v2139, %v2135
        %v2200 = vpack.c.b16 %v2140, %v2136
        %v2201 = vpack.c.b16 %v2145, %v2141
        %v2202 = vpack.c.b16 %v2146, %v2142
        %v2203 = vpack.c.b16 %v2147, %v2143
        %v2204 = vpack.c.b16 %v2148, %v2144
        %v2205 = vpack.c.b16 %v2153, %v2149
        %v2206 = vpack.c.b16 %v2154, %v2150
        %v2207 = vpack.c.b16 %v2155, %v2151
        %v2208 = vpack.c.b16 %v2156, %v2152
        %v2209 = vpack.c.b16 %v2161, %v2157
        %v2210 = vpack.c.b16 %v2162, %v2158
        %v2211 = vpack.c.b16 %v2163, %v2159
        %v2212 = vpack.c.b16 %v2164, %v2160
        %v2213 = vpack.c.b16 %v2169, %v2165
        %v2214 = vpack.c.b16 %v2170, %v2166
        %v2215 = vpack.c.b16 %v2171, %v2167
        %v2216 = vpack.c.b16 %v2172, %v2168
        %v2217 = vpack.c.b16 %v2177, %v2173
        %v2218 = vpack.c.b16 %v2178, %v2174
        %v2219 = vpack.c.b16 %v2179, %v2175
        %v2220 = vpack.c.b16 %v2180, %v2176
        %v2221 = vpack.c.b16 %v2185, %v2181
        %v2222 = vpack.c.b16 %v2186, %v2182
        %v2223 = vpack.c.b16 %v2187, %v2183
        %v2224 = vpack.c.b16 %v2188, %v2184
        %v2225 = vpack.c.b16 %v2193, %v2189
        %v2226 = vpack.c.b16 %v2194, %v2190
        %v2227 = vpack.c.b16 %v2195, %v2191
        %v2228 = vpack.c.b16 %v2196, %v2192
        %2261 = vmatprep.subr.bf16.mxu0 %v2198
        %2262 = vmatpush1.bf16.msra.mxu0 %v2197
        %2263 = vmatprep.subr.bf16.mxu0 %v2202
        %2264 = vmatpush1.bf16.msra.mxu0 %v2201
        %2265 = vmatprep.subr.bf16.mxu0 %v2206
        %2266 = vmatpush1.bf16.msra.mxu0 %v2205
        %2267 = vmatprep.subr.bf16.mxu0 %v2210
        %2268 = vmatpush1.bf16.msra.mxu0 %v2209
        %2269 = vmatprep.subr.bf16.mxu0 %v2214
        %2270 = vmatpush1.bf16.msra.mxu0 %v2213
        %2271 = vmatprep.subr.bf16.mxu0 %v2218
        %2272 = vmatpush1.bf16.msra.mxu0 %v2217
        %2273 = vmatprep.subr.bf16.mxu0 %v2222
        %2274 = vmatpush1.bf16.msra.mxu0 %v2221
        %2275 = vmatprep.subr.bf16.mxu0 %v2226
        %2276 = vmatpush1.bf16.msra.mxu0 %v2225
        %2277 = vmatprep.subr.bf16.mxu0 0
        %2278 = vmatpush1.bf16.msra.mxu0 0
        %2279 = vmatprep.subr.bf16.mxu0 0
        %2280 = vmatpush1.bf16.msra.mxu0 0
        %2281 = vmatprep.subr.bf16.mxu0 0
        %2282 = vmatpush1.bf16.msra.mxu0 0
        %2283 = vmatprep.subr.bf16.mxu0 0
        %2284 = vmatpush1.bf16.msra.mxu0 0
        %2285 = vmatprep.subr.bf16.mxu0 0
        %2286 = vmatpush1.bf16.msra.mxu0 0
        %2287 = vmatprep.subr.bf16.mxu0 0
        %2288 = vmatpush1.bf16.msra.mxu0 0
        %2289 = vmatprep.subr.bf16.mxu0 0
        %2290 = vmatpush1.bf16.msra.mxu0 0
        %2291 = vmatprep.subr.bf16.mxu0 0
        %2292 = vmatpush1.bf16.msra.mxu0 0
        %2293 = vmatprep.mubr.bf16.mxu0 0
        %2294 = vmatmul.mubr.bf16.gmra.mrb[0].mxu0 %v2068
        %v2295 = vpop.f32.mrb[0].mxu0
        %v2296 = vadd.f32 0.0, %v2295
        %v2297 = vpop.f32.mrb[0].mxu0
        %v2298 = vadd.f32 0.0, %v2297
        %v2299 = vpop.f32.mrb[0].mxu0
        %v2300 = vpop.f32.mrb[0].mxu0
        %2301 = vdwg.mxu0
        %2302 = vmatprep.subr.bf16.mxu0 %v2200
        %2303 = vmatpush1.bf16.msra.mxu0 %v2199
        %2304 = vmatprep.subr.bf16.mxu0 %v2204
        %2305 = vmatpush1.bf16.msra.mxu0 %v2203
        %2306 = vmatprep.subr.bf16.mxu0 %v2208
        %2307 = vmatpush1.bf16.msra.mxu0 %v2207
        %2308 = vmatprep.subr.bf16.mxu0 %v2212
        %2309 = vmatpush1.bf16.msra.mxu0 %v2211
        %2310 = vmatprep.subr.bf16.mxu0 %v2216
        %2311 = vmatpush1.bf16.msra.mxu0 %v2215
        %2312 = vmatprep.subr.bf16.mxu0 %v2220
        %2313 = vmatpush1.bf16.msra.mxu0 %v2219
        %2314 = vmatprep.subr.bf16.mxu0 %v2224
        %2315 = vmatpush1.bf16.msra.mxu0 %v2223
        %2316 = vmatprep.subr.bf16.mxu0 %v2228
        %2317 = vmatpush1.bf16.msra.mxu0 %v2227
        %2318 = vmatprep.subr.bf16.mxu0 0
        %2319 = vmatpush1.bf16.msra.mxu0 0
        %2320 = vmatprep.subr.bf16.mxu0 0
        %2321 = vmatpush1.bf16.msra.mxu0 0
        %2322 = vmatprep.subr.bf16.mxu0 0
        %2323 = vmatpush1.bf16.msra.mxu0 0
        %2324 = vmatprep.subr.bf16.mxu0 0
        %2325 = vmatpush1.bf16.msra.mxu0 0
        %2326 = vmatprep.subr.bf16.mxu0 0
        %2327 = vmatpush1.bf16.msra.mxu0 0
        %2328 = vmatprep.subr.bf16.mxu0 0
        %2329 = vmatpush1.bf16.msra.mxu0 0
        %2330 = vmatprep.subr.bf16.mxu0 0
        %2331 = vmatpush1.bf16.msra.mxu0 0
        %2332 = vmatprep.subr.bf16.mxu0 0
        %2333 = vmatpush1.bf16.msra.mxu0 0
        %2334 = vmatprep.mubr.bf16.mxu0 0
        %2335 = vmatmul.mubr.bf16.gmra.mrb[0].mxu0 %v2068
        %v2336 = vpop.f32.mrb[0].mxu0
        %v2337 = vadd.f32 0.0, %v2336
        %v2338 = vpop.f32.mrb[0].mxu0
        %v2339 = vadd.f32 0.0, %v2338
        %v2340 = vpop.f32.mrb[0].mxu0
        %v2341 = vpop.f32.mrb[0].mxu0
        %2342 = vdwg.mxu0
        %v2347 = vcombine.low %v2296, %v2298
        %v2348 = vcombine.low %v2337, %v2339
        %v2351 = vadd.f32 %v2064, %v2347
        %v2352 = vadd.f32 %v2065, %v2348
        %v2353 = vxor.u32 %v2351, 2147483648
        %v2354 = vmul.f32 %v2353, 1.442695
        %v2355 = vpow.pop %v2354
        %v2356 = vadd.f32 %v2355, 1.0
        %v2357 = vrcp.pop %v2356
        %v2358 = vmul.f32 1.0, %v2357
        %v2360 = vrot.slane %v2351, 4
        %v2362 = vxor.u32 %v2360, 2147483648
        %v2363 = vmul.f32 %v2362, 1.442695
        %v2364 = vpow.pop %v2363
        %v2365 = vadd.f32 %v2364, 1.0
        %v2366 = vrcp.pop %v2365
        %v2367 = vmul.f32 1.0, %v2366
        %v2368 = vtanh.pop %v2352
        %v2370 = vrot.slane %v2352, 4
        %v2372 = vxor.u32 %v2370, 2147483648
        %v2373 = vmul.f32 %v2372, 1.442695
        %v2374 = vpow.pop %v2373
        %v2375 = vadd.f32 %v2374, 1.0
        %v2376 = vrcp.pop %v2375
        %v2377 = vmul.f32 1.0, %v2376
        %v2378 = vmul.f32 %v2367, %v2056
        %v2379 = vmul.f32 %v2358, %v2368
        %v2380 = vadd.f32 %v2378, %v2379
        %v2381 = vtanh.pop %v2380
        %v2382 = vmul.f32 %v2377, %v2381
        %2384 = vset.pattern.permute.xlu0 0
        %2385 = vperm.xlu0 %2384, %v2067
        %v2386 = vpop.permute.xlu0 %2385
        %v2388 = vmul.f32 %v2386, %v2382
        %v2389 = vsub.f32 1.0, %v2067
        %2391 = vset.pattern.permute.xlu0 0
        %2392 = vperm.xlu0 %2391, %v2389
        %v2393 = vpop.permute.xlu0 %2392
        %v2395 = vmul.f32 %v2393, %v2053
        %v2396 = vadd.f32 %v2388, %v2395
        %v2397 = vmul.f32 %v2386, %v2380
        %v2398 = vmul.f32 %v2393, %v2056
        %v2399 = vadd.f32 %v2397, %v2398
        %v2400 = vmul.f32 %v2386, %v2396
        %s2401 = scalar_lea.vmem %s304, %s2061 [#allocation5]
        %2402 = vst [vmem:[%s2401] sm:$0xf] %v2400
        %s2403 = scalar_select %p344, 6, 1
        %s2404 = smul.u32 %s2403, 4
        %s2405 = smul.addr %s2404, 4
        %s2406 = scalar_lea.vmem %s271, %s2405 [#allocation4]
        %v2407 = vld [vmem:[%s2406] sm:$0xff]
        %v2408 = vld [vmem:[%s2406 + $0x8] sm:$0xff]
        %s2409 = scalar_lea.vmem %s319, %s2404
        %v2410 = vld [vmem:[%s2409] sm:$0xf]
        %v2411 = vpack.c.bf16 %v2396, %v2396
        %v2412 = vld [vmem:[%s329] sm:$0xff]
        %v2413 = vld [vmem:[%s329 + $0x8] sm:$0xff]
        %v2414 = vld [vmem:[%s329 + $0x10] sm:$0xff]
        %v2415 = vld [vmem:[%s329 + $0x18] sm:$0xff]
        %v2416 = vld [vmem:[%s329 + $0x20] sm:$0xff]
        %v2417 = vld [vmem:[%s329 + $0x28] sm:$0xff]
        %v2418 = vld [vmem:[%s329 + $0x30] sm:$0xff]
        %v2419 = vld [vmem:[%s329 + $0x38] sm:$0xff]
        %v2420 = vld [vmem:[%s329 + $0x40] sm:$0xff]
        %v2421 = vld [vmem:[%s329 + $0x48] sm:$0xff]
        %v2422 = vld [vmem:[%s329 + $0x50] sm:$0xff]
        %v2423 = vld [vmem:[%s329 + $0x58] sm:$0xff]
        %v2424 = vld [vmem:[%s329 + $0x60] sm:$0xff]
        %v2425 = vld [vmem:[%s329 + $0x68] sm:$0xff]
        %v2426 = vld [vmem:[%s329 + $0x70] sm:$0xff]
        %v2427 = vld [vmem:[%s329 + $0x78] sm:$0xff]
        %v2428 = vld [vmem:[%s329 + $0x80] sm:$0xff]
        %v2429 = vld [vmem:[%s329 + $0x88] sm:$0xff]
        %v2430 = vld [vmem:[%s329 + $0x90] sm:$0xff]
        %v2431 = vld [vmem:[%s329 + $0x98] sm:$0xff]
        %v2432 = vld [vmem:[%s329 + $0xa0] sm:$0xff]
        %v2433 = vld [vmem:[%s329 + $0xa8] sm:$0xff]
        %v2434 = vld [vmem:[%s329 + $0xb0] sm:$0xff]
        %v2435 = vld [vmem:[%s329 + $0xb8] sm:$0xff]
        %v2436 = vld [vmem:[%s329 + $0xc0] sm:$0xff]
        %v2437 = vld [vmem:[%s329 + $0xc8] sm:$0xff]
        %v2438 = vld [vmem:[%s329 + $0xd0] sm:$0xff]
        %v2439 = vld [vmem:[%s329 + $0xd8] sm:$0xff]
        %v2440 = vld [vmem:[%s329 + $0xe0] sm:$0xff]
        %v2441 = vld [vmem:[%s329 + $0xe8] sm:$0xff]
        %v2442 = vld [vmem:[%s329 + $0xf0] sm:$0xff]
        %v2443 = vld [vmem:[%s329 + $0xf8] sm:$0xff]
        %v2476 = vunpack.c.l.b16 %v2412
        %v2477 = vunpack.c.h.b16 %v2412
        %v2478 = vunpack.c.l.b16 %v2413
        %v2479 = vunpack.c.h.b16 %v2413
        %v2480 = vunpack.c.l.b16 %v2414
        %v2481 = vunpack.c.h.b16 %v2414
        %v2482 = vunpack.c.l.b16 %v2415
        %v2483 = vunpack.c.h.b16 %v2415
        %v2484 = vunpack.c.l.b16 %v2416
        %v2485 = vunpack.c.h.b16 %v2416
        %v2486 = vunpack.c.l.b16 %v2417
        %v2487 = vunpack.c.h.b16 %v2417
        %v2488 = vunpack.c.l.b16 %v2418
        %v2489 = vunpack.c.h.b16 %v2418
        %v2490 = vunpack.c.l.b16 %v2419
        %v2491 = vunpack.c.h.b16 %v2419
        %v2492 = vunpack.c.l.b16 %v2420
        %v2493 = vunpack.c.h.b16 %v2420
        %v2494 = vunpack.c.l.b16 %v2421
        %v2495 = vunpack.c.h.b16 %v2421
        %v2496 = vunpack.c.l.b16 %v2422
        %v2497 = vunpack.c.h.b16 %v2422
        %v2498 = vunpack.c.l.b16 %v2423
        %v2499 = vunpack.c.h.b16 %v2423
        %v2500 = vunpack.c.l.b16 %v2424
        %v2501 = vunpack.c.h.b16 %v2424
        %v2502 = vunpack.c.l.b16 %v2425
        %v2503 = vunpack.c.h.b16 %v2425
        %v2504 = vunpack.c.l.b16 %v2426
        %v2505 = vunpack.c.h.b16 %v2426
        %v2506 = vunpack.c.l.b16 %v2427
        %v2507 = vunpack.c.h.b16 %v2427
        %v2508 = vunpack.c.l.b16 %v2428
        %v2509 = vunpack.c.h.b16 %v2428
        %v2510 = vunpack.c.l.b16 %v2429
        %v2511 = vunpack.c.h.b16 %v2429
        %v2512 = vunpack.c.l.b16 %v2430
        %v2513 = vunpack.c.h.b16 %v2430
        %v2514 = vunpack.c.l.b16 %v2431
        %v2515 = vunpack.c.h.b16 %v2431
        %v2516 = vunpack.c.l.b16 %v2432
        %v2517 = vunpack.c.h.b16 %v2432
        %v2518 = vunpack.c.l.b16 %v2433
        %v2519 = vunpack.c.h.b16 %v2433
        %v2520 = vunpack.c.l.b16 %v2434
        %v2521 = vunpack.c.h.b16 %v2434
        %v2522 = vunpack.c.l.b16 %v2435
        %v2523 = vunpack.c.h.b16 %v2435
        %v2524 = vunpack.c.l.b16 %v2436
        %v2525 = vunpack.c.h.b16 %v2436
        %v2526 = vunpack.c.l.b16 %v2437
        %v2527 = vunpack.c.h.b16 %v2437
        %v2528 = vunpack.c.l.b16 %v2438
        %v2529 = vunpack.c.h.b16 %v2438
        %v2530 = vunpack.c.l.b16 %v2439
        %v2531 = vunpack.c.h.b16 %v2439
        %v2532 = vunpack.c.l.b16 %v2440
        %v2533 = vunpack.c.h.b16 %v2440
        %v2534 = vunpack.c.l.b16 %v2441
        %v2535 = vunpack.c.h.b16 %v2441
        %v2536 = vunpack.c.l.b16 %v2442
        %v2537 = vunpack.c.h.b16 %v2442
        %v2538 = vunpack.c.l.b16 %v2443
        %v2539 = vunpack.c.h.b16 %v2443
        %v2540 = vpack.c.b16 %v2480, %v2476
        %v2541 = vpack.c.b16 %v2481, %v2477
        %v2542 = vpack.c.b16 %v2482, %v2478
        %v2543 = vpack.c.b16 %v2483, %v2479
        %v2544 = vpack.c.b16 %v2488, %v2484
        %v2545 = vpack.c.b16 %v2489, %v2485
        %v2546 = vpack.c.b16 %v2490, %v2486
        %v2547 = vpack.c.b16 %v2491, %v2487
        %v2548 = vpack.c.b16 %v2496, %v2492
        %v2549 = vpack.c.b16 %v2497, %v2493
        %v2550 = vpack.c.b16 %v2498, %v2494
        %v2551 = vpack.c.b16 %v2499, %v2495
        %v2552 = vpack.c.b16 %v2504, %v2500
        %v2553 = vpack.c.b16 %v2505, %v2501
        %v2554 = vpack.c.b16 %v2506, %v2502
        %v2555 = vpack.c.b16 %v2507, %v2503
        %v2556 = vpack.c.b16 %v2512, %v2508
        %v2557 = vpack.c.b16 %v2513, %v2509
        %v2558 = vpack.c.b16 %v2514, %v2510
        %v2559 = vpack.c.b16 %v2515, %v2511
        %v2560 = vpack.c.b16 %v2520, %v2516
        %v2561 = vpack.c.b16 %v2521, %v2517
        %v2562 = vpack.c.b16 %v2522, %v2518
        %v2563 = vpack.c.b16 %v2523, %v2519
        %v2564 = vpack.c.b16 %v2528, %v2524
        %v2565 = vpack.c.b16 %v2529, %v2525
        %v2566 = vpack.c.b16 %v2530, %v2526
        %v2567 = vpack.c.b16 %v2531, %v2527
        %v2568 = vpack.c.b16 %v2536, %v2532
        %v2569 = vpack.c.b16 %v2537, %v2533
        %v2570 = vpack.c.b16 %v2538, %v2534
        %v2571 = vpack.c.b16 %v2539, %v2535
        %2604 = vmatprep.subr.bf16.mxu0 %v2541
        %2605 = vmatpush1.bf16.msra.mxu0 %v2540
        %2606 = vmatprep.subr.bf16.mxu0 %v2545
        %2607 = vmatpush1.bf16.msra.mxu0 %v2544
        %2608 = vmatprep.subr.bf16.mxu0 %v2549
        %2609 = vmatpush1.bf16.msra.mxu0 %v2548
        %2610 = vmatprep.subr.bf16.mxu0 %v2553
        %2611 = vmatpush1.bf16.msra.mxu0 %v2552
        %2612 = vmatprep.subr.bf16.mxu0 %v2557
        %2613 = vmatpush1.bf16.msra.mxu0 %v2556
        %2614 = vmatprep.subr.bf16.mxu0 %v2561
        %2615 = vmatpush1.bf16.msra.mxu0 %v2560
        %2616 = vmatprep.subr.bf16.mxu0 %v2565
        %2617 = vmatpush1.bf16.msra.mxu0 %v2564
        %2618 = vmatprep.subr.bf16.mxu0 %v2569
        %2619 = vmatpush1.bf16.msra.mxu0 %v2568
        %2620 = vmatprep.subr.bf16.mxu0 0
        %2621 = vmatpush1.bf16.msra.mxu0 0
        %2622 = vmatprep.subr.bf16.mxu0 0
        %2623 = vmatpush1.bf16.msra.mxu0 0
        %2624 = vmatprep.subr.bf16.mxu0 0
        %2625 = vmatpush1.bf16.msra.mxu0 0
        %2626 = vmatprep.subr.bf16.mxu0 0
        %2627 = vmatpush1.bf16.msra.mxu0 0
        %2628 = vmatprep.subr.bf16.mxu0 0
        %2629 = vmatpush1.bf16.msra.mxu0 0
        %2630 = vmatprep.subr.bf16.mxu0 0
        %2631 = vmatpush1.bf16.msra.mxu0 0
        %2632 = vmatprep.subr.bf16.mxu0 0
        %2633 = vmatpush1.bf16.msra.mxu0 0
        %2634 = vmatprep.subr.bf16.mxu0 0
        %2635 = vmatpush1.bf16.msra.mxu0 0
        %2636 = vmatprep.mubr.bf16.mxu0 0
        %2637 = vmatmul.mubr.bf16.gmra.mrb[0].mxu0 %v2411
        %v2638 = vpop.f32.mrb[0].mxu0
        %v2639 = vadd.f32 0.0, %v2638
        %v2640 = vpop.f32.mrb[0].mxu0
        %v2641 = vadd.f32 0.0, %v2640
        %v2642 = vpop.f32.mrb[0].mxu0
        %v2643 = vpop.f32.mrb[0].mxu0
        %2644 = vdwg.mxu0
        %2645 = vmatprep.subr.bf16.mxu0 %v2543
        %2646 = vmatpush1.bf16.msra.mxu0 %v2542
        %2647 = vmatprep.subr.bf16.mxu0 %v2547
        %2648 = vmatpush1.bf16.msra.mxu0 %v2546
        %2649 = vmatprep.subr.bf16.mxu0 %v2551
        %2650 = vmatpush1.bf16.msra.mxu0 %v2550
        %2651 = vmatprep.subr.bf16.mxu0 %v2555
        %2652 = vmatpush1.bf16.msra.mxu0 %v2554
        %2653 = vmatprep.subr.bf16.mxu0 %v2559
        %2654 = vmatpush1.bf16.msra.mxu0 %v2558
        %2655 = vmatprep.subr.bf16.mxu0 %v2563
        %2656 = vmatpush1.bf16.msra.mxu0 %v2562
        %2657 = vmatprep.subr.bf16.mxu0 %v2567
        %2658 = vmatpush1.bf16.msra.mxu0 %v2566
        %2659 = vmatprep.subr.bf16.mxu0 %v2571
        %2660 = vmatpush1.bf16.msra.mxu0 %v2570
        %2661 = vmatprep.subr.bf16.mxu0 0
        %2662 = vmatpush1.bf16.msra.mxu0 0
        %2663 = vmatprep.subr.bf16.mxu0 0
        %2664 = vmatpush1.bf16.msra.mxu0 0
        %2665 = vmatprep.subr.bf16.mxu0 0
        %2666 = vmatpush1.bf16.msra.mxu0 0
        %2667 = vmatprep.subr.bf16.mxu0 0
        %2668 = vmatpush1.bf16.msra.mxu0 0
        %2669 = vmatprep.subr.bf16.mxu0 0
        %2670 = vmatpush1.bf16.msra.mxu0 0
        %2671 = vmatprep.subr.bf16.mxu0 0
        %2672 = vmatpush1.bf16.msra.mxu0 0
        %2673 = vmatprep.subr.bf16.mxu0 0
        %2674 = vmatpush1.bf16.msra.mxu0 0
        %2675 = vmatprep.subr.bf16.mxu0 0
        %2676 = vmatpush1.bf16.msra.mxu0 0
        %2677 = vmatprep.mubr.bf16.mxu0 0
        %2678 = vmatmul.mubr.bf16.gmra.mrb[0].mxu0 %v2411
        %v2679 = vpop.f32.mrb[0].mxu0
        %v2680 = vadd.f32 0.0, %v2679
        %v2681 = vpop.f32.mrb[0].mxu0
        %v2682 = vadd.f32 0.0, %v2681
        %v2683 = vpop.f32.mrb[0].mxu0
        %v2684 = vpop.f32.mrb[0].mxu0
        %2685 = vdwg.mxu0
        %v2690 = vcombine.low %v2639, %v2641
        %v2691 = vcombine.low %v2680, %v2682
        %v2694 = vadd.f32 %v2407, %v2690
        %v2695 = vadd.f32 %v2408, %v2691
        %v2696 = vxor.u32 %v2694, 2147483648
        %v2697 = vmul.f32 %v2696, 1.442695
        %v2698 = vpow.pop %v2697
        %v2699 = vadd.f32 %v2698, 1.0
        %v2700 = vrcp.pop %v2699
        %v2701 = vmul.f32 1.0, %v2700
        %v2703 = vrot.slane %v2694, 4
        %v2705 = vxor.u32 %v2703, 2147483648
        %v2706 = vmul.f32 %v2705, 1.442695
        %v2707 = vpow.pop %v2706
        %v2708 = vadd.f32 %v2707, 1.0
        %v2709 = vrcp.pop %v2708
        %v2710 = vmul.f32 1.0, %v2709
        %v2711 = vtanh.pop %v2695
        %v2713 = vrot.slane %v2695, 4
        %v2715 = vxor.u32 %v2713, 2147483648
        %v2716 = vmul.f32 %v2715, 1.442695
        %v2717 = vpow.pop %v2716
        %v2718 = vadd.f32 %v2717, 1.0
        %v2719 = vrcp.pop %v2718
        %v2720 = vmul.f32 1.0, %v2719
        %v2721 = vmul.f32 %v2710, %v2399
        %v2722 = vmul.f32 %v2701, %v2711
        %v2723 = vadd.f32 %v2721, %v2722
        %v2724 = vtanh.pop %v2723
        %v2725 = vmul.f32 %v2720, %v2724
        %2727 = vset.pattern.permute.xlu0 0
        %2728 = vperm.xlu0 %2727, %v2410
        %v2729 = vpop.permute.xlu0 %2728
        %v2731 = vmul.f32 %v2729, %v2725
        %v2732 = vsub.f32 1.0, %v2410
        %2734 = vset.pattern.permute.xlu0 0
        %2735 = vperm.xlu0 %2734, %v2732
        %v2736 = vpop.permute.xlu0 %2735
        %v2738 = vmul.f32 %v2736, %v2396
        %v2739 = vadd.f32 %v2731, %v2738
        %v2740 = vmul.f32 %v2729, %v2723
        %v2741 = vmul.f32 %v2736, %v2399
        %v2742 = vadd.f32 %v2740, %v2741
        %v2743 = vmul.f32 %v2729, %v2739
        %s2744 = scalar_lea.vmem %s304, %s2404 [#allocation5]
        %2745 = vst [vmem:[%s2744] sm:$0xf] %v2743
        %s2746 = scalar_select %p344, 7, 0
        %s2747 = smul.u32 %s2746, 4
        %s2748 = smul.addr %s2747, 4
        %s2749 = scalar_lea.vmem %s271, %s2748 [#allocation4]
        %v2750 = vld [vmem:[%s2749] sm:$0xff]
        %v2751 = vld [vmem:[%s2749 + $0x8] sm:$0xff]
        %s2752 = scalar_lea.vmem %s319, %s2747
        %v2753 = vld [vmem:[%s2752] sm:$0xf]
        %v2754 = vpack.c.bf16 %v2739, %v2739
        %v2755 = vld [vmem:[%s329] sm:$0xff]
        %v2756 = vld [vmem:[%s329 + $0x8] sm:$0xff]
        %v2757 = vld [vmem:[%s329 + $0x10] sm:$0xff]
        %v2758 = vld [vmem:[%s329 + $0x18] sm:$0xff]
        %v2759 = vld [vmem:[%s329 + $0x20] sm:$0xff]
        %v2760 = vld [vmem:[%s329 + $0x28] sm:$0xff]
        %v2761 = vld [vmem:[%s329 + $0x30] sm:$0xff]
        %v2762 = vld [vmem:[%s329 + $0x38] sm:$0xff]
        %v2763 = vld [vmem:[%s329 + $0x40] sm:$0xff]
        %v2764 = vld [vmem:[%s329 + $0x48] sm:$0xff]
        %v2765 = vld [vmem:[%s329 + $0x50] sm:$0xff]
        %v2766 = vld [vmem:[%s329 + $0x58] sm:$0xff]
        %v2767 = vld [vmem:[%s329 + $0x60] sm:$0xff]
        %v2768 = vld [vmem:[%s329 + $0x68] sm:$0xff]
        %v2769 = vld [vmem:[%s329 + $0x70] sm:$0xff]
        %v2770 = vld [vmem:[%s329 + $0x78] sm:$0xff]
        %v2771 = vld [vmem:[%s329 + $0x80] sm:$0xff]
        %v2772 = vld [vmem:[%s329 + $0x88] sm:$0xff]
        %v2773 = vld [vmem:[%s329 + $0x90] sm:$0xff]
        %v2774 = vld [vmem:[%s329 + $0x98] sm:$0xff]
        %v2775 = vld [vmem:[%s329 + $0xa0] sm:$0xff]
        %v2776 = vld [vmem:[%s329 + $0xa8] sm:$0xff]
        %v2777 = vld [vmem:[%s329 + $0xb0] sm:$0xff]
        %v2778 = vld [vmem:[%s329 + $0xb8] sm:$0xff]
        %v2779 = vld [vmem:[%s329 + $0xc0] sm:$0xff]
        %v2780 = vld [vmem:[%s329 + $0xc8] sm:$0xff]
        %v2781 = vld [vmem:[%s329 + $0xd0] sm:$0xff]
        %v2782 = vld [vmem:[%s329 + $0xd8] sm:$0xff]
        %v2783 = vld [vmem:[%s329 + $0xe0] sm:$0xff]
        %v2784 = vld [vmem:[%s329 + $0xe8] sm:$0xff]
        %v2785 = vld [vmem:[%s329 + $0xf0] sm:$0xff]
        %v2786 = vld [vmem:[%s329 + $0xf8] sm:$0xff]
        %v2819 = vunpack.c.l.b16 %v2755
        %v2820 = vunpack.c.h.b16 %v2755
        %v2821 = vunpack.c.l.b16 %v2756
        %v2822 = vunpack.c.h.b16 %v2756
        %v2823 = vunpack.c.l.b16 %v2757
        %v2824 = vunpack.c.h.b16 %v2757
        %v2825 = vunpack.c.l.b16 %v2758
        %v2826 = vunpack.c.h.b16 %v2758
        %v2827 = vunpack.c.l.b16 %v2759
        %v2828 = vunpack.c.h.b16 %v2759
        %v2829 = vunpack.c.l.b16 %v2760
        %v2830 = vunpack.c.h.b16 %v2760
        %v2831 = vunpack.c.l.b16 %v2761
        %v2832 = vunpack.c.h.b16 %v2761
        %v2833 = vunpack.c.l.b16 %v2762
        %v2834 = vunpack.c.h.b16 %v2762
        %v2835 = vunpack.c.l.b16 %v2763
        %v2836 = vunpack.c.h.b16 %v2763
        %v2837 = vunpack.c.l.b16 %v2764
        %v2838 = vunpack.c.h.b16 %v2764
        %v2839 = vunpack.c.l.b16 %v2765
        %v2840 = vunpack.c.h.b16 %v2765
        %v2841 = vunpack.c.l.b16 %v2766
        %v2842 = vunpack.c.h.b16 %v2766
        %v2843 = vunpack.c.l.b16 %v2767
        %v2844 = vunpack.c.h.b16 %v2767
        %v2845 = vunpack.c.l.b16 %v2768
        %v2846 = vunpack.c.h.b16 %v2768
        %v2847 = vunpack.c.l.b16 %v2769
        %v2848 = vunpack.c.h.b16 %v2769
        %v2849 = vunpack.c.l.b16 %v2770
        %v2850 = vunpack.c.h.b16 %v2770
        %v2851 = vunpack.c.l.b16 %v2771
        %v2852 = vunpack.c.h.b16 %v2771
        %v2853 = vunpack.c.l.b16 %v2772
        %v2854 = vunpack.c.h.b16 %v2772
        %v2855 = vunpack.c.l.b16 %v2773
        %v2856 = vunpack.c.h.b16 %v2773
        %v2857 = vunpack.c.l.b16 %v2774
        %v2858 = vunpack.c.h.b16 %v2774
        %v2859 = vunpack.c.l.b16 %v2775
        %v2860 = vunpack.c.h.b16 %v2775
        %v2861 = vunpack.c.l.b16 %v2776
        %v2862 = vunpack.c.h.b16 %v2776
        %v2863 = vunpack.c.l.b16 %v2777
        %v2864 = vunpack.c.h.b16 %v2777
        %v2865 = vunpack.c.l.b16 %v2778
        %v2866 = vunpack.c.h.b16 %v2778
        %v2867 = vunpack.c.l.b16 %v2779
        %v2868 = vunpack.c.h.b16 %v2779
        %v2869 = vunpack.c.l.b16 %v2780
        %v2870 = vunpack.c.h.b16 %v2780
        %v2871 = vunpack.c.l.b16 %v2781
        %v2872 = vunpack.c.h.b16 %v2781
        %v2873 = vunpack.c.l.b16 %v2782
        %v2874 = vunpack.c.h.b16 %v2782
        %v2875 = vunpack.c.l.b16 %v2783
        %v2876 = vunpack.c.h.b16 %v2783
        %v2877 = vunpack.c.l.b16 %v2784
        %v2878 = vunpack.c.h.b16 %v2784
        %v2879 = vunpack.c.l.b16 %v2785
        %v2880 = vunpack.c.h.b16 %v2785
        %v2881 = vunpack.c.l.b16 %v2786
        %v2882 = vunpack.c.h.b16 %v2786
        %v2883 = vpack.c.b16 %v2823, %v2819
        %v2884 = vpack.c.b16 %v2824, %v2820
        %v2885 = vpack.c.b16 %v2825, %v2821
        %v2886 = vpack.c.b16 %v2826, %v2822
        %v2887 = vpack.c.b16 %v2831, %v2827
        %v2888 = vpack.c.b16 %v2832, %v2828
        %v2889 = vpack.c.b16 %v2833, %v2829
        %v2890 = vpack.c.b16 %v2834, %v2830
        %v2891 = vpack.c.b16 %v2839, %v2835
        %v2892 = vpack.c.b16 %v2840, %v2836
        %v2893 = vpack.c.b16 %v2841, %v2837
        %v2894 = vpack.c.b16 %v2842, %v2838
        %v2895 = vpack.c.b16 %v2847, %v2843
        %v2896 = vpack.c.b16 %v2848, %v2844
        %v2897 = vpack.c.b16 %v2849, %v2845
        %v2898 = vpack.c.b16 %v2850, %v2846
        %v2899 = vpack.c.b16 %v2855, %v2851
        %v2900 = vpack.c.b16 %v2856, %v2852
        %v2901 = vpack.c.b16 %v2857, %v2853
        %v2902 = vpack.c.b16 %v2858, %v2854
        %v2903 = vpack.c.b16 %v2863, %v2859
        %v2904 = vpack.c.b16 %v2864, %v2860
        %v2905 = vpack.c.b16 %v2865, %v2861
        %v2906 = vpack.c.b16 %v2866, %v2862
        %v2907 = vpack.c.b16 %v2871, %v2867
        %v2908 = vpack.c.b16 %v2872, %v2868
        %v2909 = vpack.c.b16 %v2873, %v2869
        %v2910 = vpack.c.b16 %v2874, %v2870
        %v2911 = vpack.c.b16 %v2879, %v2875
        %v2912 = vpack.c.b16 %v2880, %v2876
        %v2913 = vpack.c.b16 %v2881, %v2877
        %v2914 = vpack.c.b16 %v2882, %v2878
        %2947 = vmatprep.subr.bf16.mxu0 %v2884
        %2948 = vmatpush1.bf16.msra.mxu0 %v2883
        %2949 = vmatprep.subr.bf16.mxu0 %v2888
        %2950 = vmatpush1.bf16.msra.mxu0 %v2887
        %2951 = vmatprep.subr.bf16.mxu0 %v2892
        %2952 = vmatpush1.bf16.msra.mxu0 %v2891
        %2953 = vmatprep.subr.bf16.mxu0 %v2896
        %2954 = vmatpush1.bf16.msra.mxu0 %v2895
        %2955 = vmatprep.subr.bf16.mxu0 %v2900
        %2956 = vmatpush1.bf16.msra.mxu0 %v2899
        %2957 = vmatprep.subr.bf16.mxu0 %v2904
        %2958 = vmatpush1.bf16.msra.mxu0 %v2903
        %2959 = vmatprep.subr.bf16.mxu0 %v2908
        %2960 = vmatpush1.bf16.msra.mxu0 %v2907
        %2961 = vmatprep.subr.bf16.mxu0 %v2912
        %2962 = vmatpush1.bf16.msra.mxu0 %v2911
        %2963 = vmatprep.subr.bf16.mxu0 0
        %2964 = vmatpush1.bf16.msra.mxu0 0
        %2965 = vmatprep.subr.bf16.mxu0 0
        %2966 = vmatpush1.bf16.msra.mxu0 0
        %2967 = vmatprep.subr.bf16.mxu0 0
        %2968 = vmatpush1.bf16.msra.mxu0 0
        %2969 = vmatprep.subr.bf16.mxu0 0
        %2970 = vmatpush1.bf16.msra.mxu0 0
        %2971 = vmatprep.subr.bf16.mxu0 0
        %2972 = vmatpush1.bf16.msra.mxu0 0
        %2973 = vmatprep.subr.bf16.mxu0 0
        %2974 = vmatpush1.bf16.msra.mxu0 0
        %2975 = vmatprep.subr.bf16.mxu0 0
        %2976 = vmatpush1.bf16.msra.mxu0 0
        %2977 = vmatprep.subr.bf16.mxu0 0
        %2978 = vmatpush1.bf16.msra.mxu0 0
        %2979 = vmatprep.mubr.bf16.mxu0 0
        %2980 = vmatmul.mubr.bf16.gmra.mrb[0].mxu0 %v2754
        %v2981 = vpop.f32.mrb[0].mxu0
        %v2982 = vadd.f32 0.0, %v2981
        %v2983 = vpop.f32.mrb[0].mxu0
        %v2984 = vadd.f32 0.0, %v2983
        %v2985 = vpop.f32.mrb[0].mxu0
        %v2986 = vpop.f32.mrb[0].mxu0
        %2987 = vdwg.mxu0
        %2988 = vmatprep.subr.bf16.mxu0 %v2886
        %2989 = vmatpush1.bf16.msra.mxu0 %v2885
        %2990 = vmatprep.subr.bf16.mxu0 %v2890
        %2991 = vmatpush1.bf16.msra.mxu0 %v2889
        %2992 = vmatprep.subr.bf16.mxu0 %v2894
        %2993 = vmatpush1.bf16.msra.mxu0 %v2893
        %2994 = vmatprep.subr.bf16.mxu0 %v2898
        %2995 = vmatpush1.bf16.msra.mxu0 %v2897
        %2996 = vmatprep.subr.bf16.mxu0 %v2902
        %2997 = vmatpush1.bf16.msra.mxu0 %v2901
        %2998 = vmatprep.subr.bf16.mxu0 %v2906
        %2999 = vmatpush1.bf16.msra.mxu0 %v2905
        %3000 = vmatprep.subr.bf16.mxu0 %v2910
        %3001 = vmatpush1.bf16.msra.mxu0 %v2909
        %3002 = vmatprep.subr.bf16.mxu0 %v2914
        %3003 = vmatpush1.bf16.msra.mxu0 %v2913
        %3004 = vmatprep.subr.bf16.mxu0 0
        %3005 = vmatpush1.bf16.msra.mxu0 0
        %3006 = vmatprep.subr.bf16.mxu0 0
        %3007 = vmatpush1.bf16.msra.mxu0 0
        %3008 = vmatprep.subr.bf16.mxu0 0
        %3009 = vmatpush1.bf16.msra.mxu0 0
        %3010 = vmatprep.subr.bf16.mxu0 0
        %3011 = vmatpush1.bf16.msra.mxu0 0
        %3012 = vmatprep.subr.bf16.mxu0 0
        %3013 = vmatpush1.bf16.msra.mxu0 0
        %3014 = vmatprep.subr.bf16.mxu0 0
        %3015 = vmatpush1.bf16.msra.mxu0 0
        %3016 = vmatprep.subr.bf16.mxu0 0
        %3017 = vmatpush1.bf16.msra.mxu0 0
        %3018 = vmatprep.subr.bf16.mxu0 0
        %3019 = vmatpush1.bf16.msra.mxu0 0
        %3020 = vmatprep.mubr.bf16.mxu0 0
        %3021 = vmatmul.mubr.bf16.gmra.mrb[0].mxu0 %v2754
        %v3022 = vpop.f32.mrb[0].mxu0
        %v3023 = vadd.f32 0.0, %v3022
        %v3024 = vpop.f32.mrb[0].mxu0
        %v3025 = vadd.f32 0.0, %v3024
        %v3026 = vpop.f32.mrb[0].mxu0
        %v3027 = vpop.f32.mrb[0].mxu0
        %3028 = vdwg.mxu0
        %v3033 = vcombine.low %v2982, %v2984
        %v3034 = vcombine.low %v3023, %v3025
        %v3037 = vadd.f32 %v2750, %v3033
        %v3038 = vadd.f32 %v2751, %v3034
        %v3039 = vxor.u32 %v3037, 2147483648
        %v3040 = vmul.f32 %v3039, 1.442695
        %v3041 = vpow.pop %v3040
        %v3042 = vadd.f32 %v3041, 1.0
        %v3043 = vrcp.pop %v3042
        %v3044 = vmul.f32 1.0, %v3043
        %v3046 = vrot.slane %v3037, 4
        %v3048 = vxor.u32 %v3046, 2147483648
        %v3049 = vmul.f32 %v3048, 1.442695
        %v3050 = vpow.pop %v3049
        %v3051 = vadd.f32 %v3050, 1.0
        %v3052 = vrcp.pop %v3051
        %v3053 = vmul.f32 1.0, %v3052
        %v3054 = vtanh.pop %v3038
        %v3056 = vrot.slane %v3038, 4
        %v3058 = vxor.u32 %v3056, 2147483648
        %v3059 = vmul.f32 %v3058, 1.442695
        %v3060 = vpow.pop %v3059
        %v3061 = vadd.f32 %v3060, 1.0
        %v3062 = vrcp.pop %v3061
        %v3063 = vmul.f32 1.0, %v3062
        %v3064 = vmul.f32 %v3053, %v2742
        %v3065 = vmul.f32 %v3044, %v3054
        %v3066 = vadd.f32 %v3064, %v3065
        %v3067 = vtanh.pop %v3066
        %v3068 = vmul.f32 %v3063, %v3067
        %3070 = vset.pattern.permute.xlu0 0
        %3071 = vperm.xlu0 %3070, %v2753
        %v3072 = vpop.permute.xlu0 %3071
        %v3074 = vmul.f32 %v3072, %v3068
        %v3075 = vsub.f32 1.0, %v2753
        %3077 = vset.pattern.permute.xlu0 0
        %3078 = vperm.xlu0 %3077, %v3075
        %v3079 = vpop.permute.xlu0 %3078
        %v3081 = vmul.f32 %v3079, %v2739
        %v3082 = vadd.f32 %v3074, %v3081
        %v3083 = vmul.f32 %v3072, %v3066
        %v3084 = vmul.f32 %v3079, %v2742
        %v3085 = vadd.f32 %v3083, %v3084
        %v3086 = vmul.f32 %v3072, %v3082
        %s3087 = scalar_lea.vmem %s304, %s2747 [#allocation5]
        %3088 = vst [vmem:[%s3087] sm:$0xf] %v3086
        %3089 = vst [vmem:[#allocation2] sm:$0xf] %v3082
        %3090 = vst [vmem:[#allocation3] sm:$0xf] %v3085
        %s3091 = sand.u32 %s140, 1
        %s3092 = sand.u32 %s140, 1
        %s3093 = smul.addr %s3092, 32
        %s3094 = scalar_lea.vmem [#allocation5], %s3093
        // Predicated region
        $region60: #{encoder_forward.6} parent=50 // pred_check
          %p3095 = pneg %p150
        $region61: #{encoder_forward.6} parent=50 // pred_check_branch
          %3097 = sbr.rel (%p3095) target = $region63
        $region62: #{encoder_forward.6} parent=50 // pred_region
          %s3098 = smul.u32 %s19, 2
          %s3099 = ssub.s32 1, %s3098
          %s3100 = smul.u32 %s18, %s3099
          %s3101 = sadd.s32 %s19, %s3100
          %s3102 = smul.u32 8, %s3101
          %s3103 = smul.addr %s3102, 2
          %s3104 = sadd.s32 %s18, %s3103
          %s3105 = smul.addr %s3104, 4
          %s3106 = scalar_lea.vmem %s3, %s3105
          // Predicated region
          $region64: #{encoder_forward.6} parent=62 // pred_check
            _
          $region65: #{encoder_forward.6} parent=62 // pred_check_branch
            %3108 = sbr.rel (0) target = $region67
          $region66: #{encoder_forward.6} parent=62 // pred_region
            // Predicated region
            $region68: #{encoder_forward.6} parent=66 // pred_check
              _
            $region69: #{encoder_forward.6} parent=66 // pred_check_branch
              %3110 = sbr.rel target = $region71
            $region70: #{encoder_forward.6} parent=66 // pred_region
              // Predicated region
              $region83: #{encoder_forward.6} parent=70 // pred_check
                _
              $region84: #{encoder_forward.6} parent=70 // pred_check_branch
                %3139 = sbr.rel (0) target = $region86
              $region85: #{encoder_forward.6} parent=70 // pred_region
                loop: start=0, step=1, limit=1
                $region87: #{encoder_forward.6} parent=85 // loop_pre_header
                  _
                $region88: #{encoder_forward.6} parent=85 // loop_header
                  %s3141 = sphi 0, %s3145
                  %p3142 = scmp.ge.s32.totalorder %s3141, 1
                  %s3146 = sphi %s3094, %s3094
                  %s3147 = sphi %s3106, %s3106
                $region89: #{encoder_forward.6} parent=85 // loop_header_branch
                  %3144 = sbr.rel (%p3142) target = $region93
                $region90: #{encoder_forward.6} parent=85 // loop_body
                  _
                $region91: #{encoder_forward.6} parent=85 // loop_footer
                  %s3145 = sadd.s32 1, %s3141
                $region92: #{encoder_forward.6} parent=85 // loop_footer_branch
                  %3140 = sbr.rel target = $region88
                $region93: #{encoder_forward.6} parent=85 // loop_exit
                  _
                loop: start=0, step=1, limit=1
                $region94: #{encoder_forward.6} parent=85 // loop_pre_header
                  _
                $region95: #{encoder_forward.6} parent=85 // loop_header
                  %s3150 = sphi 0, %s3154
                  %p3151 = scmp.ge.s32.totalorder %s3150, 1
                  %s3155 = sphi %s3094, %s3094
                  %s3156 = sphi %s3106, %s3106
                $region96: #{encoder_forward.6} parent=85 // loop_header_branch
                  %3153 = sbr.rel (%p3151) target = $region100
                $region97: #{encoder_forward.6} parent=85 // loop_body
                  %v3157 = vld [vmem:[%s3155] sm:$0xf]
                  %3158 = vst [vmem:[%s3156] sm:$0xf] %v3157
                  %v3159 = vld [vmem:[%s3155 + $0x4] sm:$0xf]
                  %3160 = vst [vmem:[%s3156 + $0x8] sm:$0xf] %v3159
                  %v3161 = vld [vmem:[%s3155 + $0x8] sm:$0xf]
                  %3162 = vst [vmem:[%s3156 + $0x10] sm:$0xf] %v3161
                  %v3163 = vld [vmem:[%s3155 + $0xc] sm:$0xf]
                  %3164 = vst [vmem:[%s3156 + $0x18] sm:$0xf] %v3163
                  %v3165 = vld [vmem:[%s3155 + $0x10] sm:$0xf]
                  %3166 = vst [vmem:[%s3156 + $0x20] sm:$0xf] %v3165
                  %v3167 = vld [vmem:[%s3155 + $0x14] sm:$0xf]
                  %3168 = vst [vmem:[%s3156 + $0x28] sm:$0xf] %v3167
                  %v3169 = vld [vmem:[%s3155 + $0x18] sm:$0xf]
                  %3170 = vst [vmem:[%s3156 + $0x30] sm:$0xf] %v3169
                  %v3171 = vld [vmem:[%s3155 + $0x1c] sm:$0xf]
                  %3172 = vst [vmem:[%s3156 + $0x38] sm:$0xf] %v3171
                $region98: #{encoder_forward.6} parent=85 // loop_footer
                  %s3154 = sadd.s32 1, %s3150
                $region99: #{encoder_forward.6} parent=85 // loop_footer_branch
                  %3149 = sbr.rel target = $region95
                $region100: #{encoder_forward.6} parent=85 // loop_exit
                  _
              $region86: #{encoder_forward.6} parent=70 // pred_fallthru
                _
            $region71: #{encoder_forward.6} parent=66 // pred_fallthru
              _
            // Predicated region
            $region72: #{encoder_forward.6} parent=66 // pred_check
              _
            $region73: #{encoder_forward.6} parent=66 // pred_check_branch
              %3112 = sbr.rel (0) target = $region75
            $region74: #{encoder_forward.6} parent=66 // pred_region
              loop: start=0, step=1, limit=1
              $region76: #{encoder_forward.6} parent=74 // loop_pre_header
                _
              $region77: #{encoder_forward.6} parent=74 // loop_header
                %s3115 = sphi 0, %s3119
                %p3116 = scmp.ge.s32.totalorder %s3115, 1
                %s3120 = sphi %s3094, %s3094
                %s3121 = sphi %s3106, %s3106
              $region78: #{encoder_forward.6} parent=74 // loop_header_branch
                %3118 = sbr.rel (%p3116) target = $region82
              $region79: #{encoder_forward.6} parent=74 // loop_body
                %v3122 = vld [vmem:[%s3120] sm:$0xf]
                %3123 = vst [vmem:[%s3121] sm:$0xf] %v3122
                %v3124 = vld [vmem:[%s3120 + $0x4] sm:$0xf]
                %3125 = vst [vmem:[%s3121 + $0x8] sm:$0xf] %v3124
                %v3126 = vld [vmem:[%s3120 + $0x8] sm:$0xf]
                %3127 = vst [vmem:[%s3121 + $0x10] sm:$0xf] %v3126
                %v3128 = vld [vmem:[%s3120 + $0xc] sm:$0xf]
                %3129 = vst [vmem:[%s3121 + $0x18] sm:$0xf] %v3128
                %v3130 = vld [vmem:[%s3120 + $0x10] sm:$0xf]
                %3131 = vst [vmem:[%s3121 + $0x20] sm:$0xf] %v3130
                %v3132 = vld [vmem:[%s3120 + $0x14] sm:$0xf]
                %3133 = vst [vmem:[%s3121 + $0x28] sm:$0xf] %v3132
                %v3134 = vld [vmem:[%s3120 + $0x18] sm:$0xf]
                %3135 = vst [vmem:[%s3121 + $0x30] sm:$0xf] %v3134
                %v3136 = vld [vmem:[%s3120 + $0x1c] sm:$0xf]
                %3137 = vst [vmem:[%s3121 + $0x38] sm:$0xf] %v3136
              $region80: #{encoder_forward.6} parent=74 // loop_footer
                %s3119 = sadd.s32 1, %s3115
              $region81: #{encoder_forward.6} parent=74 // loop_footer_branch
                %3114 = sbr.rel target = $region77
              $region82: #{encoder_forward.6} parent=74 // loop_exit
                _
            $region75: #{encoder_forward.6} parent=66 // pred_fallthru
              _
          $region67: #{encoder_forward.6} parent=62 // pred_fallthru
            _
          %3173 = vnop
        $region63: #{encoder_forward.6} parent=50 // pred_fallthru
          _
      $region51: #{encoder_forward.6} parent=5 // pred_fallthru
        _
      %p3174 = scmp.le.s32.totalorder 2, %s9
      // Predicated region
      $region101: #{encoder_forward.6} parent=5 // pred_check
        %p3175 = pneg %p3174
      $region102: #{encoder_forward.6} parent=5 // pred_check_branch
        %3177 = sbr.rel (%p3175) target = $region104
      $region103: #{encoder_forward.6} parent=5 // pred_region
        %s3178 = ssub.s32 %s9, 2
        // Predicated region
        $region105: #{encoder_forward.6} parent=103 // pred_check
          %p3179 = pneg %p156
        $region106: #{encoder_forward.6} parent=103 // pred_check_branch
          %3181 = sbr.rel (%p3179) target = $region108
        $region107: #{encoder_forward.6} parent=103 // pred_region
          %s3182 = sand.u32 %s141, 1
          %s3183 = sand.u32 %s141, 1
          %s3184 = smul.addr %s3183, 32
          %s3185 = scalar_lea.vmem [#allocation5], %s3184
        $region108: #{encoder_forward.6} parent=103 // pred_fallthru
          _
      $region104: #{encoder_forward.6} parent=5 // pred_fallthru
        _
    $region6: #{encoder_forward.6} parent=1 // loop_footer
      %s13 = sadd.s32 1, %s9
    $region7: #{encoder_forward.6} parent=1 // loop_footer_branch
      %8 = sbr.rel target = $region3
    $region8: #{encoder_forward.6} parent=1 // loop_exit
      _

</llo_original>
